<compile_context>
chip_gen: v6e
topology: v6e:2x2x1
jax: 0.10.0
libtpu: 0.0.40
codegen_flags: <defaults>
</compile_context>

<pallas_src>
import math

import numpy as np

import jax
import jax.numpy as jnp
from jax.experimental import pallas as pl
from jax.experimental.pallas import tpu as pltpu

EPS = 1e-6  # LayerNorm2d eps

# Parameter ordering for the fused kernel (all shared across the batch grid axis).
PARAM_KEYS = (
    "n1w", "n1b", "scaW", "scab",
    "w110", "b110", "w111", "b111",
    "w1", "b1", "w21", "b21",
    "w20", "b20", "w22", "b22", "w211", "b211", "attg",
    "Wg", "bT", "ga1", "w3", "b3", "beta",
    "n2w", "n2b", "w4", "b4", "w5", "b5", "gamma",
)


# --------------------------- fused kernel --------------------------------------------

def make_kbblock_kernel(H, W, C, nset, g):
    cg = C // g

    def kernel(x_ref, m_ref, *rest):
        o_ref = rest[-1]
        prm = dict(zip(PARAM_KEYS, rest[:-1]))

        def P(name):
            return prm[name][...]

        x = x_ref[0]            # (C, HW): raw block input (channels=sublanes, pixels=lanes)
        masks = m_ref[...]      # (9, HW): 0/1 boundary masks for the 3x3 taps

        # ---- 3x3 tap helper: flat lane roll + boundary mask (in-kernel im2col) ----
        def taps9(v):
            out = []
            for ky in range(3):
                for kx in range(3):
                    dy, dx = ky - 1, kx - 1
                    s = dy * W + dx
                    if s == 0:
                        out.append(v)
                    else:
                        t = ky * 3 + kx
                        out.append(jnp.roll(v, -s, axis=1) * masks[t:t + 1, :])
            return out

        def dw3x3(v, wname, bname):
            wv, bv = P(wname), P(bname)                      # (ch, 9), (ch, 1)
            ts = taps9(v)
            acc = jnp.zeros_like(v) + bv
            for t in range(9):
                acc = acc + wv[:, t:t + 1] * ts[t]
            return acc

        # ---- norm1 (LayerNorm over channels, per pixel) ----
        mu = jnp.mean(x, axis=0, keepdims=True)
        var = jnp.mean((x - mu) ** 2, axis=0, keepdims=True)
        xn = (x - mu) * jax.lax.rsqrt(var + EPS) * P("n1w") + P("n1b")

        # ---- sca = 1x1(avgpool(xn)); pool folded after the matmul (linearity) ----
        sca = jnp.mean(
            jnp.dot(P("scaW"), xn, preferred_element_type=jnp.float32),
            axis=1, keepdims=True) + P("scab")               # (C, 1)

        # ---- x1 = conv11 = dw3x3(1x1(xn))  (lightweight=True) ----
        t11 = jnp.dot(P("w110"), xn, preferred_element_type=jnp.float32) + P("b110")
        x1 = dw3x3(t11, "w111", "b111")

        # ---- uf = conv21(conv1(xn)) ----
        t1 = jnp.dot(P("w1"), xn, preferred_element_type=jnp.float32) + P("b1")
        uf = dw3x3(t1, "w21", "b21")

        # ---- att = SimpleGate(dw3x3(xn)) -> 1x1  (conv2), * attgamma + conv211(xn) ----
        a0 = dw3x3(xn, "w20", "b20")                         # interc == C -> depthwise
        half = C // 2
        gate = a0[:half, :] * a0[half:, :]                   # (C//2, HW)
        atta = jnp.dot(P("w22"), gate, preferred_element_type=jnp.float32) + P("b22")
        att0 = jnp.dot(P("w211"), xn, preferred_element_type=jnp.float32) + P("b211")
        att = atta * P("attg") + att0                        # (nset, HW)

        # ---- KBA: per-pixel weighted sum of nset grouped 3x3 basis convs + bias ----
        uf_taps = taps9(uf)                                  # in-kernel unfold of uf
        kba = jnp.dot(P("bT"), att, preferred_element_type=jnp.float32)   # bias = b^T @ att
        Wg = P("Wg")                                         # (g, nset*cg, 9*cg)
        contribs = []
        for gi in range(g):
            # unfold rows for this channel group, (tap-major, channel-minor) ordering
            Ug = jnp.concatenate(
                [tv[gi * cg:(gi + 1) * cg, :] for tv in uf_taps], axis=0)   # (9*cg, HW)
            big = jnp.dot(Wg[gi], Ug, preferred_element_type=jnp.float32)   # (nset*cg, HW)
            # combine the nset basis outputs with the per-pixel attention weights
            acc_g = att[0:1, :] * big[0:cg, :]
            for n in range(1, nset):
                acc_g = acc_g + att[n:n + 1, :] * big[n * cg:(n + 1) * cg, :]
            contribs.append(acc_g)                           # (cg, HW)
        kba = kba + jnp.concatenate(contribs, axis=0)        # (C, HW)

        xk = kba * P("ga1") + uf
        xk = xk * x1 * sca
        xk = jnp.dot(P("w3"), xk, preferred_element_type=jnp.float32) + P("b3")
        y = x + xk * P("beta")                               # first residual

        # ---- FFN: norm2 -> conv4 -> SimpleGate -> conv5 -> second residual ----
        mu2 = jnp.mean(y, axis=0, keepdims=True)
        var2 = jnp.mean((y - mu2) ** 2, axis=0, keepdims=True)
        yn = (y - mu2) * jax.lax.rsqrt(var2 + EPS) * P("n2w") + P("n2b")
        t4 = jnp.dot(P("w4"), yn, preferred_element_type=jnp.float32) + P("b4")  # (2C, HW)
        gg = t4[:C, :] * t4[C:, :]
        o = jnp.dot(P("w5"), gg, preferred_element_type=jnp.float32) + P("b5")
        o_ref[0] = y + o * P("gamma")

    return kernel


# --------------------------- pallas_call plumbing ------------------------------------

def _tap_masks(H, W):
    """(9, H*W) 0/1 masks marking in-bounds source pixels for each 3x3 tap."""
    yy, xx = np.mgrid[0:H, 0:W]
    rows = []
    for dy in (-1, 0, 1):
        for dx in (-1, 0, 1):
            ok = ((yy + dy >= 0) & (yy + dy < H) & (xx + dx >= 0) & (xx + dx < W))
            rows.append(ok.reshape(-1))
    return jnp.asarray(np.stack(rows, axis=0).astype(np.float32))


def _batched_spec(shape):
    nd = len(shape)
    return pl.BlockSpec((1,) + tuple(shape[1:]),
                        lambda b, _n=nd: (b,) + (0,) * (_n - 1))


def _shared_spec(shape):
    nd = len(shape)
    return pl.BlockSpec(tuple(shape), lambda b, _n=nd: (0,) * _n)


def kbblock_forward(inp_nchw, params):
    B, C, H, W = inp_nchw.shape
    HW = H * W
    nset = params["attg"].shape[0]
    g = params["Wg"].shape[0]

    # NCHW -> (B, C, H*W): channels in sublanes, pixels lane-dense.  Pure reshape.
    x = inp_nchw.reshape(B, C, HW).astype(jnp.float32)
    masks = _tap_masks(H, W)
    args = [x, masks] + [params[k] for k in PARAM_KEYS]

    out = pl.pallas_call(
        make_kbblock_kernel(H, W, C, nset, g),
        grid=(B,),
        in_specs=[_batched_spec(x.shape)] + [_shared_spec(a.shape) for a in args[1:]],
        out_specs=pl.BlockSpec((1, C, HW), lambda b: (b, 0, 0)),
        out_shape=jax.ShapeDtypeStruct((B, C, HW), jnp.float32),
        compiler_params=pltpu.CompilerParams(
            dimension_semantics=("parallel",)),   # batch axis -> both TCs on v7x
    )(*args)
    return out.reshape(B, C, H, W)


# --------------------------- deterministic parameter init ----------------------------

def init_params(key, c=8, nset=6, k=3, gc=4, dw_expand=2, ffn_expand=2):
    g = c // gc
    cg = c // g
    kk = k * k
    interc = min(c, 32)
    ffn_ch = ffn_expand * c
    assert k == 3
    assert interc == c, "fused kernel assumes c <= 32 so conv2[0] is purely depthwise"
    assert dw_expand * c // 2 == c

    kit = iter(jax.random.split(key, 40))

    def unif(shape, bound):
        return jax.random.uniform(next(kit), shape, jnp.float32, -bound, bound)

    def conv1x1(cin, cout):             # weight (Cout, Cin), bias (Cout, 1)
        s = 1.0 / math.sqrt(cin)
        return unif((cout, cin), s), unif((cout, 1), s)

    def dwconv(ch):                     # depthwise 3x3: weight (ch, 9), bias (ch, 1)
        s = 1.0 / 3.0
        return unif((ch, kk), s), unif((ch, 1), s)

    p = {}
    fan_in = c * cg * kk
    w_param = unif((nset, fan_in), 1.0 / math.sqrt(fan_in))        # self.w
    b_param = unif((nset, c), 1.0 / math.sqrt(fan_in))             # self.b

    # KBA basis weights packed per channel group (no block-diagonal zero padding):
    #   Wg[gi][n*cg + co, tap*cg + ci] = w[n, gi, co, ci, tap]
    # matching the kernel's tap-major / channel-minor in-kernel unfold of uf.
    w5d = w_param.reshape(nset, g, cg, cg, kk)                     # [n, gi, co, ci, tap]
    p["Wg"] = jnp.transpose(w5d, (1, 0, 2, 4, 3)).reshape(g, nset * cg, kk * cg)
    p["bT"] = b_param.T                                            # (c, nset)

    p["n1w"], p["n1b"] = jnp.ones((c, 1), jnp.float32), jnp.zeros((c, 1), jnp.float32)
    p["n2w"], p["n2b"] = jnp.ones((c, 1), jnp.float32), jnp.zeros((c, 1), jnp.float32)
    p["scaW"], p["scab"] = conv1x1(c, c)
    p["w110"], p["b110"] = conv1x1(c, c)            # conv11[0]
    p["w111"], p["b111"] = dwconv(c)                # conv11[1]
    p["w1"], p["b1"] = conv1x1(c, c)                # conv1
    p["w21"], p["b21"] = dwconv(c)                  # conv21
    p["w20"], p["b20"] = dwconv(interc)             # conv2[0]
    p["w22"], p["b22"] = conv1x1(interc // 2, nset)  # conv2[2]
    p["w211"], p["b211"] = conv1x1(c, nset)         # conv211
    p["w3"], p["b3"] = conv1x1(dw_expand * c // 2, c)
    p["w4"], p["b4"] = conv1x1(c, ffn_ch)
    p["w5"], p["b5"] = conv1x1(ffn_ch // 2, c)
    p["ga1"] = jnp.full((c, 1), 0.01, jnp.float32)
    p["attg"] = jnp.full((nset, 1), 0.01, jnp.float32)
    p["beta"] = jnp.full((c, 1), 0.01, jnp.float32)
    p["gamma"] = jnp.full((c, 1), 0.01, jnp.float32)
    return p


# --------------------------- main ----------------------------------------------------

if __name__ == "__main__":
    key = jax.random.PRNGKey(0)
    kp, kx = jax.random.split(key)

    B, c, H, W = 2, 8, 16, 16        # c=8, gc=4 -> g=2 groups; nset=6 kernel bases
    nset, k, gc = 6, 3, 4

    params = init_params(kp, c=c, nset=nset, k=k, gc=gc)
    x = jax.random.normal(kx, (B, c, H, W), jnp.float32)

    out = jax.jit(kbblock_forward)(x, params)
    out = jax.block_until_ready(out)

    assert out.shape == (B, c, H, W), out.shape
    assert bool(jnp.all(jnp.isfinite(out)))
    print("KERNEL_OK")
</pallas_src>

<mosaic_0001>
module attributes {stable_mosaic.version = 11 : i64} {
  func.func @kernel(%arg0: i32, %arg1: memref<1x8x256xf32, #tpu.memory_space<vmem>>, %arg2: memref<9x256xf32, #tpu.memory_space<vmem>>, %arg3: memref<8x1xf32, #tpu.memory_space<vmem>>, %arg4: memref<8x1xf32, #tpu.memory_space<vmem>>, %arg5: memref<8x8xf32, #tpu.memory_space<vmem>>, %arg6: memref<8x1xf32, #tpu.memory_space<vmem>>, %arg7: memref<8x8xf32, #tpu.memory_space<vmem>>, %arg8: memref<8x1xf32, #tpu.memory_space<vmem>>, %arg9: memref<8x9xf32, #tpu.memory_space<vmem>>, %arg10: memref<8x1xf32, #tpu.memory_space<vmem>>, %arg11: memref<8x8xf32, #tpu.memory_space<vmem>>, %arg12: memref<8x1xf32, #tpu.memory_space<vmem>>, %arg13: memref<8x9xf32, #tpu.memory_space<vmem>>, %arg14: memref<8x1xf32, #tpu.memory_space<vmem>>, %arg15: memref<8x9xf32, #tpu.memory_space<vmem>>, %arg16: memref<8x1xf32, #tpu.memory_space<vmem>>, %arg17: memref<6x4xf32, #tpu.memory_space<vmem>>, %arg18: memref<6x1xf32, #tpu.memory_space<vmem>>, %arg19: memref<6x8xf32, #tpu.memory_space<vmem>>, %arg20: memref<6x1xf32, #tpu.memory_space<vmem>>, %arg21: memref<6x1xf32, #tpu.memory_space<vmem>>, %arg22: memref<2x24x36xf32, #tpu.memory_space<vmem>>, %arg23: memref<8x6xf32, #tpu.memory_space<vmem>>, %arg24: memref<8x1xf32, #tpu.memory_space<vmem>>, %arg25: memref<8x8xf32, #tpu.memory_space<vmem>>, %arg26: memref<8x1xf32, #tpu.memory_space<vmem>>, %arg27: memref<8x1xf32, #tpu.memory_space<vmem>>, %arg28: memref<8x1xf32, #tpu.memory_space<vmem>>, %arg29: memref<8x1xf32, #tpu.memory_space<vmem>>, %arg30: memref<16x8xf32, #tpu.memory_space<vmem>>, %arg31: memref<16x1xf32, #tpu.memory_space<vmem>>, %arg32: memref<8x8xf32, #tpu.memory_space<vmem>>, %arg33: memref<8x1xf32, #tpu.memory_space<vmem>>, %arg34: memref<8x1xf32, #tpu.memory_space<vmem>>, %arg35: memref<1x8x256xf32, #tpu.memory_space<vmem>>) attributes {dimension_semantics = [#tpu.dimension_semantics<parallel>], iteration_bounds = array<i64: 2>, scalar_prefetch = 0 : i64, scratch_operands = 0 : i64, tpu.core_type = #tpu.core_type<tc>, window_params = [{transform_indices = @transform_0, window_bounds = array<i64: 1, 8, 256>}, {pipeline_mode = #tpu.pipeline_mode<synchronous>, transform_indices = @transform_1, window_bounds = array<i64: 9, 256>}, {pipeline_mode = #tpu.pipeline_mode<synchronous>, transform_indices = @transform_2, window_bounds = array<i64: 8, 1>}, {pipeline_mode = #tpu.pipeline_mode<synchronous>, transform_indices = @transform_3, window_bounds = array<i64: 8, 1>}, {pipeline_mode = #tpu.pipeline_mode<synchronous>, transform_indices = @transform_4, window_bounds = array<i64: 8, 8>}, {pipeline_mode = #tpu.pipeline_mode<synchronous>, transform_indices = @transform_5, window_bounds = array<i64: 8, 1>}, {pipeline_mode = #tpu.pipeline_mode<synchronous>, transform_indices = @transform_6, window_bounds = array<i64: 8, 8>}, {pipeline_mode = #tpu.pipeline_mode<synchronous>, transform_indices = @transform_7, window_bounds = array<i64: 8, 1>}, {pipeline_mode = #tpu.pipeline_mode<synchronous>, transform_indices = @transform_8, window_bounds = array<i64: 8, 9>}, {pipeline_mode = #tpu.pipeline_mode<synchronous>, transform_indices = @transform_9, window_bounds = array<i64: 8, 1>}, {pipeline_mode = #tpu.pipeline_mode<synchronous>, transform_indices = @transform_10, window_bounds = array<i64: 8, 8>}, {pipeline_mode = #tpu.pipeline_mode<synchronous>, transform_indices = @transform_11, window_bounds = array<i64: 8, 1>}, {pipeline_mode = #tpu.pipeline_mode<synchronous>, transform_indices = @transform_12, window_bounds = array<i64: 8, 9>}, {pipeline_mode = #tpu.pipeline_mode<synchronous>, transform_indices = @transform_13, window_bounds = array<i64: 8, 1>}, {pipeline_mode = #tpu.pipeline_mode<synchronous>, transform_indices = @transform_14, window_bounds = array<i64: 8, 9>}, {pipeline_mode = #tpu.pipeline_mode<synchronous>, transform_indices = @transform_15, window_bounds = array<i64: 8, 1>}, {pipeline_mode = #tpu.pipeline_mode<synchronous>, transform_indices = @transform_16, window_bounds = array<i64: 6, 4>}, {pipeline_mode = #tpu.pipeline_mode<synchronous>, transform_indices = @transform_17, window_bounds = array<i64: 6, 1>}, {pipeline_mode = #tpu.pipeline_mode<synchronous>, transform_indices = @transform_18, window_bounds = array<i64: 6, 8>}, {pipeline_mode = #tpu.pipeline_mode<synchronous>, transform_indices = @transform_19, window_bounds = array<i64: 6, 1>}, {pipeline_mode = #tpu.pipeline_mode<synchronous>, transform_indices = @transform_20, window_bounds = array<i64: 6, 1>}, {pipeline_mode = #tpu.pipeline_mode<synchronous>, transform_indices = @transform_21, window_bounds = array<i64: 2, 24, 36>}, {pipeline_mode = #tpu.pipeline_mode<synchronous>, transform_indices = @transform_22, window_bounds = array<i64: 8, 6>}, {pipeline_mode = #tpu.pipeline_mode<synchronous>, transform_indices = @transform_23, window_bounds = array<i64: 8, 1>}, {pipeline_mode = #tpu.pipeline_mode<synchronous>, transform_indices = @transform_24, window_bounds = array<i64: 8, 8>}, {pipeline_mode = #tpu.pipeline_mode<synchronous>, transform_indices = @transform_25, window_bounds = array<i64: 8, 1>}, {pipeline_mode = #tpu.pipeline_mode<synchronous>, transform_indices = @transform_26, window_bounds = array<i64: 8, 1>}, {pipeline_mode = #tpu.pipeline_mode<synchronous>, transform_indices = @transform_27, window_bounds = array<i64: 8, 1>}, {pipeline_mode = #tpu.pipeline_mode<synchronous>, transform_indices = @transform_28, window_bounds = array<i64: 8, 1>}, {pipeline_mode = #tpu.pipeline_mode<synchronous>, transform_indices = @transform_29, window_bounds = array<i64: 16, 8>}, {pipeline_mode = #tpu.pipeline_mode<synchronous>, transform_indices = @transform_30, window_bounds = array<i64: 16, 1>}, {pipeline_mode = #tpu.pipeline_mode<synchronous>, transform_indices = @transform_31, window_bounds = array<i64: 8, 8>}, {pipeline_mode = #tpu.pipeline_mode<synchronous>, transform_indices = @transform_32, window_bounds = array<i64: 8, 1>}, {pipeline_mode = #tpu.pipeline_mode<synchronous>, transform_indices = @transform_33, window_bounds = array<i64: 8, 1>}, {transform_indices = @transform_34, window_bounds = array<i64: 1, 8, 256>}]} {
    %c0 = arith.constant 0 : index
    %c0_0 = arith.constant 0 : index
    %c0_1 = arith.constant 0 : index
    %0 = vector.load %arg1[%c0, %c0_0, %c0_1] : memref<1x8x256xf32, #tpu.memory_space<vmem>>, vector<1x8x256xf32>
    %1 = vector.shape_cast %0 : vector<1x8x256xf32> to vector<8x256xf32>
    %c0_2 = arith.constant 0 : index
    %c0_3 = arith.constant 0 : index
    %2 = vector.load %arg2[%c0_2, %c0_3] : memref<9x256xf32, #tpu.memory_space<vmem>>, vector<9x256xf32>
    %cst = arith.constant dense<0.000000e+00> : vector<256xf32>
    %3 = vector.multi_reduction <add>, %1, %cst [0] : vector<8x256xf32> to vector<256xf32>
    %4 = vector.shape_cast %3 : vector<256xf32> to vector<1x256xf32>
    %cst_4 = arith.constant 8.000000e+00 : f32
    %5 = vector.broadcast %cst_4 : f32 to vector<1x256xf32>
    %6 = arith.divf %4, %5 : vector<1x256xf32>
    %7 = vector.broadcast %6 : vector<1x256xf32> to vector<8x256xf32>
    %8 = arith.subf %1, %7 : vector<8x256xf32>
    %9 = arith.mulf %8, %8 : vector<8x256xf32>
    %cst_5 = arith.constant dense<0.000000e+00> : vector<256xf32>
    %10 = vector.multi_reduction <add>, %9, %cst_5 [0] : vector<8x256xf32> to vector<256xf32>
    %11 = vector.shape_cast %10 : vector<256xf32> to vector<1x256xf32>
    %cst_6 = arith.constant 8.000000e+00 : f32
    %12 = vector.broadcast %cst_6 : f32 to vector<1x256xf32>
    %13 = arith.divf %11, %12 : vector<1x256xf32>
    %14 = vector.broadcast %6 : vector<1x256xf32> to vector<8x256xf32>
    %15 = arith.subf %1, %14 : vector<8x256xf32>
    %cst_7 = arith.constant 9.99999997E-7 : f32
    %16 = vector.broadcast %cst_7 : f32 to vector<1x256xf32>
    %17 = arith.addf %13, %16 : vector<1x256xf32>
    %18 = math.rsqrt %17 : vector<1x256xf32>
    %19 = vector.broadcast %18 : vector<1x256xf32> to vector<8x256xf32>
    %20 = arith.mulf %15, %19 : vector<8x256xf32>
    %c0_8 = arith.constant 0 : index
    %c0_9 = arith.constant 0 : index
    %21 = vector.load %arg3[%c0_8, %c0_9] : memref<8x1xf32, #tpu.memory_space<vmem>>, vector<8x1xf32>
    %22 = vector.broadcast %21 : vector<8x1xf32> to vector<8x256xf32>
    %23 = arith.mulf %20, %22 : vector<8x256xf32>
    %c0_10 = arith.constant 0 : index
    %c0_11 = arith.constant 0 : index
    %24 = vector.load %arg4[%c0_10, %c0_11] : memref<8x1xf32, #tpu.memory_space<vmem>>, vector<8x1xf32>
    %25 = vector.broadcast %24 : vector<8x1xf32> to vector<8x256xf32>
    %26 = arith.addf %23, %25 : vector<8x256xf32>
    %c0_12 = arith.constant 0 : index
    %c0_13 = arith.constant 0 : index
    %27 = vector.load %arg5[%c0_12, %c0_13] : memref<8x8xf32, #tpu.memory_space<vmem>>, vector<8x8xf32>
    %cst_14 = arith.constant dense<0.000000e+00> : vector<8x256xf32>
    %28 = tpu.matmul %27, %26, %cst_14 {dimension_numbers = #tpu.dot_dimension_numbers<[1], [0], [0], [1], [0, 0, 1, 1], [], []>} : vector<8x8xf32>, vector<8x256xf32>, vector<8x256xf32> -> vector<8x256xf32>
    %cst_15 = arith.constant dense<0.000000e+00> : vector<8xf32>
    %29 = vector.multi_reduction <add>, %28, %cst_15 [1] : vector<8x256xf32> to vector<8xf32>
    %30 = vector.shape_cast %29 : vector<8xf32> to vector<8x1xf32>
    %cst_16 = arith.constant 2.560000e+02 : f32
    %31 = vector.broadcast %cst_16 : f32 to vector<8x1xf32>
    %32 = arith.divf %30, %31 : vector<8x1xf32>
    %c0_17 = arith.constant 0 : index
    %c0_18 = arith.constant 0 : index
    %33 = vector.load %arg6[%c0_17, %c0_18] : memref<8x1xf32, #tpu.memory_space<vmem>>, vector<8x1xf32>
    %34 = arith.addf %32, %33 : vector<8x1xf32>
    %c0_19 = arith.constant 0 : index
    %c0_20 = arith.constant 0 : index
    %35 = vector.load %arg7[%c0_19, %c0_20] : memref<8x8xf32, #tpu.memory_space<vmem>>, vector<8x8xf32>
    %cst_21 = arith.constant dense<0.000000e+00> : vector<8x256xf32>
    %36 = tpu.matmul %35, %26, %cst_21 {dimension_numbers = #tpu.dot_dimension_numbers<[1], [0], [0], [1], [0, 0, 1, 1], [], []>} : vector<8x8xf32>, vector<8x256xf32>, vector<8x256xf32> -> vector<8x256xf32>
    %c0_22 = arith.constant 0 : index
    %c0_23 = arith.constant 0 : index
    %37 = vector.load %arg8[%c0_22, %c0_23] : memref<8x1xf32, #tpu.memory_space<vmem>>, vector<8x1xf32>
    %38 = vector.broadcast %37 : vector<8x1xf32> to vector<8x256xf32>
    %39 = arith.addf %36, %38 : vector<8x256xf32>
    %c0_24 = arith.constant 0 : index
    %c0_25 = arith.constant 0 : index
    %40 = vector.load %arg9[%c0_24, %c0_25] : memref<8x9xf32, #tpu.memory_space<vmem>>, vector<8x9xf32>
    %c0_26 = arith.constant 0 : index
    %c0_27 = arith.constant 0 : index
    %41 = vector.load %arg10[%c0_26, %c0_27] : memref<8x1xf32, #tpu.memory_space<vmem>>, vector<8x1xf32>
    %42 = vector.extract_strided_slice %39 {offsets = [0, 239], sizes = [8, 17], strides = [1, 1]} : vector<8x256xf32> to vector<8x17xf32>
    %43 = vector.extract_strided_slice %39 {offsets = [0, 0], sizes = [8, 239], strides = [1, 1]} : vector<8x256xf32> to vector<8x239xf32>
    %44 = tpu.concatenate %42, %43 in 1 : vector<8x17xf32>, vector<8x239xf32> -> vector<8x256xf32>
    %45 = vector.extract_strided_slice %2 {offsets = [0, 0], sizes = [1, 256], strides = [1, 1]} : vector<9x256xf32> to vector<1x256xf32>
    %46 = vector.broadcast %45 : vector<1x256xf32> to vector<8x256xf32>
    %47 = arith.mulf %44, %46 : vector<8x256xf32>
    %48 = vector.extract_strided_slice %39 {offsets = [0, 240], sizes = [8, 16], strides = [1, 1]} : vector<8x256xf32> to vector<8x16xf32>
    %49 = vector.extract_strided_slice %39 {offsets = [0, 0], sizes = [8, 240], strides = [1, 1]} : vector<8x256xf32> to vector<8x240xf32>
    %50 = tpu.concatenate %48, %49 in 1 : vector<8x16xf32>, vector<8x240xf32> -> vector<8x256xf32>
    %51 = vector.extract_strided_slice %2 {offsets = [1, 0], sizes = [1, 256], strides = [1, 1]} : vector<9x256xf32> to vector<1x256xf32>
    %52 = vector.broadcast %51 : vector<1x256xf32> to vector<8x256xf32>
    %53 = arith.mulf %50, %52 : vector<8x256xf32>
    %54 = vector.extract_strided_slice %39 {offsets = [0, 241], sizes = [8, 15], strides = [1, 1]} : vector<8x256xf32> to vector<8x15xf32>
    %55 = vector.extract_strided_slice %39 {offsets = [0, 0], sizes = [8, 241], strides = [1, 1]} : vector<8x256xf32> to vector<8x241xf32>
    %56 = tpu.concatenate %54, %55 in 1 : vector<8x15xf32>, vector<8x241xf32> -> vector<8x256xf32>
    %57 = vector.extract_strided_slice %2 {offsets = [2, 0], sizes = [1, 256], strides = [1, 1]} : vector<9x256xf32> to vector<1x256xf32>
    %58 = vector.broadcast %57 : vector<1x256xf32> to vector<8x256xf32>
    %59 = arith.mulf %56, %58 : vector<8x256xf32>
    %60 = vector.extract_strided_slice %39 {offsets = [0, 255], sizes = [8, 1], strides = [1, 1]} : vector<8x256xf32> to vector<8x1xf32>
    %61 = vector.extract_strided_slice %39 {offsets = [0, 0], sizes = [8, 255], strides = [1, 1]} : vector<8x256xf32> to vector<8x255xf32>
    %62 = tpu.concatenate %60, %61 in 1 : vector<8x1xf32>, vector<8x255xf32> -> vector<8x256xf32>
    %63 = vector.extract_strided_slice %2 {offsets = [3, 0], sizes = [1, 256], strides = [1, 1]} : vector<9x256xf32> to vector<1x256xf32>
    %64 = vector.broadcast %63 : vector<1x256xf32> to vector<8x256xf32>
    %65 = arith.mulf %62, %64 : vector<8x256xf32>
    %66 = vector.extract_strided_slice %39 {offsets = [0, 1], sizes = [8, 255], strides = [1, 1]} : vector<8x256xf32> to vector<8x255xf32>
    %67 = vector.extract_strided_slice %39 {offsets = [0, 0], sizes = [8, 1], strides = [1, 1]} : vector<8x256xf32> to vector<8x1xf32>
    %68 = tpu.concatenate %66, %67 in 1 : vector<8x255xf32>, vector<8x1xf32> -> vector<8x256xf32>
    %69 = vector.extract_strided_slice %2 {offsets = [5, 0], sizes = [1, 256], strides = [1, 1]} : vector<9x256xf32> to vector<1x256xf32>
    %70 = vector.broadcast %69 : vector<1x256xf32> to vector<8x256xf32>
    %71 = arith.mulf %68, %70 : vector<8x256xf32>
    %72 = vector.extract_strided_slice %39 {offsets = [0, 15], sizes = [8, 241], strides = [1, 1]} : vector<8x256xf32> to vector<8x241xf32>
    %73 = vector.extract_strided_slice %39 {offsets = [0, 0], sizes = [8, 15], strides = [1, 1]} : vector<8x256xf32> to vector<8x15xf32>
    %74 = tpu.concatenate %72, %73 in 1 : vector<8x241xf32>, vector<8x15xf32> -> vector<8x256xf32>
    %75 = vector.extract_strided_slice %2 {offsets = [6, 0], sizes = [1, 256], strides = [1, 1]} : vector<9x256xf32> to vector<1x256xf32>
    %76 = vector.broadcast %75 : vector<1x256xf32> to vector<8x256xf32>
    %77 = arith.mulf %74, %76 : vector<8x256xf32>
    %78 = vector.extract_strided_slice %39 {offsets = [0, 16], sizes = [8, 240], strides = [1, 1]} : vector<8x256xf32> to vector<8x240xf32>
    %79 = vector.extract_strided_slice %39 {offsets = [0, 0], sizes = [8, 16], strides = [1, 1]} : vector<8x256xf32> to vector<8x16xf32>
    %80 = tpu.concatenate %78, %79 in 1 : vector<8x240xf32>, vector<8x16xf32> -> vector<8x256xf32>
    %81 = vector.extract_strided_slice %2 {offsets = [7, 0], sizes = [1, 256], strides = [1, 1]} : vector<9x256xf32> to vector<1x256xf32>
    %82 = vector.broadcast %81 : vector<1x256xf32> to vector<8x256xf32>
    %83 = arith.mulf %80, %82 : vector<8x256xf32>
    %84 = vector.extract_strided_slice %39 {offsets = [0, 17], sizes = [8, 239], strides = [1, 1]} : vector<8x256xf32> to vector<8x239xf32>
    %85 = vector.extract_strided_slice %39 {offsets = [0, 0], sizes = [8, 17], strides = [1, 1]} : vector<8x256xf32> to vector<8x17xf32>
    %86 = tpu.concatenate %84, %85 in 1 : vector<8x239xf32>, vector<8x17xf32> -> vector<8x256xf32>
    %87 = vector.extract_strided_slice %2 {offsets = [8, 0], sizes = [1, 256], strides = [1, 1]} : vector<9x256xf32> to vector<1x256xf32>
    %88 = vector.broadcast %87 : vector<1x256xf32> to vector<8x256xf32>
    %89 = arith.mulf %86, %88 : vector<8x256xf32>
    %cst_28 = arith.constant 0.000000e+00 : f32
    %90 = vector.broadcast %cst_28 : f32 to vector<8x256xf32>
    %91 = vector.broadcast %41 : vector<8x1xf32> to vector<8x256xf32>
    %92 = arith.addf %90, %91 : vector<8x256xf32>
    %93 = vector.extract_strided_slice %40 {offsets = [0, 0], sizes = [8, 1], strides = [1, 1]} : vector<8x9xf32> to vector<8x1xf32>
    %94 = vector.broadcast %93 : vector<8x1xf32> to vector<8x256xf32>
    %95 = arith.mulf %94, %47 : vector<8x256xf32>
    %96 = arith.addf %92, %95 : vector<8x256xf32>
    %97 = vector.extract_strided_slice %40 {offsets = [0, 1], sizes = [8, 1], strides = [1, 1]} : vector<8x9xf32> to vector<8x1xf32>
    %98 = vector.broadcast %97 : vector<8x1xf32> to vector<8x256xf32>
    %99 = arith.mulf %98, %53 : vector<8x256xf32>
    %100 = arith.addf %96, %99 : vector<8x256xf32>
    %101 = vector.extract_strided_slice %40 {offsets = [0, 2], sizes = [8, 1], strides = [1, 1]} : vector<8x9xf32> to vector<8x1xf32>
    %102 = vector.broadcast %101 : vector<8x1xf32> to vector<8x256xf32>
    %103 = arith.mulf %102, %59 : vector<8x256xf32>
    %104 = arith.addf %100, %103 : vector<8x256xf32>
    %105 = vector.extract_strided_slice %40 {offsets = [0, 3], sizes = [8, 1], strides = [1, 1]} : vector<8x9xf32> to vector<8x1xf32>
    %106 = vector.broadcast %105 : vector<8x1xf32> to vector<8x256xf32>
    %107 = arith.mulf %106, %65 : vector<8x256xf32>
    %108 = arith.addf %104, %107 : vector<8x256xf32>
    %109 = vector.extract_strided_slice %40 {offsets = [0, 4], sizes = [8, 1], strides = [1, 1]} : vector<8x9xf32> to vector<8x1xf32>
    %110 = vector.broadcast %109 : vector<8x1xf32> to vector<8x256xf32>
    %111 = arith.mulf %110, %39 : vector<8x256xf32>
    %112 = arith.addf %108, %111 : vector<8x256xf32>
    %113 = vector.extract_strided_slice %40 {offsets = [0, 5], sizes = [8, 1], strides = [1, 1]} : vector<8x9xf32> to vector<8x1xf32>
    %114 = vector.broadcast %113 : vector<8x1xf32> to vector<8x256xf32>
    %115 = arith.mulf %114, %71 : vector<8x256xf32>
    %116 = arith.addf %112, %115 : vector<8x256xf32>
    %117 = vector.extract_strided_slice %40 {offsets = [0, 6], sizes = [8, 1], strides = [1, 1]} : vector<8x9xf32> to vector<8x1xf32>
    %118 = vector.broadcast %117 : vector<8x1xf32> to vector<8x256xf32>
    %119 = arith.mulf %118, %77 : vector<8x256xf32>
    %120 = arith.addf %116, %119 : vector<8x256xf32>
    %121 = vector.extract_strided_slice %40 {offsets = [0, 7], sizes = [8, 1], strides = [1, 1]} : vector<8x9xf32> to vector<8x1xf32>
    %122 = vector.broadcast %121 : vector<8x1xf32> to vector<8x256xf32>
    %123 = arith.mulf %122, %83 : vector<8x256xf32>
    %124 = arith.addf %120, %123 : vector<8x256xf32>
    %125 = vector.extract_strided_slice %40 {offsets = [0, 8], sizes = [8, 1], strides = [1, 1]} : vector<8x9xf32> to vector<8x1xf32>
    %126 = vector.broadcast %125 : vector<8x1xf32> to vector<8x256xf32>
    %127 = arith.mulf %126, %89 : vector<8x256xf32>
    %128 = arith.addf %124, %127 : vector<8x256xf32>
    %c0_29 = arith.constant 0 : index
    %c0_30 = arith.constant 0 : index
    %129 = vector.load %arg11[%c0_29, %c0_30] : memref<8x8xf32, #tpu.memory_space<vmem>>, vector<8x8xf32>
    %cst_31 = arith.constant dense<0.000000e+00> : vector<8x256xf32>
    %130 = tpu.matmul %129, %26, %cst_31 {dimension_numbers = #tpu.dot_dimension_numbers<[1], [0], [0], [1], [0, 0, 1, 1], [], []>} : vector<8x8xf32>, vector<8x256xf32>, vector<8x256xf32> -> vector<8x256xf32>
    %c0_32 = arith.constant 0 : index
    %c0_33 = arith.constant 0 : index
    %131 = vector.load %arg12[%c0_32, %c0_33] : memref<8x1xf32, #tpu.memory_space<vmem>>, vector<8x1xf32>
    %132 = vector.broadcast %131 : vector<8x1xf32> to vector<8x256xf32>
    %133 = arith.addf %130, %132 : vector<8x256xf32>
    %c0_34 = arith.constant 0 : index
    %c0_35 = arith.constant 0 : index
    %134 = vector.load %arg13[%c0_34, %c0_35] : memref<8x9xf32, #tpu.memory_space<vmem>>, vector<8x9xf32>
    %c0_36 = arith.constant 0 : index
    %c0_37 = arith.constant 0 : index
    %135 = vector.load %arg14[%c0_36, %c0_37] : memref<8x1xf32, #tpu.memory_space<vmem>>, vector<8x1xf32>
    %136 = vector.extract_strided_slice %133 {offsets = [0, 239], sizes = [8, 17], strides = [1, 1]} : vector<8x256xf32> to vector<8x17xf32>
    %137 = vector.extract_strided_slice %133 {offsets = [0, 0], sizes = [8, 239], strides = [1, 1]} : vector<8x256xf32> to vector<8x239xf32>
    %138 = tpu.concatenate %136, %137 in 1 : vector<8x17xf32>, vector<8x239xf32> -> vector<8x256xf32>
    %139 = vector.extract_strided_slice %2 {offsets = [0, 0], sizes = [1, 256], strides = [1, 1]} : vector<9x256xf32> to vector<1x256xf32>
    %140 = vector.broadcast %139 : vector<1x256xf32> to vector<8x256xf32>
    %141 = arith.mulf %138, %140 : vector<8x256xf32>
    %142 = vector.extract_strided_slice %133 {offsets = [0, 240], sizes = [8, 16], strides = [1, 1]} : vector<8x256xf32> to vector<8x16xf32>
    %143 = vector.extract_strided_slice %133 {offsets = [0, 0], sizes = [8, 240], strides = [1, 1]} : vector<8x256xf32> to vector<8x240xf32>
    %144 = tpu.concatenate %142, %143 in 1 : vector<8x16xf32>, vector<8x240xf32> -> vector<8x256xf32>
    %145 = vector.extract_strided_slice %2 {offsets = [1, 0], sizes = [1, 256], strides = [1, 1]} : vector<9x256xf32> to vector<1x256xf32>
    %146 = vector.broadcast %145 : vector<1x256xf32> to vector<8x256xf32>
    %147 = arith.mulf %144, %146 : vector<8x256xf32>
    %148 = vector.extract_strided_slice %133 {offsets = [0, 241], sizes = [8, 15], strides = [1, 1]} : vector<8x256xf32> to vector<8x15xf32>
    %149 = vector.extract_strided_slice %133 {offsets = [0, 0], sizes = [8, 241], strides = [1, 1]} : vector<8x256xf32> to vector<8x241xf32>
    %150 = tpu.concatenate %148, %149 in 1 : vector<8x15xf32>, vector<8x241xf32> -> vector<8x256xf32>
    %151 = vector.extract_strided_slice %2 {offsets = [2, 0], sizes = [1, 256], strides = [1, 1]} : vector<9x256xf32> to vector<1x256xf32>
    %152 = vector.broadcast %151 : vector<1x256xf32> to vector<8x256xf32>
    %153 = arith.mulf %150, %152 : vector<8x256xf32>
    %154 = vector.extract_strided_slice %133 {offsets = [0, 255], sizes = [8, 1], strides = [1, 1]} : vector<8x256xf32> to vector<8x1xf32>
    %155 = vector.extract_strided_slice %133 {offsets = [0, 0], sizes = [8, 255], strides = [1, 1]} : vector<8x256xf32> to vector<8x255xf32>
    %156 = tpu.concatenate %154, %155 in 1 : vector<8x1xf32>, vector<8x255xf32> -> vector<8x256xf32>
    %157 = vector.extract_strided_slice %2 {offsets = [3, 0], sizes = [1, 256], strides = [1, 1]} : vector<9x256xf32> to vector<1x256xf32>
    %158 = vector.broadcast %157 : vector<1x256xf32> to vector<8x256xf32>
    %159 = arith.mulf %156, %158 : vector<8x256xf32>
    %160 = vector.extract_strided_slice %133 {offsets = [0, 1], sizes = [8, 255], strides = [1, 1]} : vector<8x256xf32> to vector<8x255xf32>
    %161 = vector.extract_strided_slice %133 {offsets = [0, 0], sizes = [8, 1], strides = [1, 1]} : vector<8x256xf32> to vector<8x1xf32>
    %162 = tpu.concatenate %160, %161 in 1 : vector<8x255xf32>, vector<8x1xf32> -> vector<8x256xf32>
    %163 = vector.extract_strided_slice %2 {offsets = [5, 0], sizes = [1, 256], strides = [1, 1]} : vector<9x256xf32> to vector<1x256xf32>
    %164 = vector.broadcast %163 : vector<1x256xf32> to vector<8x256xf32>
    %165 = arith.mulf %162, %164 : vector<8x256xf32>
    %166 = vector.extract_strided_slice %133 {offsets = [0, 15], sizes = [8, 241], strides = [1, 1]} : vector<8x256xf32> to vector<8x241xf32>
    %167 = vector.extract_strided_slice %133 {offsets = [0, 0], sizes = [8, 15], strides = [1, 1]} : vector<8x256xf32> to vector<8x15xf32>
    %168 = tpu.concatenate %166, %167 in 1 : vector<8x241xf32>, vector<8x15xf32> -> vector<8x256xf32>
    %169 = vector.extract_strided_slice %2 {offsets = [6, 0], sizes = [1, 256], strides = [1, 1]} : vector<9x256xf32> to vector<1x256xf32>
    %170 = vector.broadcast %169 : vector<1x256xf32> to vector<8x256xf32>
    %171 = arith.mulf %168, %170 : vector<8x256xf32>
    %172 = vector.extract_strided_slice %133 {offsets = [0, 16], sizes = [8, 240], strides = [1, 1]} : vector<8x256xf32> to vector<8x240xf32>
    %173 = vector.extract_strided_slice %133 {offsets = [0, 0], sizes = [8, 16], strides = [1, 1]} : vector<8x256xf32> to vector<8x16xf32>
    %174 = tpu.concatenate %172, %173 in 1 : vector<8x240xf32>, vector<8x16xf32> -> vector<8x256xf32>
    %175 = vector.extract_strided_slice %2 {offsets = [7, 0], sizes = [1, 256], strides = [1, 1]} : vector<9x256xf32> to vector<1x256xf32>
    %176 = vector.broadcast %175 : vector<1x256xf32> to vector<8x256xf32>
    %177 = arith.mulf %174, %176 : vector<8x256xf32>
    %178 = vector.extract_strided_slice %133 {offsets = [0, 17], sizes = [8, 239], strides = [1, 1]} : vector<8x256xf32> to vector<8x239xf32>
    %179 = vector.extract_strided_slice %133 {offsets = [0, 0], sizes = [8, 17], strides = [1, 1]} : vector<8x256xf32> to vector<8x17xf32>
    %180 = tpu.concatenate %178, %179 in 1 : vector<8x239xf32>, vector<8x17xf32> -> vector<8x256xf32>
    %181 = vector.extract_strided_slice %2 {offsets = [8, 0], sizes = [1, 256], strides = [1, 1]} : vector<9x256xf32> to vector<1x256xf32>
    %182 = vector.broadcast %181 : vector<1x256xf32> to vector<8x256xf32>
    %183 = arith.mulf %180, %182 : vector<8x256xf32>
    %cst_38 = arith.constant 0.000000e+00 : f32
    %184 = vector.broadcast %cst_38 : f32 to vector<8x256xf32>
    %185 = vector.broadcast %135 : vector<8x1xf32> to vector<8x256xf32>
    %186 = arith.addf %184, %185 : vector<8x256xf32>
    %187 = vector.extract_strided_slice %134 {offsets = [0, 0], sizes = [8, 1], strides = [1, 1]} : vector<8x9xf32> to vector<8x1xf32>
    %188 = vector.broadcast %187 : vector<8x1xf32> to vector<8x256xf32>
    %189 = arith.mulf %188, %141 : vector<8x256xf32>
    %190 = arith.addf %186, %189 : vector<8x256xf32>
    %191 = vector.extract_strided_slice %134 {offsets = [0, 1], sizes = [8, 1], strides = [1, 1]} : vector<8x9xf32> to vector<8x1xf32>
    %192 = vector.broadcast %191 : vector<8x1xf32> to vector<8x256xf32>
    %193 = arith.mulf %192, %147 : vector<8x256xf32>
    %194 = arith.addf %190, %193 : vector<8x256xf32>
    %195 = vector.extract_strided_slice %134 {offsets = [0, 2], sizes = [8, 1], strides = [1, 1]} : vector<8x9xf32> to vector<8x1xf32>
    %196 = vector.broadcast %195 : vector<8x1xf32> to vector<8x256xf32>
    %197 = arith.mulf %196, %153 : vector<8x256xf32>
    %198 = arith.addf %194, %197 : vector<8x256xf32>
    %199 = vector.extract_strided_slice %134 {offsets = [0, 3], sizes = [8, 1], strides = [1, 1]} : vector<8x9xf32> to vector<8x1xf32>
    %200 = vector.broadcast %199 : vector<8x1xf32> to vector<8x256xf32>
    %201 = arith.mulf %200, %159 : vector<8x256xf32>
    %202 = arith.addf %198, %201 : vector<8x256xf32>
    %203 = vector.extract_strided_slice %134 {offsets = [0, 4], sizes = [8, 1], strides = [1, 1]} : vector<8x9xf32> to vector<8x1xf32>
    %204 = vector.broadcast %203 : vector<8x1xf32> to vector<8x256xf32>
    %205 = arith.mulf %204, %133 : vector<8x256xf32>
    %206 = arith.addf %202, %205 : vector<8x256xf32>
    %207 = vector.extract_strided_slice %134 {offsets = [0, 5], sizes = [8, 1], strides = [1, 1]} : vector<8x9xf32> to vector<8x1xf32>
    %208 = vector.broadcast %207 : vector<8x1xf32> to vector<8x256xf32>
    %209 = arith.mulf %208, %165 : vector<8x256xf32>
    %210 = arith.addf %206, %209 : vector<8x256xf32>
    %211 = vector.extract_strided_slice %134 {offsets = [0, 6], sizes = [8, 1], strides = [1, 1]} : vector<8x9xf32> to vector<8x1xf32>
    %212 = vector.broadcast %211 : vector<8x1xf32> to vector<8x256xf32>
    %213 = arith.mulf %212, %171 : vector<8x256xf32>
    %214 = arith.addf %210, %213 : vector<8x256xf32>
    %215 = vector.extract_strided_slice %134 {offsets = [0, 7], sizes = [8, 1], strides = [1, 1]} : vector<8x9xf32> to vector<8x1xf32>
    %216 = vector.broadcast %215 : vector<8x1xf32> to vector<8x256xf32>
    %217 = arith.mulf %216, %177 : vector<8x256xf32>
    %218 = arith.addf %214, %217 : vector<8x256xf32>
    %219 = vector.extract_strided_slice %134 {offsets = [0, 8], sizes = [8, 1], strides = [1, 1]} : vector<8x9xf32> to vector<8x1xf32>
    %220 = vector.broadcast %219 : vector<8x1xf32> to vector<8x256xf32>
    %221 = arith.mulf %220, %183 : vector<8x256xf32>
    %222 = arith.addf %218, %221 : vector<8x256xf32>
    %c0_39 = arith.constant 0 : index
    %c0_40 = arith.constant 0 : index
    %223 = vector.load %arg15[%c0_39, %c0_40] : memref<8x9xf32, #tpu.memory_space<vmem>>, vector<8x9xf32>
    %c0_41 = arith.constant 0 : index
    %c0_42 = arith.constant 0 : index
    %224 = vector.load %arg16[%c0_41, %c0_42] : memref<8x1xf32, #tpu.memory_space<vmem>>, vector<8x1xf32>
    %225 = vector.extract_strided_slice %26 {offsets = [0, 239], sizes = [8, 17], strides = [1, 1]} : vector<8x256xf32> to vector<8x17xf32>
    %226 = vector.extract_strided_slice %26 {offsets = [0, 0], sizes = [8, 239], strides = [1, 1]} : vector<8x256xf32> to vector<8x239xf32>
    %227 = tpu.concatenate %225, %226 in 1 : vector<8x17xf32>, vector<8x239xf32> -> vector<8x256xf32>
    %228 = vector.extract_strided_slice %2 {offsets = [0, 0], sizes = [1, 256], strides = [1, 1]} : vector<9x256xf32> to vector<1x256xf32>
    %229 = vector.broadcast %228 : vector<1x256xf32> to vector<8x256xf32>
    %230 = arith.mulf %227, %229 : vector<8x256xf32>
    %231 = vector.extract_strided_slice %26 {offsets = [0, 240], sizes = [8, 16], strides = [1, 1]} : vector<8x256xf32> to vector<8x16xf32>
    %232 = vector.extract_strided_slice %26 {offsets = [0, 0], sizes = [8, 240], strides = [1, 1]} : vector<8x256xf32> to vector<8x240xf32>
    %233 = tpu.concatenate %231, %232 in 1 : vector<8x16xf32>, vector<8x240xf32> -> vector<8x256xf32>
    %234 = vector.extract_strided_slice %2 {offsets = [1, 0], sizes = [1, 256], strides = [1, 1]} : vector<9x256xf32> to vector<1x256xf32>
    %235 = vector.broadcast %234 : vector<1x256xf32> to vector<8x256xf32>
    %236 = arith.mulf %233, %235 : vector<8x256xf32>
    %237 = vector.extract_strided_slice %26 {offsets = [0, 241], sizes = [8, 15], strides = [1, 1]} : vector<8x256xf32> to vector<8x15xf32>
    %238 = vector.extract_strided_slice %26 {offsets = [0, 0], sizes = [8, 241], strides = [1, 1]} : vector<8x256xf32> to vector<8x241xf32>
    %239 = tpu.concatenate %237, %238 in 1 : vector<8x15xf32>, vector<8x241xf32> -> vector<8x256xf32>
    %240 = vector.extract_strided_slice %2 {offsets = [2, 0], sizes = [1, 256], strides = [1, 1]} : vector<9x256xf32> to vector<1x256xf32>
    %241 = vector.broadcast %240 : vector<1x256xf32> to vector<8x256xf32>
    %242 = arith.mulf %239, %241 : vector<8x256xf32>
    %243 = vector.extract_strided_slice %26 {offsets = [0, 255], sizes = [8, 1], strides = [1, 1]} : vector<8x256xf32> to vector<8x1xf32>
    %244 = vector.extract_strided_slice %26 {offsets = [0, 0], sizes = [8, 255], strides = [1, 1]} : vector<8x256xf32> to vector<8x255xf32>
    %245 = tpu.concatenate %243, %244 in 1 : vector<8x1xf32>, vector<8x255xf32> -> vector<8x256xf32>
    %246 = vector.extract_strided_slice %2 {offsets = [3, 0], sizes = [1, 256], strides = [1, 1]} : vector<9x256xf32> to vector<1x256xf32>
    %247 = vector.broadcast %246 : vector<1x256xf32> to vector<8x256xf32>
    %248 = arith.mulf %245, %247 : vector<8x256xf32>
    %249 = vector.extract_strided_slice %26 {offsets = [0, 1], sizes = [8, 255], strides = [1, 1]} : vector<8x256xf32> to vector<8x255xf32>
    %250 = vector.extract_strided_slice %26 {offsets = [0, 0], sizes = [8, 1], strides = [1, 1]} : vector<8x256xf32> to vector<8x1xf32>
    %251 = tpu.concatenate %249, %250 in 1 : vector<8x255xf32>, vector<8x1xf32> -> vector<8x256xf32>
    %252 = vector.extract_strided_slice %2 {offsets = [5, 0], sizes = [1, 256], strides = [1, 1]} : vector<9x256xf32> to vector<1x256xf32>
    %253 = vector.broadcast %252 : vector<1x256xf32> to vector<8x256xf32>
    %254 = arith.mulf %251, %253 : vector<8x256xf32>
    %255 = vector.extract_strided_slice %26 {offsets = [0, 15], sizes = [8, 241], strides = [1, 1]} : vector<8x256xf32> to vector<8x241xf32>
    %256 = vector.extract_strided_slice %26 {offsets = [0, 0], sizes = [8, 15], strides = [1, 1]} : vector<8x256xf32> to vector<8x15xf32>
    %257 = tpu.concatenate %255, %256 in 1 : vector<8x241xf32>, vector<8x15xf32> -> vector<8x256xf32>
    %258 = vector.extract_strided_slice %2 {offsets = [6, 0], sizes = [1, 256], strides = [1, 1]} : vector<9x256xf32> to vector<1x256xf32>
    %259 = vector.broadcast %258 : vector<1x256xf32> to vector<8x256xf32>
    %260 = arith.mulf %257, %259 : vector<8x256xf32>
    %261 = vector.extract_strided_slice %26 {offsets = [0, 16], sizes = [8, 240], strides = [1, 1]} : vector<8x256xf32> to vector<8x240xf32>
    %262 = vector.extract_strided_slice %26 {offsets = [0, 0], sizes = [8, 16], strides = [1, 1]} : vector<8x256xf32> to vector<8x16xf32>
    %263 = tpu.concatenate %261, %262 in 1 : vector<8x240xf32>, vector<8x16xf32> -> vector<8x256xf32>
    %264 = vector.extract_strided_slice %2 {offsets = [7, 0], sizes = [1, 256], strides = [1, 1]} : vector<9x256xf32> to vector<1x256xf32>
    %265 = vector.broadcast %264 : vector<1x256xf32> to vector<8x256xf32>
    %266 = arith.mulf %263, %265 : vector<8x256xf32>
    %267 = vector.extract_strided_slice %26 {offsets = [0, 17], sizes = [8, 239], strides = [1, 1]} : vector<8x256xf32> to vector<8x239xf32>
    %268 = vector.extract_strided_slice %26 {offsets = [0, 0], sizes = [8, 17], strides = [1, 1]} : vector<8x256xf32> to vector<8x17xf32>
    %269 = tpu.concatenate %267, %268 in 1 : vector<8x239xf32>, vector<8x17xf32> -> vector<8x256xf32>
    %270 = vector.extract_strided_slice %2 {offsets = [8, 0], sizes = [1, 256], strides = [1, 1]} : vector<9x256xf32> to vector<1x256xf32>
    %271 = vector.broadcast %270 : vector<1x256xf32> to vector<8x256xf32>
    %272 = arith.mulf %269, %271 : vector<8x256xf32>
    %cst_43 = arith.constant 0.000000e+00 : f32
    %273 = vector.broadcast %cst_43 : f32 to vector<8x256xf32>
    %274 = vector.broadcast %224 : vector<8x1xf32> to vector<8x256xf32>
    %275 = arith.addf %273, %274 : vector<8x256xf32>
    %276 = vector.extract_strided_slice %223 {offsets = [0, 0], sizes = [8, 1], strides = [1, 1]} : vector<8x9xf32> to vector<8x1xf32>
    %277 = vector.broadcast %276 : vector<8x1xf32> to vector<8x256xf32>
    %278 = arith.mulf %277, %230 : vector<8x256xf32>
    %279 = arith.addf %275, %278 : vector<8x256xf32>
    %280 = vector.extract_strided_slice %223 {offsets = [0, 1], sizes = [8, 1], strides = [1, 1]} : vector<8x9xf32> to vector<8x1xf32>
    %281 = vector.broadcast %280 : vector<8x1xf32> to vector<8x256xf32>
    %282 = arith.mulf %281, %236 : vector<8x256xf32>
    %283 = arith.addf %279, %282 : vector<8x256xf32>
    %284 = vector.extract_strided_slice %223 {offsets = [0, 2], sizes = [8, 1], strides = [1, 1]} : vector<8x9xf32> to vector<8x1xf32>
    %285 = vector.broadcast %284 : vector<8x1xf32> to vector<8x256xf32>
    %286 = arith.mulf %285, %242 : vector<8x256xf32>
    %287 = arith.addf %283, %286 : vector<8x256xf32>
    %288 = vector.extract_strided_slice %223 {offsets = [0, 3], sizes = [8, 1], strides = [1, 1]} : vector<8x9xf32> to vector<8x1xf32>
    %289 = vector.broadcast %288 : vector<8x1xf32> to vector<8x256xf32>
    %290 = arith.mulf %289, %248 : vector<8x256xf32>
    %291 = arith.addf %287, %290 : vector<8x256xf32>
    %292 = vector.extract_strided_slice %223 {offsets = [0, 4], sizes = [8, 1], strides = [1, 1]} : vector<8x9xf32> to vector<8x1xf32>
    %293 = vector.broadcast %292 : vector<8x1xf32> to vector<8x256xf32>
    %294 = arith.mulf %293, %26 : vector<8x256xf32>
    %295 = arith.addf %291, %294 : vector<8x256xf32>
    %296 = vector.extract_strided_slice %223 {offsets = [0, 5], sizes = [8, 1], strides = [1, 1]} : vector<8x9xf32> to vector<8x1xf32>
    %297 = vector.broadcast %296 : vector<8x1xf32> to vector<8x256xf32>
    %298 = arith.mulf %297, %254 : vector<8x256xf32>
    %299 = arith.addf %295, %298 : vector<8x256xf32>
    %300 = vector.extract_strided_slice %223 {offsets = [0, 6], sizes = [8, 1], strides = [1, 1]} : vector<8x9xf32> to vector<8x1xf32>
    %301 = vector.broadcast %300 : vector<8x1xf32> to vector<8x256xf32>
    %302 = arith.mulf %301, %260 : vector<8x256xf32>
    %303 = arith.addf %299, %302 : vector<8x256xf32>
    %304 = vector.extract_strided_slice %223 {offsets = [0, 7], sizes = [8, 1], strides = [1, 1]} : vector<8x9xf32> to vector<8x1xf32>
    %305 = vector.broadcast %304 : vector<8x1xf32> to vector<8x256xf32>
    %306 = arith.mulf %305, %266 : vector<8x256xf32>
    %307 = arith.addf %303, %306 : vector<8x256xf32>
    %308 = vector.extract_strided_slice %223 {offsets = [0, 8], sizes = [8, 1], strides = [1, 1]} : vector<8x9xf32> to vector<8x1xf32>
    %309 = vector.broadcast %308 : vector<8x1xf32> to vector<8x256xf32>
    %310 = arith.mulf %309, %272 : vector<8x256xf32>
    %311 = arith.addf %307, %310 : vector<8x256xf32>
    %312 = vector.extract_strided_slice %311 {offsets = [0, 0], sizes = [4, 256], strides = [1, 1]} : vector<8x256xf32> to vector<4x256xf32>
    %313 = vector.extract_strided_slice %311 {offsets = [4, 0], sizes = [4, 256], strides = [1, 1]} : vector<8x256xf32> to vector<4x256xf32>
    %314 = arith.mulf %312, %313 : vector<4x256xf32>
    %c0_44 = arith.constant 0 : index
    %c0_45 = arith.constant 0 : index
    %315 = vector.load %arg17[%c0_44, %c0_45] : memref<6x4xf32, #tpu.memory_space<vmem>>, vector<6x4xf32>
    %cst_46 = arith.constant dense<0.000000e+00> : vector<6x256xf32>
    %316 = tpu.matmul %315, %314, %cst_46 {dimension_numbers = #tpu.dot_dimension_numbers<[1], [0], [0], [1], [0, 0, 1, 1], [], []>} : vector<6x4xf32>, vector<4x256xf32>, vector<6x256xf32> -> vector<6x256xf32>
    %c0_47 = arith.constant 0 : index
    %c0_48 = arith.constant 0 : index
    %317 = vector.load %arg18[%c0_47, %c0_48] : memref<6x1xf32, #tpu.memory_space<vmem>>, vector<6x1xf32>
    %318 = vector.broadcast %317 : vector<6x1xf32> to vector<6x256xf32>
    %319 = arith.addf %316, %318 : vector<6x256xf32>
    %c0_49 = arith.constant 0 : index
    %c0_50 = arith.constant 0 : index
    %320 = vector.load %arg19[%c0_49, %c0_50] : memref<6x8xf32, #tpu.memory_space<vmem>>, vector<6x8xf32>
    %cst_51 = arith.constant dense<0.000000e+00> : vector<6x256xf32>
    %321 = tpu.matmul %320, %26, %cst_51 {dimension_numbers = #tpu.dot_dimension_numbers<[1], [0], [0], [1], [0, 0, 1, 1], [], []>} : vector<6x8xf32>, vector<8x256xf32>, vector<6x256xf32> -> vector<6x256xf32>
    %c0_52 = arith.constant 0 : index
    %c0_53 = arith.constant 0 : index
    %322 = vector.load %arg20[%c0_52, %c0_53] : memref<6x1xf32, #tpu.memory_space<vmem>>, vector<6x1xf32>
    %323 = vector.broadcast %322 : vector<6x1xf32> to vector<6x256xf32>
    %324 = arith.addf %321, %323 : vector<6x256xf32>
    %c0_54 = arith.constant 0 : index
    %c0_55 = arith.constant 0 : index
    %325 = vector.load %arg21[%c0_54, %c0_55] : memref<6x1xf32, #tpu.memory_space<vmem>>, vector<6x1xf32>
    %326 = vector.broadcast %325 : vector<6x1xf32> to vector<6x256xf32>
    %327 = arith.mulf %319, %326 : vector<6x256xf32>
    %328 = arith.addf %327, %324 : vector<6x256xf32>
    %329 = vector.extract_strided_slice %222 {offsets = [0, 239], sizes = [8, 17], strides = [1, 1]} : vector<8x256xf32> to vector<8x17xf32>
    %330 = vector.extract_strided_slice %222 {offsets = [0, 0], sizes = [8, 239], strides = [1, 1]} : vector<8x256xf32> to vector<8x239xf32>
    %331 = tpu.concatenate %329, %330 in 1 : vector<8x17xf32>, vector<8x239xf32> -> vector<8x256xf32>
    %332 = vector.extract_strided_slice %2 {offsets = [0, 0], sizes = [1, 256], strides = [1, 1]} : vector<9x256xf32> to vector<1x256xf32>
    %333 = vector.broadcast %332 : vector<1x256xf32> to vector<8x256xf32>
    %334 = arith.mulf %331, %333 : vector<8x256xf32>
    %335 = vector.extract_strided_slice %222 {offsets = [0, 240], sizes = [8, 16], strides = [1, 1]} : vector<8x256xf32> to vector<8x16xf32>
    %336 = vector.extract_strided_slice %222 {offsets = [0, 0], sizes = [8, 240], strides = [1, 1]} : vector<8x256xf32> to vector<8x240xf32>
    %337 = tpu.concatenate %335, %336 in 1 : vector<8x16xf32>, vector<8x240xf32> -> vector<8x256xf32>
    %338 = vector.extract_strided_slice %2 {offsets = [1, 0], sizes = [1, 256], strides = [1, 1]} : vector<9x256xf32> to vector<1x256xf32>
    %339 = vector.broadcast %338 : vector<1x256xf32> to vector<8x256xf32>
    %340 = arith.mulf %337, %339 : vector<8x256xf32>
    %341 = vector.extract_strided_slice %222 {offsets = [0, 241], sizes = [8, 15], strides = [1, 1]} : vector<8x256xf32> to vector<8x15xf32>
    %342 = vector.extract_strided_slice %222 {offsets = [0, 0], sizes = [8, 241], strides = [1, 1]} : vector<8x256xf32> to vector<8x241xf32>
    %343 = tpu.concatenate %341, %342 in 1 : vector<8x15xf32>, vector<8x241xf32> -> vector<8x256xf32>
    %344 = vector.extract_strided_slice %2 {offsets = [2, 0], sizes = [1, 256], strides = [1, 1]} : vector<9x256xf32> to vector<1x256xf32>
    %345 = vector.broadcast %344 : vector<1x256xf32> to vector<8x256xf32>
    %346 = arith.mulf %343, %345 : vector<8x256xf32>
    %347 = vector.extract_strided_slice %222 {offsets = [0, 255], sizes = [8, 1], strides = [1, 1]} : vector<8x256xf32> to vector<8x1xf32>
    %348 = vector.extract_strided_slice %222 {offsets = [0, 0], sizes = [8, 255], strides = [1, 1]} : vector<8x256xf32> to vector<8x255xf32>
    %349 = tpu.concatenate %347, %348 in 1 : vector<8x1xf32>, vector<8x255xf32> -> vector<8x256xf32>
    %350 = vector.extract_strided_slice %2 {offsets = [3, 0], sizes = [1, 256], strides = [1, 1]} : vector<9x256xf32> to vector<1x256xf32>
    %351 = vector.broadcast %350 : vector<1x256xf32> to vector<8x256xf32>
    %352 = arith.mulf %349, %351 : vector<8x256xf32>
    %353 = vector.extract_strided_slice %222 {offsets = [0, 1], sizes = [8, 255], strides = [1, 1]} : vector<8x256xf32> to vector<8x255xf32>
    %354 = vector.extract_strided_slice %222 {offsets = [0, 0], sizes = [8, 1], strides = [1, 1]} : vector<8x256xf32> to vector<8x1xf32>
    %355 = tpu.concatenate %353, %354 in 1 : vector<8x255xf32>, vector<8x1xf32> -> vector<8x256xf32>
    %356 = vector.extract_strided_slice %2 {offsets = [5, 0], sizes = [1, 256], strides = [1, 1]} : vector<9x256xf32> to vector<1x256xf32>
    %357 = vector.broadcast %356 : vector<1x256xf32> to vector<8x256xf32>
    %358 = arith.mulf %355, %357 : vector<8x256xf32>
    %359 = vector.extract_strided_slice %222 {offsets = [0, 15], sizes = [8, 241], strides = [1, 1]} : vector<8x256xf32> to vector<8x241xf32>
    %360 = vector.extract_strided_slice %222 {offsets = [0, 0], sizes = [8, 15], strides = [1, 1]} : vector<8x256xf32> to vector<8x15xf32>
    %361 = tpu.concatenate %359, %360 in 1 : vector<8x241xf32>, vector<8x15xf32> -> vector<8x256xf32>
    %362 = vector.extract_strided_slice %2 {offsets = [6, 0], sizes = [1, 256], strides = [1, 1]} : vector<9x256xf32> to vector<1x256xf32>
    %363 = vector.broadcast %362 : vector<1x256xf32> to vector<8x256xf32>
    %364 = arith.mulf %361, %363 : vector<8x256xf32>
    %365 = vector.extract_strided_slice %222 {offsets = [0, 16], sizes = [8, 240], strides = [1, 1]} : vector<8x256xf32> to vector<8x240xf32>
    %366 = vector.extract_strided_slice %222 {offsets = [0, 0], sizes = [8, 16], strides = [1, 1]} : vector<8x256xf32> to vector<8x16xf32>
    %367 = tpu.concatenate %365, %366 in 1 : vector<8x240xf32>, vector<8x16xf32> -> vector<8x256xf32>
    %368 = vector.extract_strided_slice %2 {offsets = [7, 0], sizes = [1, 256], strides = [1, 1]} : vector<9x256xf32> to vector<1x256xf32>
    %369 = vector.broadcast %368 : vector<1x256xf32> to vector<8x256xf32>
    %370 = arith.mulf %367, %369 : vector<8x256xf32>
    %371 = vector.extract_strided_slice %222 {offsets = [0, 17], sizes = [8, 239], strides = [1, 1]} : vector<8x256xf32> to vector<8x239xf32>
    %372 = vector.extract_strided_slice %222 {offsets = [0, 0], sizes = [8, 17], strides = [1, 1]} : vector<8x256xf32> to vector<8x17xf32>
    %373 = tpu.concatenate %371, %372 in 1 : vector<8x239xf32>, vector<8x17xf32> -> vector<8x256xf32>
    %374 = vector.extract_strided_slice %2 {offsets = [8, 0], sizes = [1, 256], strides = [1, 1]} : vector<9x256xf32> to vector<1x256xf32>
    %375 = vector.broadcast %374 : vector<1x256xf32> to vector<8x256xf32>
    %376 = arith.mulf %373, %375 : vector<8x256xf32>
    %c0_56 = arith.constant 0 : index
    %c0_57 = arith.constant 0 : index
    %377 = vector.load %arg23[%c0_56, %c0_57] : memref<8x6xf32, #tpu.memory_space<vmem>>, vector<8x6xf32>
    %cst_58 = arith.constant dense<0.000000e+00> : vector<8x256xf32>
    %378 = tpu.matmul %377, %328, %cst_58 {dimension_numbers = #tpu.dot_dimension_numbers<[1], [0], [0], [1], [0, 0, 1, 1], [], []>} : vector<8x6xf32>, vector<6x256xf32>, vector<8x256xf32> -> vector<8x256xf32>
    %c0_59 = arith.constant 0 : index
    %c0_60 = arith.constant 0 : index
    %c0_61 = arith.constant 0 : index
    %379 = vector.load %arg22[%c0_59, %c0_60, %c0_61] : memref<2x24x36xf32, #tpu.memory_space<vmem>>, vector<2x24x36xf32>
    %380 = vector.extract_strided_slice %334 {offsets = [0, 0], sizes = [4, 256], strides = [1, 1]} : vector<8x256xf32> to vector<4x256xf32>
    %381 = vector.extract_strided_slice %340 {offsets = [0, 0], sizes = [4, 256], strides = [1, 1]} : vector<8x256xf32> to vector<4x256xf32>
    %382 = vector.extract_strided_slice %346 {offsets = [0, 0], sizes = [4, 256], strides = [1, 1]} : vector<8x256xf32> to vector<4x256xf32>
    %383 = vector.extract_strided_slice %352 {offsets = [0, 0], sizes = [4, 256], strides = [1, 1]} : vector<8x256xf32> to vector<4x256xf32>
    %384 = vector.extract_strided_slice %222 {offsets = [0, 0], sizes = [4, 256], strides = [1, 1]} : vector<8x256xf32> to vector<4x256xf32>
    %385 = vector.extract_strided_slice %358 {offsets = [0, 0], sizes = [4, 256], strides = [1, 1]} : vector<8x256xf32> to vector<4x256xf32>
    %386 = vector.extract_strided_slice %364 {offsets = [0, 0], sizes = [4, 256], strides = [1, 1]} : vector<8x256xf32> to vector<4x256xf32>
    %387 = vector.extract_strided_slice %370 {offsets = [0, 0], sizes = [4, 256], strides = [1, 1]} : vector<8x256xf32> to vector<4x256xf32>
    %388 = vector.extract_strided_slice %376 {offsets = [0, 0], sizes = [4, 256], strides = [1, 1]} : vector<8x256xf32> to vector<4x256xf32>
    %389 = tpu.concatenate %380, %381, %382, %383, %384, %385, %386, %387, %388 in 0 : vector<4x256xf32>, vector<4x256xf32>, vector<4x256xf32>, vector<4x256xf32>, vector<4x256xf32>, vector<4x256xf32>, vector<4x256xf32>, vector<4x256xf32>, vector<4x256xf32> -> vector<36x256xf32>
    %390 = vector.extract_strided_slice %379 {offsets = [0, 0, 0], sizes = [1, 24, 36], strides = [1, 1, 1]} : vector<2x24x36xf32> to vector<1x24x36xf32>
    %391 = vector.shape_cast %390 : vector<1x24x36xf32> to vector<24x36xf32>
    %cst_62 = arith.constant dense<0.000000e+00> : vector<24x256xf32>
    %392 = tpu.matmul %391, %389, %cst_62 {dimension_numbers = #tpu.dot_dimension_numbers<[1], [0], [0], [1], [0, 0, 1, 1], [], []>} : vector<24x36xf32>, vector<36x256xf32>, vector<24x256xf32> -> vector<24x256xf32>
    %393 = vector.extract_strided_slice %328 {offsets = [0, 0], sizes = [1, 256], strides = [1, 1]} : vector<6x256xf32> to vector<1x256xf32>
    %394 = vector.extract_strided_slice %392 {offsets = [0, 0], sizes = [4, 256], strides = [1, 1]} : vector<24x256xf32> to vector<4x256xf32>
    %395 = vector.broadcast %393 : vector<1x256xf32> to vector<4x256xf32>
    %396 = arith.mulf %395, %394 : vector<4x256xf32>
    %397 = vector.extract_strided_slice %328 {offsets = [1, 0], sizes = [1, 256], strides = [1, 1]} : vector<6x256xf32> to vector<1x256xf32>
    %398 = vector.extract_strided_slice %392 {offsets = [4, 0], sizes = [4, 256], strides = [1, 1]} : vector<24x256xf32> to vector<4x256xf32>
    %399 = vector.broadcast %397 : vector<1x256xf32> to vector<4x256xf32>
    %400 = arith.mulf %399, %398 : vector<4x256xf32>
    %401 = arith.addf %396, %400 : vector<4x256xf32>
    %402 = vector.extract_strided_slice %328 {offsets = [2, 0], sizes = [1, 256], strides = [1, 1]} : vector<6x256xf32> to vector<1x256xf32>
    %403 = vector.extract_strided_slice %392 {offsets = [8, 0], sizes = [4, 256], strides = [1, 1]} : vector<24x256xf32> to vector<4x256xf32>
    %404 = vector.broadcast %402 : vector<1x256xf32> to vector<4x256xf32>
    %405 = arith.mulf %404, %403 : vector<4x256xf32>
    %406 = arith.addf %401, %405 : vector<4x256xf32>
    %407 = vector.extract_strided_slice %328 {offsets = [3, 0], sizes = [1, 256], strides = [1, 1]} : vector<6x256xf32> to vector<1x256xf32>
    %408 = vector.extract_strided_slice %392 {offsets = [12, 0], sizes = [4, 256], strides = [1, 1]} : vector<24x256xf32> to vector<4x256xf32>
    %409 = vector.broadcast %407 : vector<1x256xf32> to vector<4x256xf32>
    %410 = arith.mulf %409, %408 : vector<4x256xf32>
    %411 = arith.addf %406, %410 : vector<4x256xf32>
    %412 = vector.extract_strided_slice %328 {offsets = [4, 0], sizes = [1, 256], strides = [1, 1]} : vector<6x256xf32> to vector<1x256xf32>
    %413 = vector.extract_strided_slice %392 {offsets = [16, 0], sizes = [4, 256], strides = [1, 1]} : vector<24x256xf32> to vector<4x256xf32>
    %414 = vector.broadcast %412 : vector<1x256xf32> to vector<4x256xf32>
    %415 = arith.mulf %414, %413 : vector<4x256xf32>
    %416 = arith.addf %411, %415 : vector<4x256xf32>
    %417 = vector.extract_strided_slice %328 {offsets = [5, 0], sizes = [1, 256], strides = [1, 1]} : vector<6x256xf32> to vector<1x256xf32>
    %418 = vector.extract_strided_slice %392 {offsets = [20, 0], sizes = [4, 256], strides = [1, 1]} : vector<24x256xf32> to vector<4x256xf32>
    %419 = vector.broadcast %417 : vector<1x256xf32> to vector<4x256xf32>
    %420 = arith.mulf %419, %418 : vector<4x256xf32>
    %421 = arith.addf %416, %420 : vector<4x256xf32>
    %422 = vector.extract_strided_slice %334 {offsets = [4, 0], sizes = [4, 256], strides = [1, 1]} : vector<8x256xf32> to vector<4x256xf32>
    %423 = vector.extract_strided_slice %340 {offsets = [4, 0], sizes = [4, 256], strides = [1, 1]} : vector<8x256xf32> to vector<4x256xf32>
    %424 = vector.extract_strided_slice %346 {offsets = [4, 0], sizes = [4, 256], strides = [1, 1]} : vector<8x256xf32> to vector<4x256xf32>
    %425 = vector.extract_strided_slice %352 {offsets = [4, 0], sizes = [4, 256], strides = [1, 1]} : vector<8x256xf32> to vector<4x256xf32>
    %426 = vector.extract_strided_slice %222 {offsets = [4, 0], sizes = [4, 256], strides = [1, 1]} : vector<8x256xf32> to vector<4x256xf32>
    %427 = vector.extract_strided_slice %358 {offsets = [4, 0], sizes = [4, 256], strides = [1, 1]} : vector<8x256xf32> to vector<4x256xf32>
    %428 = vector.extract_strided_slice %364 {offsets = [4, 0], sizes = [4, 256], strides = [1, 1]} : vector<8x256xf32> to vector<4x256xf32>
    %429 = vector.extract_strided_slice %370 {offsets = [4, 0], sizes = [4, 256], strides = [1, 1]} : vector<8x256xf32> to vector<4x256xf32>
    %430 = vector.extract_strided_slice %376 {offsets = [4, 0], sizes = [4, 256], strides = [1, 1]} : vector<8x256xf32> to vector<4x256xf32>
    %431 = tpu.concatenate %422, %423, %424, %425, %426, %427, %428, %429, %430 in 0 : vector<4x256xf32>, vector<4x256xf32>, vector<4x256xf32>, vector<4x256xf32>, vector<4x256xf32>, vector<4x256xf32>, vector<4x256xf32>, vector<4x256xf32>, vector<4x256xf32> -> vector<36x256xf32>
    %432 = vector.extract_strided_slice %379 {offsets = [1, 0, 0], sizes = [1, 24, 36], strides = [1, 1, 1]} : vector<2x24x36xf32> to vector<1x24x36xf32>
    %433 = vector.shape_cast %432 : vector<1x24x36xf32> to vector<24x36xf32>
    %cst_63 = arith.constant dense<0.000000e+00> : vector<24x256xf32>
    %434 = tpu.matmul %433, %431, %cst_63 {dimension_numbers = #tpu.dot_dimension_numbers<[1], [0], [0], [1], [0, 0, 1, 1], [], []>} : vector<24x36xf32>, vector<36x256xf32>, vector<24x256xf32> -> vector<24x256xf32>
    %435 = vector.extract_strided_slice %328 {offsets = [0, 0], sizes = [1, 256], strides = [1, 1]} : vector<6x256xf32> to vector<1x256xf32>
    %436 = vector.extract_strided_slice %434 {offsets = [0, 0], sizes = [4, 256], strides = [1, 1]} : vector<24x256xf32> to vector<4x256xf32>
    %437 = vector.broadcast %435 : vector<1x256xf32> to vector<4x256xf32>
    %438 = arith.mulf %437, %436 : vector<4x256xf32>
    %439 = vector.extract_strided_slice %328 {offsets = [1, 0], sizes = [1, 256], strides = [1, 1]} : vector<6x256xf32> to vector<1x256xf32>
    %440 = vector.extract_strided_slice %434 {offsets = [4, 0], sizes = [4, 256], strides = [1, 1]} : vector<24x256xf32> to vector<4x256xf32>
    %441 = vector.broadcast %439 : vector<1x256xf32> to vector<4x256xf32>
    %442 = arith.mulf %441, %440 : vector<4x256xf32>
    %443 = arith.addf %438, %442 : vector<4x256xf32>
    %444 = vector.extract_strided_slice %328 {offsets = [2, 0], sizes = [1, 256], strides = [1, 1]} : vector<6x256xf32> to vector<1x256xf32>
    %445 = vector.extract_strided_slice %434 {offsets = [8, 0], sizes = [4, 256], strides = [1, 1]} : vector<24x256xf32> to vector<4x256xf32>
    %446 = vector.broadcast %444 : vector<1x256xf32> to vector<4x256xf32>
    %447 = arith.mulf %446, %445 : vector<4x256xf32>
    %448 = arith.addf %443, %447 : vector<4x256xf32>
    %449 = vector.extract_strided_slice %328 {offsets = [3, 0], sizes = [1, 256], strides = [1, 1]} : vector<6x256xf32> to vector<1x256xf32>
    %450 = vector.extract_strided_slice %434 {offsets = [12, 0], sizes = [4, 256], strides = [1, 1]} : vector<24x256xf32> to vector<4x256xf32>
    %451 = vector.broadcast %449 : vector<1x256xf32> to vector<4x256xf32>
    %452 = arith.mulf %451, %450 : vector<4x256xf32>
    %453 = arith.addf %448, %452 : vector<4x256xf32>
    %454 = vector.extract_strided_slice %328 {offsets = [4, 0], sizes = [1, 256], strides = [1, 1]} : vector<6x256xf32> to vector<1x256xf32>
    %455 = vector.extract_strided_slice %434 {offsets = [16, 0], sizes = [4, 256], strides = [1, 1]} : vector<24x256xf32> to vector<4x256xf32>
    %456 = vector.broadcast %454 : vector<1x256xf32> to vector<4x256xf32>
    %457 = arith.mulf %456, %455 : vector<4x256xf32>
    %458 = arith.addf %453, %457 : vector<4x256xf32>
    %459 = vector.extract_strided_slice %328 {offsets = [5, 0], sizes = [1, 256], strides = [1, 1]} : vector<6x256xf32> to vector<1x256xf32>
    %460 = vector.extract_strided_slice %434 {offsets = [20, 0], sizes = [4, 256], strides = [1, 1]} : vector<24x256xf32> to vector<4x256xf32>
    %461 = vector.broadcast %459 : vector<1x256xf32> to vector<4x256xf32>
    %462 = arith.mulf %461, %460 : vector<4x256xf32>
    %463 = arith.addf %458, %462 : vector<4x256xf32>
    %464 = tpu.concatenate %421, %463 in 0 : vector<4x256xf32>, vector<4x256xf32> -> vector<8x256xf32>
    %465 = arith.addf %378, %464 : vector<8x256xf32>
    %c0_64 = arith.constant 0 : index
    %c0_65 = arith.constant 0 : index
    %466 = vector.load %arg24[%c0_64, %c0_65] : memref<8x1xf32, #tpu.memory_space<vmem>>, vector<8x1xf32>
    %467 = vector.broadcast %466 : vector<8x1xf32> to vector<8x256xf32>
    %468 = arith.mulf %465, %467 : vector<8x256xf32>
    %469 = arith.addf %468, %222 : vector<8x256xf32>
    %470 = arith.mulf %469, %128 : vector<8x256xf32>
    %471 = vector.broadcast %34 : vector<8x1xf32> to vector<8x256xf32>
    %472 = arith.mulf %470, %471 : vector<8x256xf32>
    %c0_66 = arith.constant 0 : index
    %c0_67 = arith.constant 0 : index
    %473 = vector.load %arg25[%c0_66, %c0_67] : memref<8x8xf32, #tpu.memory_space<vmem>>, vector<8x8xf32>
    %cst_68 = arith.constant dense<0.000000e+00> : vector<8x256xf32>
    %474 = tpu.matmul %473, %472, %cst_68 {dimension_numbers = #tpu.dot_dimension_numbers<[1], [0], [0], [1], [0, 0, 1, 1], [], []>} : vector<8x8xf32>, vector<8x256xf32>, vector<8x256xf32> -> vector<8x256xf32>
    %c0_69 = arith.constant 0 : index
    %c0_70 = arith.constant 0 : index
    %475 = vector.load %arg26[%c0_69, %c0_70] : memref<8x1xf32, #tpu.memory_space<vmem>>, vector<8x1xf32>
    %476 = vector.broadcast %475 : vector<8x1xf32> to vector<8x256xf32>
    %477 = arith.addf %474, %476 : vector<8x256xf32>
    %c0_71 = arith.constant 0 : index
    %c0_72 = arith.constant 0 : index
    %478 = vector.load %arg27[%c0_71, %c0_72] : memref<8x1xf32, #tpu.memory_space<vmem>>, vector<8x1xf32>
    %479 = vector.broadcast %478 : vector<8x1xf32> to vector<8x256xf32>
    %480 = arith.mulf %477, %479 : vector<8x256xf32>
    %481 = arith.addf %1, %480 : vector<8x256xf32>
    %cst_73 = arith.constant dense<0.000000e+00> : vector<256xf32>
    %482 = vector.multi_reduction <add>, %481, %cst_73 [0] : vector<8x256xf32> to vector<256xf32>
    %483 = vector.shape_cast %482 : vector<256xf32> to vector<1x256xf32>
    %cst_74 = arith.constant 8.000000e+00 : f32
    %484 = vector.broadcast %cst_74 : f32 to vector<1x256xf32>
    %485 = arith.divf %483, %484 : vector<1x256xf32>
    %486 = vector.broadcast %485 : vector<1x256xf32> to vector<8x256xf32>
    %487 = arith.subf %481, %486 : vector<8x256xf32>
    %488 = arith.mulf %487, %487 : vector<8x256xf32>
    %cst_75 = arith.constant dense<0.000000e+00> : vector<256xf32>
    %489 = vector.multi_reduction <add>, %488, %cst_75 [0] : vector<8x256xf32> to vector<256xf32>
    %490 = vector.shape_cast %489 : vector<256xf32> to vector<1x256xf32>
    %cst_76 = arith.constant 8.000000e+00 : f32
    %491 = vector.broadcast %cst_76 : f32 to vector<1x256xf32>
    %492 = arith.divf %490, %491 : vector<1x256xf32>
    %493 = vector.broadcast %485 : vector<1x256xf32> to vector<8x256xf32>
    %494 = arith.subf %481, %493 : vector<8x256xf32>
    %cst_77 = arith.constant 9.99999997E-7 : f32
    %495 = vector.broadcast %cst_77 : f32 to vector<1x256xf32>
    %496 = arith.addf %492, %495 : vector<1x256xf32>
    %497 = math.rsqrt %496 : vector<1x256xf32>
    %498 = vector.broadcast %497 : vector<1x256xf32> to vector<8x256xf32>
    %499 = arith.mulf %494, %498 : vector<8x256xf32>
    %c0_78 = arith.constant 0 : index
    %c0_79 = arith.constant 0 : index
    %500 = vector.load %arg28[%c0_78, %c0_79] : memref<8x1xf32, #tpu.memory_space<vmem>>, vector<8x1xf32>
    %501 = vector.broadcast %500 : vector<8x1xf32> to vector<8x256xf32>
    %502 = arith.mulf %499, %501 : vector<8x256xf32>
    %c0_80 = arith.constant 0 : index
    %c0_81 = arith.constant 0 : index
    %503 = vector.load %arg29[%c0_80, %c0_81] : memref<8x1xf32, #tpu.memory_space<vmem>>, vector<8x1xf32>
    %504 = vector.broadcast %503 : vector<8x1xf32> to vector<8x256xf32>
    %505 = arith.addf %502, %504 : vector<8x256xf32>
    %c0_82 = arith.constant 0 : index
    %c0_83 = arith.constant 0 : index
    %506 = vector.load %arg30[%c0_82, %c0_83] : memref<16x8xf32, #tpu.memory_space<vmem>>, vector<16x8xf32>
    %cst_84 = arith.constant dense<0.000000e+00> : vector<16x256xf32>
    %507 = tpu.matmul %506, %505, %cst_84 {dimension_numbers = #tpu.dot_dimension_numbers<[1], [0], [0], [1], [0, 0, 1, 1], [], []>} : vector<16x8xf32>, vector<8x256xf32>, vector<16x256xf32> -> vector<16x256xf32>
    %c0_85 = arith.constant 0 : index
    %c0_86 = arith.constant 0 : index
    %508 = vector.load %arg31[%c0_85, %c0_86] : memref<16x1xf32, #tpu.memory_space<vmem>>, vector<16x1xf32>
    %509 = vector.broadcast %508 : vector<16x1xf32> to vector<16x256xf32>
    %510 = arith.addf %507, %509 : vector<16x256xf32>
    %511 = vector.extract_strided_slice %510 {offsets = [0, 0], sizes = [8, 256], strides = [1, 1]} : vector<16x256xf32> to vector<8x256xf32>
    %512 = vector.extract_strided_slice %510 {offsets = [8, 0], sizes = [8, 256], strides = [1, 1]} : vector<16x256xf32> to vector<8x256xf32>
    %513 = arith.mulf %511, %512 : vector<8x256xf32>
    %c0_87 = arith.constant 0 : index
    %c0_88 = arith.constant 0 : index
    %514 = vector.load %arg32[%c0_87, %c0_88] : memref<8x8xf32, #tpu.memory_space<vmem>>, vector<8x8xf32>
    %cst_89 = arith.constant dense<0.000000e+00> : vector<8x256xf32>
    %515 = tpu.matmul %514, %513, %cst_89 {dimension_numbers = #tpu.dot_dimension_numbers<[1], [0], [0], [1], [0, 0, 1, 1], [], []>} : vector<8x8xf32>, vector<8x256xf32>, vector<8x256xf32> -> vector<8x256xf32>
    %c0_90 = arith.constant 0 : index
    %c0_91 = arith.constant 0 : index
    %516 = vector.load %arg33[%c0_90, %c0_91] : memref<8x1xf32, #tpu.memory_space<vmem>>, vector<8x1xf32>
    %517 = vector.broadcast %516 : vector<8x1xf32> to vector<8x256xf32>
    %518 = arith.addf %515, %517 : vector<8x256xf32>
    %c0_92 = arith.constant 0 : index
    %c0_93 = arith.constant 0 : index
    %519 = vector.load %arg34[%c0_92, %c0_93] : memref<8x1xf32, #tpu.memory_space<vmem>>, vector<8x1xf32>
    %520 = vector.broadcast %519 : vector<8x1xf32> to vector<8x256xf32>
    %521 = arith.mulf %518, %520 : vector<8x256xf32>
    %522 = arith.addf %481, %521 : vector<8x256xf32>
    %c0_94 = arith.constant 0 : index
    %c0_95 = arith.constant 0 : index
    %c0_96 = arith.constant 0 : index
    %523 = vector.load %arg35[%c0_94, %c0_95, %c0_96] : memref<1x8x256xf32, #tpu.memory_space<vmem>>, vector<1x8x256xf32>
    %524 = vector.shape_cast %523 : vector<1x8x256xf32> to vector<8x256xf32>
    %525 = vector.shape_cast %522 : vector<8x256xf32> to vector<1x8x256xf32>
    tpu.vector_store %arg35[%c0_94, %c0_95, %c0_96], %525 {strides = array<i32>} : memref<1x8x256xf32, #tpu.memory_space<vmem>>, vector<1x8x256xf32>,
    return
  }
  func.func @transform_0(%arg0: i32) -> (i32, i32, i32) {
    %c0_i32 = arith.constant 0 : i32
    %c0_i32_0 = arith.constant 0 : i32
    %c0_i32_1 = arith.constant 0 : i32
    return %arg0, %c0_i32, %c0_i32_0 : i32, i32, i32
  }
  func.func @transform_1(%arg0: i32) -> (i32, i32) {
    %c0_i32 = arith.constant 0 : i32
    %c0_i32_0 = arith.constant 0 : i32
    %c0_i32_1 = arith.constant 0 : i32
    return %c0_i32, %c0_i32_0 : i32, i32
  }
  func.func @transform_2(%arg0: i32) -> (i32, i32) {
    %c0_i32 = arith.constant 0 : i32
    %c0_i32_0 = arith.constant 0 : i32
    %c0_i32_1 = arith.constant 0 : i32
    return %c0_i32, %c0_i32_0 : i32, i32
  }
  func.func @transform_3(%arg0: i32) -> (i32, i32) {
    %c0_i32 = arith.constant 0 : i32
    %c0_i32_0 = arith.constant 0 : i32
    %c0_i32_1 = arith.constant 0 : i32
    return %c0_i32, %c0_i32_0 : i32, i32
  }
  func.func @transform_4(%arg0: i32) -> (i32, i32) {
    %c0_i32 = arith.constant 0 : i32
    %c0_i32_0 = arith.constant 0 : i32
    %c0_i32_1 = arith.constant 0 : i32
    return %c0_i32, %c0_i32_0 : i32, i32
  }
  func.func @transform_5(%arg0: i32) -> (i32, i32) {
    %c0_i32 = arith.constant 0 : i32
    %c0_i32_0 = arith.constant 0 : i32
    %c0_i32_1 = arith.constant 0 : i32
    return %c0_i32, %c0_i32_0 : i32, i32
  }
  func.func @transform_6(%arg0: i32) -> (i32, i32) {
    %c0_i32 = arith.constant 0 : i32
    %c0_i32_0 = arith.constant 0 : i32
    %c0_i32_1 = arith.constant 0 : i32
    return %c0_i32, %c0_i32_0 : i32, i32
  }
  func.func @transform_7(%arg0: i32) -> (i32, i32) {
    %c0_i32 = arith.constant 0 : i32
    %c0_i32_0 = arith.constant 0 : i32
    %c0_i32_1 = arith.constant 0 : i32
    return %c0_i32, %c0_i32_0 : i32, i32
  }
  func.func @transform_8(%arg0: i32) -> (i32, i32) {
    %c0_i32 = arith.constant 0 : i32
    %c0_i32_0 = arith.constant 0 : i32
    %c0_i32_1 = arith.constant 0 : i32
    return %c0_i32, %c0_i32_0 : i32, i32
  }
  func.func @transform_9(%arg0: i32) -> (i32, i32) {
    %c0_i32 = arith.constant 0 : i32
    %c0_i32_0 = arith.constant 0 : i32
    %c0_i32_1 = arith.constant 0 : i32
    return %c0_i32, %c0_i32_0 : i32, i32
  }
  func.func @transform_10(%arg0: i32) -> (i32, i32) {
    %c0_i32 = arith.constant 0 : i32
    %c0_i32_0 = arith.constant 0 : i32
    %c0_i32_1 = arith.constant 0 : i32
    return %c0_i32, %c0_i32_0 : i32, i32
  }
  func.func @transform_11(%arg0: i32) -> (i32, i32) {
    %c0_i32 = arith.constant 0 : i32
    %c0_i32_0 = arith.constant 0 : i32
    %c0_i32_1 = arith.constant 0 : i32
    return %c0_i32, %c0_i32_0 : i32, i32
  }
  func.func @transform_12(%arg0: i32) -> (i32, i32) {
    %c0_i32 = arith.constant 0 : i32
    %c0_i32_0 = arith.constant 0 : i32
    %c0_i32_1 = arith.constant 0 : i32
    return %c0_i32, %c0_i32_0 : i32, i32
  }
  func.func @transform_13(%arg0: i32) -> (i32, i32) {
    %c0_i32 = arith.constant 0 : i32
    %c0_i32_0 = arith.constant 0 : i32
    %c0_i32_1 = arith.constant 0 : i32
    return %c0_i32, %c0_i32_0 : i32, i32
  }
  func.func @transform_14(%arg0: i32) -> (i32, i32) {
    %c0_i32 = arith.constant 0 : i32
    %c0_i32_0 = arith.constant 0 : i32
    %c0_i32_1 = arith.constant 0 : i32
    return %c0_i32, %c0_i32_0 : i32, i32
  }
  func.func @transform_15(%arg0: i32) -> (i32, i32) {
    %c0_i32 = arith.constant 0 : i32
    %c0_i32_0 = arith.constant 0 : i32
    %c0_i32_1 = arith.constant 0 : i32
    return %c0_i32, %c0_i32_0 : i32, i32
  }
  func.func @transform_16(%arg0: i32) -> (i32, i32) {
    %c0_i32 = arith.constant 0 : i32
    %c0_i32_0 = arith.constant 0 : i32
    %c0_i32_1 = arith.constant 0 : i32
    return %c0_i32, %c0_i32_0 : i32, i32
  }
  func.func @transform_17(%arg0: i32) -> (i32, i32) {
    %c0_i32 = arith.constant 0 : i32
    %c0_i32_0 = arith.constant 0 : i32
    %c0_i32_1 = arith.constant 0 : i32
    return %c0_i32, %c0_i32_0 : i32, i32
  }
  func.func @transform_18(%arg0: i32) -> (i32, i32) {
    %c0_i32 = arith.constant 0 : i32
    %c0_i32_0 = arith.constant 0 : i32
    %c0_i32_1 = arith.constant 0 : i32
    return %c0_i32, %c0_i32_0 : i32, i32
  }
  func.func @transform_19(%arg0: i32) -> (i32, i32) {
    %c0_i32 = arith.constant 0 : i32
    %c0_i32_0 = arith.constant 0 : i32
    %c0_i32_1 = arith.constant 0 : i32
    return %c0_i32, %c0_i32_0 : i32, i32
  }
  func.func @transform_20(%arg0: i32) -> (i32, i32) {
    %c0_i32 = arith.constant 0 : i32
    %c0_i32_0 = arith.constant 0 : i32
    %c0_i32_1 = arith.constant 0 : i32
    return %c0_i32, %c0_i32_0 : i32, i32
  }
  func.func @transform_21(%arg0: i32) -> (i32, i32, i32) {
    %c0_i32 = arith.constant 0 : i32
    %c0_i32_0 = arith.constant 0 : i32
    %c0_i32_1 = arith.constant 0 : i32
    %c0_i32_2 = arith.constant 0 : i32
    return %c0_i32, %c0_i32_0, %c0_i32_1 : i32, i32, i32
  }
  func.func @transform_22(%arg0: i32) -> (i32, i32) {
    %c0_i32 = arith.constant 0 : i32
    %c0_i32_0 = arith.constant 0 : i32
    %c0_i32_1 = arith.constant 0 : i32
    return %c0_i32, %c0_i32_0 : i32, i32
  }
  func.func @transform_23(%arg0: i32) -> (i32, i32) {
    %c0_i32 = arith.constant 0 : i32
    %c0_i32_0 = arith.constant 0 : i32
    %c0_i32_1 = arith.constant 0 : i32
    return %c0_i32, %c0_i32_0 : i32, i32
  }
  func.func @transform_24(%arg0: i32) -> (i32, i32) {
    %c0_i32 = arith.constant 0 : i32
    %c0_i32_0 = arith.constant 0 : i32
    %c0_i32_1 = arith.constant 0 : i32
    return %c0_i32, %c0_i32_0 : i32, i32
  }
  func.func @transform_25(%arg0: i32) -> (i32, i32) {
    %c0_i32 = arith.constant 0 : i32
    %c0_i32_0 = arith.constant 0 : i32
    %c0_i32_1 = arith.constant 0 : i32
    return %c0_i32, %c0_i32_0 : i32, i32
  }
  func.func @transform_26(%arg0: i32) -> (i32, i32) {
    %c0_i32 = arith.constant 0 : i32
    %c0_i32_0 = arith.constant 0 : i32
    %c0_i32_1 = arith.constant 0 : i32
    return %c0_i32, %c0_i32_0 : i32, i32
  }
  func.func @transform_27(%arg0: i32) -> (i32, i32) {
    %c0_i32 = arith.constant 0 : i32
    %c0_i32_0 = arith.constant 0 : i32
    %c0_i32_1 = arith.constant 0 : i32
    return %c0_i32, %c0_i32_0 : i32, i32
  }
  func.func @transform_28(%arg0: i32) -> (i32, i32) {
    %c0_i32 = arith.constant 0 : i32
    %c0_i32_0 = arith.constant 0 : i32
    %c0_i32_1 = arith.constant 0 : i32
    return %c0_i32, %c0_i32_0 : i32, i32
  }
  func.func @transform_29(%arg0: i32) -> (i32, i32) {
    %c0_i32 = arith.constant 0 : i32
    %c0_i32_0 = arith.constant 0 : i32
    %c0_i32_1 = arith.constant 0 : i32
    return %c0_i32, %c0_i32_0 : i32, i32
  }
  func.func @transform_30(%arg0: i32) -> (i32, i32) {
    %c0_i32 = arith.constant 0 : i32
    %c0_i32_0 = arith.constant 0 : i32
    %c0_i32_1 = arith.constant 0 : i32
    return %c0_i32, %c0_i32_0 : i32, i32
  }
  func.func @transform_31(%arg0: i32) -> (i32, i32) {
    %c0_i32 = arith.constant 0 : i32
    %c0_i32_0 = arith.constant 0 : i32
    %c0_i32_1 = arith.constant 0 : i32
    return %c0_i32, %c0_i32_0 : i32, i32
  }
  func.func @transform_32(%arg0: i32) -> (i32, i32) {
    %c0_i32 = arith.constant 0 : i32
    %c0_i32_0 = arith.constant 0 : i32
    %c0_i32_1 = arith.constant 0 : i32
    return %c0_i32, %c0_i32_0 : i32, i32
  }
  func.func @transform_33(%arg0: i32) -> (i32, i32) {
    %c0_i32 = arith.constant 0 : i32
    %c0_i32_0 = arith.constant 0 : i32
    %c0_i32_1 = arith.constant 0 : i32
    return %c0_i32, %c0_i32_0 : i32, i32
  }
  func.func @transform_34(%arg0: i32) -> (i32, i32, i32) {
    %c0_i32 = arith.constant 0 : i32
    %c0_i32_0 = arith.constant 0 : i32
    %c0_i32_1 = arith.constant 0 : i32
    return %arg0, %c0_i32, %c0_i32_0 : i32, i32, i32
  }
}

</mosaic_0001>

<llo_original>
// kernel: kbblock_forward.1
$region0: #{kbblock_forward.1}
  #allocation0 [shape = 'u32[]', space=smem, size = 0x4, offset = 0x4, fixed_abs, tag = 'smem constant byte address 0x4 - core index']
  #allocation1 [shape = 'u32[144,128]{1,0:T(1,128)}', space=vmem, size = 0x12000, scoped, tag = 'internal scratch']
  %s0 = inlined_call_operand.smem [shape: u32[35], index: -1, kind: input, shape index: {}]
  %s1 = sld [smem:[%s0]]
  %s2 = scalar_lea.smem %s0, 1
  %s3 = sld [smem:[%s2]]
  %s4 = scalar_lea.smem %s0, 2
  %s5 = sld [smem:[%s4]]
  %s6 = scalar_lea.smem %s0, 3
  %s7 = sld [smem:[%s6]]
  %s8 = scalar_lea.smem %s0, 4
  %s9 = sld [smem:[%s8]]
  %s10 = scalar_lea.smem %s0, 5
  %s11 = sld [smem:[%s10]]
  %s12 = scalar_lea.smem %s0, 6
  %s13 = sld [smem:[%s12]]
  %s14 = scalar_lea.smem %s0, 7
  %s15 = sld [smem:[%s14]]
  %s16 = scalar_lea.smem %s0, 8
  %s17 = sld [smem:[%s16]]
  %s18 = scalar_lea.smem %s0, 9
  %s19 = sld [smem:[%s18]]
  %s20 = scalar_lea.smem %s0, 10
  %s21 = sld [smem:[%s20]]
  %s22 = scalar_lea.smem %s0, 11
  %s23 = sld [smem:[%s22]]
  %s24 = scalar_lea.smem %s0, 12
  %s25 = sld [smem:[%s24]]
  %s26 = scalar_lea.smem %s0, 13
  %s27 = sld [smem:[%s26]]
  %s28 = scalar_lea.smem %s0, 14
  %s29 = sld [smem:[%s28]]
  %s30 = scalar_lea.smem %s0, 15
  %s31 = sld [smem:[%s30]]
  %s32 = scalar_lea.smem %s0, 16
  %s33 = sld [smem:[%s32]]
  %s34 = scalar_lea.smem %s0, 17
  %s35 = sld [smem:[%s34]]
  %s36 = scalar_lea.smem %s0, 18
  %s37 = sld [smem:[%s36]]
  %s38 = scalar_lea.smem %s0, 19
  %s39 = sld [smem:[%s38]]
  %s40 = scalar_lea.smem %s0, 20
  %s41 = sld [smem:[%s40]]
  %s42 = scalar_lea.smem %s0, 21
  %s43 = sld [smem:[%s42]]
  %s44 = scalar_lea.smem %s0, 22
  %s45 = sld [smem:[%s44]]
  %s46 = scalar_lea.smem %s0, 23
  %s47 = sld [smem:[%s46]]
  %s48 = scalar_lea.smem %s0, 24
  %s49 = sld [smem:[%s48]]
  %s50 = scalar_lea.smem %s0, 25
  %s51 = sld [smem:[%s50]]
  %s52 = scalar_lea.smem %s0, 26
  %s53 = sld [smem:[%s52]]
  %s54 = scalar_lea.smem %s0, 27
  %s55 = sld [smem:[%s54]]
  %s56 = scalar_lea.smem %s0, 28
  %s57 = sld [smem:[%s56]]
  %s58 = scalar_lea.smem %s0, 29
  %s59 = sld [smem:[%s58]]
  %s60 = scalar_lea.smem %s0, 30
  %s61 = sld [smem:[%s60]]
  %s62 = scalar_lea.smem %s0, 31
  %s63 = sld [smem:[%s62]]
  %s64 = scalar_lea.smem %s0, 32
  %s65 = sld [smem:[%s64]]
  %s66 = scalar_lea.smem %s0, 33
  %s67 = sld [smem:[%s66]]
  %s68 = scalar_lea.smem %s0, 34
  %s69 = sld [smem:[%s68]]
  %s70 = sld [smem:[#allocation0]]
  $region169: #{kbblock_forward.1} parent=0
    _
  %s72 = ssub.s32 1, %s70
  %s73 = scalar_select 0, %s72, %s70
  loop: start=0, step=1, limit=4
  $region2: #{kbblock_forward.1} parent=0 // loop_pre_header
    _
  $region3: #{kbblock_forward.1} parent=0 // loop_header
    %s75 = sphi 0, %s79
    %p76 = scmp.ge.s32.totalorder %s75, 4
    %s85 = sphi 0, %s87
    %s88 = sphi 0, %s85
    %s89 = sphi 0, %s88
    %s105 = sphi 0, %s89
    %s109 = sphi 0, %s109
    %s111 = sphi 0, %s109
    %s112 = sphi 0, %s111
    %s126 = sphi 0, %s112
    %s130 = sphi 0, %s130
    %s132 = sphi 0, %s130
    %s133 = sphi 0, %s132
    %s147 = sphi 0, %s133
    %s151 = sphi 0, %s151
    %s153 = sphi 0, %s151
    %s154 = sphi 0, %s153
    %s168 = sphi 0, %s154
    %s172 = sphi 0, %s172
    %s174 = sphi 0, %s172
    %s175 = sphi 0, %s174
    %s189 = sphi 0, %s175
    %s193 = sphi 0, %s193
    %s195 = sphi 0, %s193
    %s196 = sphi 0, %s195
    %s210 = sphi 0, %s196
    %s214 = sphi 0, %s214
    %s216 = sphi 0, %s214
    %s217 = sphi 0, %s216
    %s231 = sphi 0, %s217
    %s235 = sphi 0, %s235
    %s237 = sphi 0, %s235
    %s238 = sphi 0, %s237
    %s252 = sphi 0, %s238
    %s256 = sphi 0, %s256
    %s258 = sphi 0, %s256
    %s259 = sphi 0, %s258
    %s273 = sphi 0, %s259
    %s277 = sphi 0, %s277
    %s279 = sphi 0, %s277
    %s280 = sphi 0, %s279
    %s294 = sphi 0, %s280
    %s298 = sphi 0, %s298
    %s300 = sphi 0, %s298
    %s301 = sphi 0, %s300
    %s315 = sphi 0, %s301
    %s319 = sphi 0, %s319
    %s321 = sphi 0, %s319
    %s322 = sphi 0, %s321
    %s336 = sphi 0, %s322
    %s340 = sphi 0, %s340
    %s342 = sphi 0, %s340
    %s343 = sphi 0, %s342
    %s357 = sphi 0, %s343
    %s361 = sphi 0, %s361
    %s363 = sphi 0, %s361
    %s364 = sphi 0, %s363
    %s378 = sphi 0, %s364
    %s382 = sphi 0, %s382
    %s384 = sphi 0, %s382
    %s385 = sphi 0, %s384
    %s399 = sphi 0, %s385
    %s403 = sphi 0, %s403
    %s405 = sphi 0, %s403
    %s406 = sphi 0, %s405
    %s420 = sphi 0, %s406
    %s424 = sphi 0, %s424
    %s426 = sphi 0, %s424
    %s427 = sphi 0, %s426
    %s441 = sphi 0, %s427
    %s445 = sphi 0, %s445
    %s447 = sphi 0, %s445
    %s448 = sphi 0, %s447
    %s462 = sphi 0, %s448
    %s466 = sphi 0, %s466
    %s468 = sphi 0, %s466
    %s469 = sphi 0, %s468
    %s483 = sphi 0, %s469
    %s487 = sphi 0, %s487
    %s489 = sphi 0, %s487
    %s490 = sphi 0, %s489
    %s504 = sphi 0, %s490
    %s508 = sphi 0, %s508
    %s510 = sphi 0, %s508
    %s511 = sphi 0, %s510
    %s525 = sphi 0, %s511
    %s529 = sphi 0, %s529
    %s531 = sphi 0, %s529
    %s532 = sphi 0, %s531
    %s546 = sphi 0, %s532
    %s550 = sphi 0, %s550
    %s552 = sphi 0, %s550
    %s553 = sphi 0, %s552
    %s567 = sphi 0, %s553
    %s571 = sphi 0, %s571
    %s573 = sphi 0, %s571
    %s574 = sphi 0, %s573
    %s588 = sphi 0, %s574
    %s592 = sphi 0, %s592
    %s594 = sphi 0, %s592
    %s595 = sphi 0, %s594
    %s609 = sphi 0, %s595
    %s613 = sphi 0, %s613
    %s615 = sphi 0, %s613
    %s616 = sphi 0, %s615
    %s630 = sphi 0, %s616
    %s634 = sphi 0, %s634
    %s636 = sphi 0, %s634
    %s637 = sphi 0, %s636
    %s651 = sphi 0, %s637
    %s655 = sphi 0, %s655
    %s657 = sphi 0, %s655
    %s658 = sphi 0, %s657
    %s672 = sphi 0, %s658
    %s676 = sphi 0, %s676
    %s678 = sphi 0, %s676
    %s679 = sphi 0, %s678
    %s693 = sphi 0, %s679
    %s697 = sphi 0, %s697
    %s699 = sphi 0, %s697
    %s700 = sphi 0, %s699
    %s714 = sphi 0, %s700
    %s718 = sphi 0, %s718
    %s720 = sphi 0, %s718
    %s721 = sphi 0, %s720
    %s735 = sphi 0, %s721
    %s739 = sphi 0, %s739
    %s741 = sphi 0, %s739
    %s742 = sphi 0, %s741
    %s756 = sphi 0, %s742
    %s760 = sphi 0, %s760
    %s762 = sphi 0, %s760
    %s763 = sphi 0, %s762
    %s777 = sphi 0, %s763
    %s781 = sphi 0, %s781
    %s783 = sphi 0, %s781
    %s784 = sphi 0, %s783
    %s798 = sphi 0, %s784
    %s804 = sphi 0, %s806
    %s807 = sphi 0, %s804
    %s808 = sphi 0, %s807
    %s824 = sphi 0, %s808
  $region4: #{kbblock_forward.1} parent=0 // loop_header_branch
    %78 = sbr.rel (%p76) target = $region8
  $region5: #{kbblock_forward.1} parent=0 // loop_body
    %s80 = ssub.s32 %s75, 1
    %s81 = ssub.s32 %s75, 2
    %s82 = sadd.s32 %s75, 1
    %s83 = ssub.s32 %s75, %s82
    %p84 = scmp.eq.s32.totalorder %s83, 0
    %s86 = sadd.s32 %s85, 1
    %s87 = scalar_select %p84, %s85, %s86
    %p90 = pneg %p84
    %p91 = scmp.eq.s32.totalorder %s75, 1
    %p92 = por %p90, %p91
    %p93 = scmp.ne.s32.totalorder %s85, %s88
    %p94 = scmp.eq.s32.totalorder %s75, 0
    %p95 = por %p93, %p94
    %p96 = scmp.ne.s32.totalorder %s85, %s88
    %p97 = scmp.eq.s32.totalorder %s80, 1
    %p98 = por %p96, %p97
    %p99 = scmp.ne.s32.totalorder %s88, %s89
    %p100 = scmp.eq.s32.totalorder %s80, 0
    %p101 = por %p99, %p100
    %p102 = scmp.ne.s32.totalorder %s88, %s89
    %p103 = scmp.eq.s32.totalorder %s81, 1
    %p104 = por %p102, %p103
    %p106 = scmp.ne.s32.totalorder %s89, %s105
    %p107 = scmp.eq.s32.totalorder %s81, 0
    %p108 = por %p106, %p107
    %s110 = sadd.s32 %s109, 1
    %p113 = scmp.eq.s32.totalorder %s75, 1
    %p114 = scmp.ne.s32.totalorder %s109, %s111
    %p115 = scmp.eq.s32.totalorder %s75, 0
    %p116 = por %p114, %p115
    %p117 = scmp.ne.s32.totalorder %s109, %s111
    %p118 = scmp.eq.s32.totalorder %s80, 1
    %p119 = por %p117, %p118
    %p120 = scmp.ne.s32.totalorder %s111, %s112
    %p121 = scmp.eq.s32.totalorder %s80, 0
    %p122 = por %p120, %p121
    %p123 = scmp.ne.s32.totalorder %s111, %s112
    %p124 = scmp.eq.s32.totalorder %s81, 1
    %p125 = por %p123, %p124
    %p127 = scmp.ne.s32.totalorder %s112, %s126
    %p128 = scmp.eq.s32.totalorder %s81, 0
    %p129 = por %p127, %p128
    %s131 = sadd.s32 %s130, 1
    %p134 = scmp.eq.s32.totalorder %s75, 1
    %p135 = scmp.ne.s32.totalorder %s130, %s132
    %p136 = scmp.eq.s32.totalorder %s75, 0
    %p137 = por %p135, %p136
    %p138 = scmp.ne.s32.totalorder %s130, %s132
    %p139 = scmp.eq.s32.totalorder %s80, 1
    %p140 = por %p138, %p139
    %p141 = scmp.ne.s32.totalorder %s132, %s133
    %p142 = scmp.eq.s32.totalorder %s80, 0
    %p143 = por %p141, %p142
    %p144 = scmp.ne.s32.totalorder %s132, %s133
    %p145 = scmp.eq.s32.totalorder %s81, 1
    %p146 = por %p144, %p145
    %p148 = scmp.ne.s32.totalorder %s133, %s147
    %p149 = scmp.eq.s32.totalorder %s81, 0
    %p150 = por %p148, %p149
    %s152 = sadd.s32 %s151, 1
    %p155 = scmp.eq.s32.totalorder %s75, 1
    %p156 = scmp.ne.s32.totalorder %s151, %s153
    %p157 = scmp.eq.s32.totalorder %s75, 0
    %p158 = por %p156, %p157
    %p159 = scmp.ne.s32.totalorder %s151, %s153
    %p160 = scmp.eq.s32.totalorder %s80, 1
    %p161 = por %p159, %p160
    %p162 = scmp.ne.s32.totalorder %s153, %s154
    %p163 = scmp.eq.s32.totalorder %s80, 0
    %p164 = por %p162, %p163
    %p165 = scmp.ne.s32.totalorder %s153, %s154
    %p166 = scmp.eq.s32.totalorder %s81, 1
    %p167 = por %p165, %p166
    %p169 = scmp.ne.s32.totalorder %s154, %s168
    %p170 = scmp.eq.s32.totalorder %s81, 0
    %p171 = por %p169, %p170
    %s173 = sadd.s32 %s172, 1
    %p176 = scmp.eq.s32.totalorder %s75, 1
    %p177 = scmp.ne.s32.totalorder %s172, %s174
    %p178 = scmp.eq.s32.totalorder %s75, 0
    %p179 = por %p177, %p178
    %p180 = scmp.ne.s32.totalorder %s172, %s174
    %p181 = scmp.eq.s32.totalorder %s80, 1
    %p182 = por %p180, %p181
    %p183 = scmp.ne.s32.totalorder %s174, %s175
    %p184 = scmp.eq.s32.totalorder %s80, 0
    %p185 = por %p183, %p184
    %p186 = scmp.ne.s32.totalorder %s174, %s175
    %p187 = scmp.eq.s32.totalorder %s81, 1
    %p188 = por %p186, %p187
    %p190 = scmp.ne.s32.totalorder %s175, %s189
    %p191 = scmp.eq.s32.totalorder %s81, 0
    %p192 = por %p190, %p191
    %s194 = sadd.s32 %s193, 1
    %p197 = scmp.eq.s32.totalorder %s75, 1
    %p198 = scmp.ne.s32.totalorder %s193, %s195
    %p199 = scmp.eq.s32.totalorder %s75, 0
    %p200 = por %p198, %p199
    %p201 = scmp.ne.s32.totalorder %s193, %s195
    %p202 = scmp.eq.s32.totalorder %s80, 1
    %p203 = por %p201, %p202
    %p204 = scmp.ne.s32.totalorder %s195, %s196
    %p205 = scmp.eq.s32.totalorder %s80, 0
    %p206 = por %p204, %p205
    %p207 = scmp.ne.s32.totalorder %s195, %s196
    %p208 = scmp.eq.s32.totalorder %s81, 1
    %p209 = por %p207, %p208
    %p211 = scmp.ne.s32.totalorder %s196, %s210
    %p212 = scmp.eq.s32.totalorder %s81, 0
    %p213 = por %p211, %p212
    %s215 = sadd.s32 %s214, 1
    %p218 = scmp.eq.s32.totalorder %s75, 1
    %p219 = scmp.ne.s32.totalorder %s214, %s216
    %p220 = scmp.eq.s32.totalorder %s75, 0
    %p221 = por %p219, %p220
    %p222 = scmp.ne.s32.totalorder %s214, %s216
    %p223 = scmp.eq.s32.totalorder %s80, 1
    %p224 = por %p222, %p223
    %p225 = scmp.ne.s32.totalorder %s216, %s217
    %p226 = scmp.eq.s32.totalorder %s80, 0
    %p227 = por %p225, %p226
    %p228 = scmp.ne.s32.totalorder %s216, %s217
    %p229 = scmp.eq.s32.totalorder %s81, 1
    %p230 = por %p228, %p229
    %p232 = scmp.ne.s32.totalorder %s217, %s231
    %p233 = scmp.eq.s32.totalorder %s81, 0
    %p234 = por %p232, %p233
    %s236 = sadd.s32 %s235, 1
    %p239 = scmp.eq.s32.totalorder %s75, 1
    %p240 = scmp.ne.s32.totalorder %s235, %s237
    %p241 = scmp.eq.s32.totalorder %s75, 0
    %p242 = por %p240, %p241
    %p243 = scmp.ne.s32.totalorder %s235, %s237
    %p244 = scmp.eq.s32.totalorder %s80, 1
    %p245 = por %p243, %p244
    %p246 = scmp.ne.s32.totalorder %s237, %s238
    %p247 = scmp.eq.s32.totalorder %s80, 0
    %p248 = por %p246, %p247
    %p249 = scmp.ne.s32.totalorder %s237, %s238
    %p250 = scmp.eq.s32.totalorder %s81, 1
    %p251 = por %p249, %p250
    %p253 = scmp.ne.s32.totalorder %s238, %s252
    %p254 = scmp.eq.s32.totalorder %s81, 0
    %p255 = por %p253, %p254
    %s257 = sadd.s32 %s256, 1
    %p260 = scmp.eq.s32.totalorder %s75, 1
    %p261 = scmp.ne.s32.totalorder %s256, %s258
    %p262 = scmp.eq.s32.totalorder %s75, 0
    %p263 = por %p261, %p262
    %p264 = scmp.ne.s32.totalorder %s256, %s258
    %p265 = scmp.eq.s32.totalorder %s80, 1
    %p266 = por %p264, %p265
    %p267 = scmp.ne.s32.totalorder %s258, %s259
    %p268 = scmp.eq.s32.totalorder %s80, 0
    %p269 = por %p267, %p268
    %p270 = scmp.ne.s32.totalorder %s258, %s259
    %p271 = scmp.eq.s32.totalorder %s81, 1
    %p272 = por %p270, %p271
    %p274 = scmp.ne.s32.totalorder %s259, %s273
    %p275 = scmp.eq.s32.totalorder %s81, 0
    %p276 = por %p274, %p275
    %s278 = sadd.s32 %s277, 1
    %p281 = scmp.eq.s32.totalorder %s75, 1
    %p282 = scmp.ne.s32.totalorder %s277, %s279
    %p283 = scmp.eq.s32.totalorder %s75, 0
    %p284 = por %p282, %p283
    %p285 = scmp.ne.s32.totalorder %s277, %s279
    %p286 = scmp.eq.s32.totalorder %s80, 1
    %p287 = por %p285, %p286
    %p288 = scmp.ne.s32.totalorder %s279, %s280
    %p289 = scmp.eq.s32.totalorder %s80, 0
    %p290 = por %p288, %p289
    %p291 = scmp.ne.s32.totalorder %s279, %s280
    %p292 = scmp.eq.s32.totalorder %s81, 1
    %p293 = por %p291, %p292
    %p295 = scmp.ne.s32.totalorder %s280, %s294
    %p296 = scmp.eq.s32.totalorder %s81, 0
    %p297 = por %p295, %p296
    %s299 = sadd.s32 %s298, 1
    %p302 = scmp.eq.s32.totalorder %s75, 1
    %p303 = scmp.ne.s32.totalorder %s298, %s300
    %p304 = scmp.eq.s32.totalorder %s75, 0
    %p305 = por %p303, %p304
    %p306 = scmp.ne.s32.totalorder %s298, %s300
    %p307 = scmp.eq.s32.totalorder %s80, 1
    %p308 = por %p306, %p307
    %p309 = scmp.ne.s32.totalorder %s300, %s301
    %p310 = scmp.eq.s32.totalorder %s80, 0
    %p311 = por %p309, %p310
    %p312 = scmp.ne.s32.totalorder %s300, %s301
    %p313 = scmp.eq.s32.totalorder %s81, 1
    %p314 = por %p312, %p313
    %p316 = scmp.ne.s32.totalorder %s301, %s315
    %p317 = scmp.eq.s32.totalorder %s81, 0
    %p318 = por %p316, %p317
    %s320 = sadd.s32 %s319, 1
    %p323 = scmp.eq.s32.totalorder %s75, 1
    %p324 = scmp.ne.s32.totalorder %s319, %s321
    %p325 = scmp.eq.s32.totalorder %s75, 0
    %p326 = por %p324, %p325
    %p327 = scmp.ne.s32.totalorder %s319, %s321
    %p328 = scmp.eq.s32.totalorder %s80, 1
    %p329 = por %p327, %p328
    %p330 = scmp.ne.s32.totalorder %s321, %s322
    %p331 = scmp.eq.s32.totalorder %s80, 0
    %p332 = por %p330, %p331
    %p333 = scmp.ne.s32.totalorder %s321, %s322
    %p334 = scmp.eq.s32.totalorder %s81, 1
    %p335 = por %p333, %p334
    %p337 = scmp.ne.s32.totalorder %s322, %s336
    %p338 = scmp.eq.s32.totalorder %s81, 0
    %p339 = por %p337, %p338
    %s341 = sadd.s32 %s340, 1
    %p344 = scmp.eq.s32.totalorder %s75, 1
    %p345 = scmp.ne.s32.totalorder %s340, %s342
    %p346 = scmp.eq.s32.totalorder %s75, 0
    %p347 = por %p345, %p346
    %p348 = scmp.ne.s32.totalorder %s340, %s342
    %p349 = scmp.eq.s32.totalorder %s80, 1
    %p350 = por %p348, %p349
    %p351 = scmp.ne.s32.totalorder %s342, %s343
    %p352 = scmp.eq.s32.totalorder %s80, 0
    %p353 = por %p351, %p352
    %p354 = scmp.ne.s32.totalorder %s342, %s343
    %p355 = scmp.eq.s32.totalorder %s81, 1
    %p356 = por %p354, %p355
    %p358 = scmp.ne.s32.totalorder %s343, %s357
    %p359 = scmp.eq.s32.totalorder %s81, 0
    %p360 = por %p358, %p359
    %s362 = sadd.s32 %s361, 1
    %p365 = scmp.eq.s32.totalorder %s75, 1
    %p366 = scmp.ne.s32.totalorder %s361, %s363
    %p367 = scmp.eq.s32.totalorder %s75, 0
    %p368 = por %p366, %p367
    %p369 = scmp.ne.s32.totalorder %s361, %s363
    %p370 = scmp.eq.s32.totalorder %s80, 1
    %p371 = por %p369, %p370
    %p372 = scmp.ne.s32.totalorder %s363, %s364
    %p373 = scmp.eq.s32.totalorder %s80, 0
    %p374 = por %p372, %p373
    %p375 = scmp.ne.s32.totalorder %s363, %s364
    %p376 = scmp.eq.s32.totalorder %s81, 1
    %p377 = por %p375, %p376
    %p379 = scmp.ne.s32.totalorder %s364, %s378
    %p380 = scmp.eq.s32.totalorder %s81, 0
    %p381 = por %p379, %p380
    %s383 = sadd.s32 %s382, 1
    %p386 = scmp.eq.s32.totalorder %s75, 1
    %p387 = scmp.ne.s32.totalorder %s382, %s384
    %p388 = scmp.eq.s32.totalorder %s75, 0
    %p389 = por %p387, %p388
    %p390 = scmp.ne.s32.totalorder %s382, %s384
    %p391 = scmp.eq.s32.totalorder %s80, 1
    %p392 = por %p390, %p391
    %p393 = scmp.ne.s32.totalorder %s384, %s385
    %p394 = scmp.eq.s32.totalorder %s80, 0
    %p395 = por %p393, %p394
    %p396 = scmp.ne.s32.totalorder %s384, %s385
    %p397 = scmp.eq.s32.totalorder %s81, 1
    %p398 = por %p396, %p397
    %p400 = scmp.ne.s32.totalorder %s385, %s399
    %p401 = scmp.eq.s32.totalorder %s81, 0
    %p402 = por %p400, %p401
    %s404 = sadd.s32 %s403, 1
    %p407 = scmp.eq.s32.totalorder %s75, 1
    %p408 = scmp.ne.s32.totalorder %s403, %s405
    %p409 = scmp.eq.s32.totalorder %s75, 0
    %p410 = por %p408, %p409
    %p411 = scmp.ne.s32.totalorder %s403, %s405
    %p412 = scmp.eq.s32.totalorder %s80, 1
    %p413 = por %p411, %p412
    %p414 = scmp.ne.s32.totalorder %s405, %s406
    %p415 = scmp.eq.s32.totalorder %s80, 0
    %p416 = por %p414, %p415
    %p417 = scmp.ne.s32.totalorder %s405, %s406
    %p418 = scmp.eq.s32.totalorder %s81, 1
    %p419 = por %p417, %p418
    %p421 = scmp.ne.s32.totalorder %s406, %s420
    %p422 = scmp.eq.s32.totalorder %s81, 0
    %p423 = por %p421, %p422
    %s425 = sadd.s32 %s424, 1
    %p428 = scmp.eq.s32.totalorder %s75, 1
    %p429 = scmp.ne.s32.totalorder %s424, %s426
    %p430 = scmp.eq.s32.totalorder %s75, 0
    %p431 = por %p429, %p430
    %p432 = scmp.ne.s32.totalorder %s424, %s426
    %p433 = scmp.eq.s32.totalorder %s80, 1
    %p434 = por %p432, %p433
    %p435 = scmp.ne.s32.totalorder %s426, %s427
    %p436 = scmp.eq.s32.totalorder %s80, 0
    %p437 = por %p435, %p436
    %p438 = scmp.ne.s32.totalorder %s426, %s427
    %p439 = scmp.eq.s32.totalorder %s81, 1
    %p440 = por %p438, %p439
    %p442 = scmp.ne.s32.totalorder %s427, %s441
    %p443 = scmp.eq.s32.totalorder %s81, 0
    %p444 = por %p442, %p443
    %s446 = sadd.s32 %s445, 1
    %p449 = scmp.eq.s32.totalorder %s75, 1
    %p450 = scmp.ne.s32.totalorder %s445, %s447
    %p451 = scmp.eq.s32.totalorder %s75, 0
    %p452 = por %p450, %p451
    %p453 = scmp.ne.s32.totalorder %s445, %s447
    %p454 = scmp.eq.s32.totalorder %s80, 1
    %p455 = por %p453, %p454
    %p456 = scmp.ne.s32.totalorder %s447, %s448
    %p457 = scmp.eq.s32.totalorder %s80, 0
    %p458 = por %p456, %p457
    %p459 = scmp.ne.s32.totalorder %s447, %s448
    %p460 = scmp.eq.s32.totalorder %s81, 1
    %p461 = por %p459, %p460
    %p463 = scmp.ne.s32.totalorder %s448, %s462
    %p464 = scmp.eq.s32.totalorder %s81, 0
    %p465 = por %p463, %p464
    %s467 = sadd.s32 %s466, 1
    %p470 = scmp.eq.s32.totalorder %s75, 1
    %p471 = scmp.ne.s32.totalorder %s466, %s468
    %p472 = scmp.eq.s32.totalorder %s75, 0
    %p473 = por %p471, %p472
    %p474 = scmp.ne.s32.totalorder %s466, %s468
    %p475 = scmp.eq.s32.totalorder %s80, 1
    %p476 = por %p474, %p475
    %p477 = scmp.ne.s32.totalorder %s468, %s469
    %p478 = scmp.eq.s32.totalorder %s80, 0
    %p479 = por %p477, %p478
    %p480 = scmp.ne.s32.totalorder %s468, %s469
    %p481 = scmp.eq.s32.totalorder %s81, 1
    %p482 = por %p480, %p481
    %p484 = scmp.ne.s32.totalorder %s469, %s483
    %p485 = scmp.eq.s32.totalorder %s81, 0
    %p486 = por %p484, %p485
    %s488 = sadd.s32 %s487, 1
    %p491 = scmp.eq.s32.totalorder %s75, 1
    %p492 = scmp.ne.s32.totalorder %s487, %s489
    %p493 = scmp.eq.s32.totalorder %s75, 0
    %p494 = por %p492, %p493
    %p495 = scmp.ne.s32.totalorder %s487, %s489
    %p496 = scmp.eq.s32.totalorder %s80, 1
    %p497 = por %p495, %p496
    %p498 = scmp.ne.s32.totalorder %s489, %s490
    %p499 = scmp.eq.s32.totalorder %s80, 0
    %p500 = por %p498, %p499
    %p501 = scmp.ne.s32.totalorder %s489, %s490
    %p502 = scmp.eq.s32.totalorder %s81, 1
    %p503 = por %p501, %p502
    %p505 = scmp.ne.s32.totalorder %s490, %s504
    %p506 = scmp.eq.s32.totalorder %s81, 0
    %p507 = por %p505, %p506
    %s509 = sadd.s32 %s508, 1
    %p512 = scmp.eq.s32.totalorder %s75, 1
    %p513 = scmp.ne.s32.totalorder %s508, %s510
    %p514 = scmp.eq.s32.totalorder %s75, 0
    %p515 = por %p513, %p514
    %p516 = scmp.ne.s32.totalorder %s508, %s510
    %p517 = scmp.eq.s32.totalorder %s80, 1
    %p518 = por %p516, %p517
    %p519 = scmp.ne.s32.totalorder %s510, %s511
    %p520 = scmp.eq.s32.totalorder %s80, 0
    %p521 = por %p519, %p520
    %p522 = scmp.ne.s32.totalorder %s510, %s511
    %p523 = scmp.eq.s32.totalorder %s81, 1
    %p524 = por %p522, %p523
    %p526 = scmp.ne.s32.totalorder %s511, %s525
    %p527 = scmp.eq.s32.totalorder %s81, 0
    %p528 = por %p526, %p527
    %s530 = sadd.s32 %s529, 1
    %p533 = scmp.eq.s32.totalorder %s75, 1
    %p534 = scmp.ne.s32.totalorder %s529, %s531
    %p535 = scmp.eq.s32.totalorder %s75, 0
    %p536 = por %p534, %p535
    %p537 = scmp.ne.s32.totalorder %s529, %s531
    %p538 = scmp.eq.s32.totalorder %s80, 1
    %p539 = por %p537, %p538
    %p540 = scmp.ne.s32.totalorder %s531, %s532
    %p541 = scmp.eq.s32.totalorder %s80, 0
    %p542 = por %p540, %p541
    %p543 = scmp.ne.s32.totalorder %s531, %s532
    %p544 = scmp.eq.s32.totalorder %s81, 1
    %p545 = por %p543, %p544
    %p547 = scmp.ne.s32.totalorder %s532, %s546
    %p548 = scmp.eq.s32.totalorder %s81, 0
    %p549 = por %p547, %p548
    %s551 = sadd.s32 %s550, 1
    %p554 = scmp.eq.s32.totalorder %s75, 1
    %p555 = scmp.ne.s32.totalorder %s550, %s552
    %p556 = scmp.eq.s32.totalorder %s75, 0
    %p557 = por %p555, %p556
    %p558 = scmp.ne.s32.totalorder %s550, %s552
    %p559 = scmp.eq.s32.totalorder %s80, 1
    %p560 = por %p558, %p559
    %p561 = scmp.ne.s32.totalorder %s552, %s553
    %p562 = scmp.eq.s32.totalorder %s80, 0
    %p563 = por %p561, %p562
    %p564 = scmp.ne.s32.totalorder %s552, %s553
    %p565 = scmp.eq.s32.totalorder %s81, 1
    %p566 = por %p564, %p565
    %p568 = scmp.ne.s32.totalorder %s553, %s567
    %p569 = scmp.eq.s32.totalorder %s81, 0
    %p570 = por %p568, %p569
    %s572 = sadd.s32 %s571, 1
    %p575 = scmp.eq.s32.totalorder %s75, 1
    %p576 = scmp.ne.s32.totalorder %s571, %s573
    %p577 = scmp.eq.s32.totalorder %s75, 0
    %p578 = por %p576, %p577
    %p579 = scmp.ne.s32.totalorder %s571, %s573
    %p580 = scmp.eq.s32.totalorder %s80, 1
    %p581 = por %p579, %p580
    %p582 = scmp.ne.s32.totalorder %s573, %s574
    %p583 = scmp.eq.s32.totalorder %s80, 0
    %p584 = por %p582, %p583
    %p585 = scmp.ne.s32.totalorder %s573, %s574
    %p586 = scmp.eq.s32.totalorder %s81, 1
    %p587 = por %p585, %p586
    %p589 = scmp.ne.s32.totalorder %s574, %s588
    %p590 = scmp.eq.s32.totalorder %s81, 0
    %p591 = por %p589, %p590
    %s593 = sadd.s32 %s592, 1
    %p596 = scmp.eq.s32.totalorder %s75, 1
    %p597 = scmp.ne.s32.totalorder %s592, %s594
    %p598 = scmp.eq.s32.totalorder %s75, 0
    %p599 = por %p597, %p598
    %p600 = scmp.ne.s32.totalorder %s592, %s594
    %p601 = scmp.eq.s32.totalorder %s80, 1
    %p602 = por %p600, %p601
    %p603 = scmp.ne.s32.totalorder %s594, %s595
    %p604 = scmp.eq.s32.totalorder %s80, 0
    %p605 = por %p603, %p604
    %p606 = scmp.ne.s32.totalorder %s594, %s595
    %p607 = scmp.eq.s32.totalorder %s81, 1
    %p608 = por %p606, %p607
    %p610 = scmp.ne.s32.totalorder %s595, %s609
    %p611 = scmp.eq.s32.totalorder %s81, 0
    %p612 = por %p610, %p611
    %s614 = sadd.s32 %s613, 1
    %p617 = scmp.eq.s32.totalorder %s75, 1
    %p618 = scmp.ne.s32.totalorder %s613, %s615
    %p619 = scmp.eq.s32.totalorder %s75, 0
    %p620 = por %p618, %p619
    %p621 = scmp.ne.s32.totalorder %s613, %s615
    %p622 = scmp.eq.s32.totalorder %s80, 1
    %p623 = por %p621, %p622
    %p624 = scmp.ne.s32.totalorder %s615, %s616
    %p625 = scmp.eq.s32.totalorder %s80, 0
    %p626 = por %p624, %p625
    %p627 = scmp.ne.s32.totalorder %s615, %s616
    %p628 = scmp.eq.s32.totalorder %s81, 1
    %p629 = por %p627, %p628
    %p631 = scmp.ne.s32.totalorder %s616, %s630
    %p632 = scmp.eq.s32.totalorder %s81, 0
    %p633 = por %p631, %p632
    %s635 = sadd.s32 %s634, 1
    %p638 = scmp.eq.s32.totalorder %s75, 1
    %p639 = scmp.ne.s32.totalorder %s634, %s636
    %p640 = scmp.eq.s32.totalorder %s75, 0
    %p641 = por %p639, %p640
    %p642 = scmp.ne.s32.totalorder %s634, %s636
    %p643 = scmp.eq.s32.totalorder %s80, 1
    %p644 = por %p642, %p643
    %p645 = scmp.ne.s32.totalorder %s636, %s637
    %p646 = scmp.eq.s32.totalorder %s80, 0
    %p647 = por %p645, %p646
    %p648 = scmp.ne.s32.totalorder %s636, %s637
    %p649 = scmp.eq.s32.totalorder %s81, 1
    %p650 = por %p648, %p649
    %p652 = scmp.ne.s32.totalorder %s637, %s651
    %p653 = scmp.eq.s32.totalorder %s81, 0
    %p654 = por %p652, %p653
    %s656 = sadd.s32 %s655, 1
    %p659 = scmp.eq.s32.totalorder %s75, 1
    %p660 = scmp.ne.s32.totalorder %s655, %s657
    %p661 = scmp.eq.s32.totalorder %s75, 0
    %p662 = por %p660, %p661
    %p663 = scmp.ne.s32.totalorder %s655, %s657
    %p664 = scmp.eq.s32.totalorder %s80, 1
    %p665 = por %p663, %p664
    %p666 = scmp.ne.s32.totalorder %s657, %s658
    %p667 = scmp.eq.s32.totalorder %s80, 0
    %p668 = por %p666, %p667
    %p669 = scmp.ne.s32.totalorder %s657, %s658
    %p670 = scmp.eq.s32.totalorder %s81, 1
    %p671 = por %p669, %p670
    %p673 = scmp.ne.s32.totalorder %s658, %s672
    %p674 = scmp.eq.s32.totalorder %s81, 0
    %p675 = por %p673, %p674
    %s677 = sadd.s32 %s676, 1
    %p680 = scmp.eq.s32.totalorder %s75, 1
    %p681 = scmp.ne.s32.totalorder %s676, %s678
    %p682 = scmp.eq.s32.totalorder %s75, 0
    %p683 = por %p681, %p682
    %p684 = scmp.ne.s32.totalorder %s676, %s678
    %p685 = scmp.eq.s32.totalorder %s80, 1
    %p686 = por %p684, %p685
    %p687 = scmp.ne.s32.totalorder %s678, %s679
    %p688 = scmp.eq.s32.totalorder %s80, 0
    %p689 = por %p687, %p688
    %p690 = scmp.ne.s32.totalorder %s678, %s679
    %p691 = scmp.eq.s32.totalorder %s81, 1
    %p692 = por %p690, %p691
    %p694 = scmp.ne.s32.totalorder %s679, %s693
    %p695 = scmp.eq.s32.totalorder %s81, 0
    %p696 = por %p694, %p695
    %s698 = sadd.s32 %s697, 1
    %p701 = scmp.eq.s32.totalorder %s75, 1
    %p702 = scmp.ne.s32.totalorder %s697, %s699
    %p703 = scmp.eq.s32.totalorder %s75, 0
    %p704 = por %p702, %p703
    %p705 = scmp.ne.s32.totalorder %s697, %s699
    %p706 = scmp.eq.s32.totalorder %s80, 1
    %p707 = por %p705, %p706
    %p708 = scmp.ne.s32.totalorder %s699, %s700
    %p709 = scmp.eq.s32.totalorder %s80, 0
    %p710 = por %p708, %p709
    %p711 = scmp.ne.s32.totalorder %s699, %s700
    %p712 = scmp.eq.s32.totalorder %s81, 1
    %p713 = por %p711, %p712
    %p715 = scmp.ne.s32.totalorder %s700, %s714
    %p716 = scmp.eq.s32.totalorder %s81, 0
    %p717 = por %p715, %p716
    %s719 = sadd.s32 %s718, 1
    %p722 = scmp.eq.s32.totalorder %s75, 1
    %p723 = scmp.ne.s32.totalorder %s718, %s720
    %p724 = scmp.eq.s32.totalorder %s75, 0
    %p725 = por %p723, %p724
    %p726 = scmp.ne.s32.totalorder %s718, %s720
    %p727 = scmp.eq.s32.totalorder %s80, 1
    %p728 = por %p726, %p727
    %p729 = scmp.ne.s32.totalorder %s720, %s721
    %p730 = scmp.eq.s32.totalorder %s80, 0
    %p731 = por %p729, %p730
    %p732 = scmp.ne.s32.totalorder %s720, %s721
    %p733 = scmp.eq.s32.totalorder %s81, 1
    %p734 = por %p732, %p733
    %p736 = scmp.ne.s32.totalorder %s721, %s735
    %p737 = scmp.eq.s32.totalorder %s81, 0
    %p738 = por %p736, %p737
    %s740 = sadd.s32 %s739, 1
    %p743 = scmp.eq.s32.totalorder %s75, 1
    %p744 = scmp.ne.s32.totalorder %s739, %s741
    %p745 = scmp.eq.s32.totalorder %s75, 0
    %p746 = por %p744, %p745
    %p747 = scmp.ne.s32.totalorder %s739, %s741
    %p748 = scmp.eq.s32.totalorder %s80, 1
    %p749 = por %p747, %p748
    %p750 = scmp.ne.s32.totalorder %s741, %s742
    %p751 = scmp.eq.s32.totalorder %s80, 0
    %p752 = por %p750, %p751
    %p753 = scmp.ne.s32.totalorder %s741, %s742
    %p754 = scmp.eq.s32.totalorder %s81, 1
    %p755 = por %p753, %p754
    %p757 = scmp.ne.s32.totalorder %s742, %s756
    %p758 = scmp.eq.s32.totalorder %s81, 0
    %p759 = por %p757, %p758
    %s761 = sadd.s32 %s760, 1
    %p764 = scmp.eq.s32.totalorder %s75, 1
    %p765 = scmp.ne.s32.totalorder %s760, %s762
    %p766 = scmp.eq.s32.totalorder %s75, 0
    %p767 = por %p765, %p766
    %p768 = scmp.ne.s32.totalorder %s760, %s762
    %p769 = scmp.eq.s32.totalorder %s80, 1
    %p770 = por %p768, %p769
    %p771 = scmp.ne.s32.totalorder %s762, %s763
    %p772 = scmp.eq.s32.totalorder %s80, 0
    %p773 = por %p771, %p772
    %p774 = scmp.ne.s32.totalorder %s762, %s763
    %p775 = scmp.eq.s32.totalorder %s81, 1
    %p776 = por %p774, %p775
    %p778 = scmp.ne.s32.totalorder %s763, %s777
    %p779 = scmp.eq.s32.totalorder %s81, 0
    %p780 = por %p778, %p779
    %s782 = sadd.s32 %s781, 1
    %p785 = scmp.eq.s32.totalorder %s75, 1
    %p786 = scmp.ne.s32.totalorder %s781, %s783
    %p787 = scmp.eq.s32.totalorder %s75, 0
    %p788 = por %p786, %p787
    %p789 = scmp.ne.s32.totalorder %s781, %s783
    %p790 = scmp.eq.s32.totalorder %s80, 1
    %p791 = por %p789, %p790
    %p792 = scmp.ne.s32.totalorder %s783, %s784
    %p793 = scmp.eq.s32.totalorder %s80, 0
    %p794 = por %p792, %p793
    %p795 = scmp.ne.s32.totalorder %s783, %s784
    %p796 = scmp.eq.s32.totalorder %s81, 1
    %p797 = por %p795, %p796
    %p799 = scmp.ne.s32.totalorder %s784, %s798
    %p800 = scmp.eq.s32.totalorder %s81, 0
    %p801 = por %p799, %p800
    %s802 = ssub.s32 %s75, %s82
    %p803 = scmp.eq.s32.totalorder %s802, 0
    %s805 = sadd.s32 %s804, 1
    %s806 = scalar_select %p803, %s804, %s805
    %p809 = pneg %p803
    %p810 = scmp.eq.s32.totalorder %s75, 1
    %p811 = por %p809, %p810
    %p812 = scmp.ne.s32.totalorder %s804, %s807
    %p813 = scmp.eq.s32.totalorder %s75, 0
    %p814 = por %p812, %p813
    %p815 = scmp.ne.s32.totalorder %s804, %s807
    %p816 = scmp.eq.s32.totalorder %s80, 1
    %p817 = por %p815, %p816
    %p818 = scmp.ne.s32.totalorder %s807, %s808
    %p819 = scmp.eq.s32.totalorder %s80, 0
    %p820 = por %p818, %p819
    %p821 = scmp.ne.s32.totalorder %s807, %s808
    %p822 = scmp.eq.s32.totalorder %s81, 1
    %p823 = por %p821, %p822
    %p825 = scmp.ne.s32.totalorder %s808, %s824
    %p826 = scmp.eq.s32.totalorder %s81, 0
    %p827 = por %p825, %p826
    %p828 = scmp.le.s32.totalorder 1, %s75
    %p829 = scmp.lt.s32.totalorder %s75, 3
    %p830 = pnand %p828, %p829
    %p831 = pneg %p830
    // Predicated region
    $region9: #{kbblock_forward.1} parent=5 // pred_check
      _
    $region10: #{kbblock_forward.1} parent=5 // pred_check_branch
      %833 = sbr.rel (%p830) target = $region12
    $region11: #{kbblock_forward.1} parent=5 // pred_region
      %s834 = ssub.s32 %s75, 1
      // Predicated region
      $region13: #{kbblock_forward.1} parent=11 // pred_check
        %p835 = pneg %p122
      $region14: #{kbblock_forward.1} parent=11 // pred_check_branch
        %837 = sbr.rel (%p835) target = $region16
      $region15: #{kbblock_forward.1} parent=11 // pred_region
        _
      $region16: #{kbblock_forward.1} parent=11 // pred_fallthru
        _
      // Predicated region
      $region17: #{kbblock_forward.1} parent=11 // pred_check
        %p838 = pneg %p143
      $region18: #{kbblock_forward.1} parent=11 // pred_check_branch
        %840 = sbr.rel (%p838) target = $region20
      $region19: #{kbblock_forward.1} parent=11 // pred_region
        _
      $region20: #{kbblock_forward.1} parent=11 // pred_fallthru
        _
      // Predicated region
      $region21: #{kbblock_forward.1} parent=11 // pred_check
        %p841 = pneg %p164
      $region22: #{kbblock_forward.1} parent=11 // pred_check_branch
        %843 = sbr.rel (%p841) target = $region24
      $region23: #{kbblock_forward.1} parent=11 // pred_region
        _
      $region24: #{kbblock_forward.1} parent=11 // pred_fallthru
        _
      // Predicated region
      $region25: #{kbblock_forward.1} parent=11 // pred_check
        %p844 = pneg %p185
      $region26: #{kbblock_forward.1} parent=11 // pred_check_branch
        %846 = sbr.rel (%p844) target = $region28
      $region27: #{kbblock_forward.1} parent=11 // pred_region
        _
      $region28: #{kbblock_forward.1} parent=11 // pred_fallthru
        _
      // Predicated region
      $region29: #{kbblock_forward.1} parent=11 // pred_check
        %p847 = pneg %p206
      $region30: #{kbblock_forward.1} parent=11 // pred_check_branch
        %849 = sbr.rel (%p847) target = $region32
      $region31: #{kbblock_forward.1} parent=11 // pred_region
        _
      $region32: #{kbblock_forward.1} parent=11 // pred_fallthru
        _
      // Predicated region
      $region33: #{kbblock_forward.1} parent=11 // pred_check
        %p850 = pneg %p227
      $region34: #{kbblock_forward.1} parent=11 // pred_check_branch
        %852 = sbr.rel (%p850) target = $region36
      $region35: #{kbblock_forward.1} parent=11 // pred_region
        _
      $region36: #{kbblock_forward.1} parent=11 // pred_fallthru
        _
      // Predicated region
      $region37: #{kbblock_forward.1} parent=11 // pred_check
        %p853 = pneg %p248
      $region38: #{kbblock_forward.1} parent=11 // pred_check_branch
        %855 = sbr.rel (%p853) target = $region40
      $region39: #{kbblock_forward.1} parent=11 // pred_region
        _
      $region40: #{kbblock_forward.1} parent=11 // pred_fallthru
        _
      // Predicated region
      $region41: #{kbblock_forward.1} parent=11 // pred_check
        %p856 = pneg %p269
      $region42: #{kbblock_forward.1} parent=11 // pred_check_branch
        %858 = sbr.rel (%p856) target = $region44
      $region43: #{kbblock_forward.1} parent=11 // pred_region
        _
      $region44: #{kbblock_forward.1} parent=11 // pred_fallthru
        _
      // Predicated region
      $region45: #{kbblock_forward.1} parent=11 // pred_check
        %p859 = pneg %p290
      $region46: #{kbblock_forward.1} parent=11 // pred_check_branch
        %861 = sbr.rel (%p859) target = $region48
      $region47: #{kbblock_forward.1} parent=11 // pred_region
        _
      $region48: #{kbblock_forward.1} parent=11 // pred_fallthru
        _
      // Predicated region
      $region49: #{kbblock_forward.1} parent=11 // pred_check
        %p862 = pneg %p311
      $region50: #{kbblock_forward.1} parent=11 // pred_check_branch
        %864 = sbr.rel (%p862) target = $region52
      $region51: #{kbblock_forward.1} parent=11 // pred_region
        _
      $region52: #{kbblock_forward.1} parent=11 // pred_fallthru
        _
      // Predicated region
      $region53: #{kbblock_forward.1} parent=11 // pred_check
        %p865 = pneg %p332
      $region54: #{kbblock_forward.1} parent=11 // pred_check_branch
        %867 = sbr.rel (%p865) target = $region56
      $region55: #{kbblock_forward.1} parent=11 // pred_region
        _
      $region56: #{kbblock_forward.1} parent=11 // pred_fallthru
        _
      // Predicated region
      $region57: #{kbblock_forward.1} parent=11 // pred_check
        %p868 = pneg %p353
      $region58: #{kbblock_forward.1} parent=11 // pred_check_branch
        %870 = sbr.rel (%p868) target = $region60
      $region59: #{kbblock_forward.1} parent=11 // pred_region
        _
      $region60: #{kbblock_forward.1} parent=11 // pred_fallthru
        _
      // Predicated region
      $region61: #{kbblock_forward.1} parent=11 // pred_check
        %p871 = pneg %p374
      $region62: #{kbblock_forward.1} parent=11 // pred_check_branch
        %873 = sbr.rel (%p871) target = $region64
      $region63: #{kbblock_forward.1} parent=11 // pred_region
        _
      $region64: #{kbblock_forward.1} parent=11 // pred_fallthru
        _
      // Predicated region
      $region65: #{kbblock_forward.1} parent=11 // pred_check
        %p874 = pneg %p395
      $region66: #{kbblock_forward.1} parent=11 // pred_check_branch
        %876 = sbr.rel (%p874) target = $region68
      $region67: #{kbblock_forward.1} parent=11 // pred_region
        _
      $region68: #{kbblock_forward.1} parent=11 // pred_fallthru
        _
      // Predicated region
      $region69: #{kbblock_forward.1} parent=11 // pred_check
        %p877 = pneg %p416
      $region70: #{kbblock_forward.1} parent=11 // pred_check_branch
        %879 = sbr.rel (%p877) target = $region72
      $region71: #{kbblock_forward.1} parent=11 // pred_region
        _
      $region72: #{kbblock_forward.1} parent=11 // pred_fallthru
        _
      // Predicated region
      $region73: #{kbblock_forward.1} parent=11 // pred_check
        %p880 = pneg %p437
      $region74: #{kbblock_forward.1} parent=11 // pred_check_branch
        %882 = sbr.rel (%p880) target = $region76
      $region75: #{kbblock_forward.1} parent=11 // pred_region
        _
      $region76: #{kbblock_forward.1} parent=11 // pred_fallthru
        _
      // Predicated region
      $region77: #{kbblock_forward.1} parent=11 // pred_check
        %p883 = pneg %p458
      $region78: #{kbblock_forward.1} parent=11 // pred_check_branch
        %885 = sbr.rel (%p883) target = $region80
      $region79: #{kbblock_forward.1} parent=11 // pred_region
        _
      $region80: #{kbblock_forward.1} parent=11 // pred_fallthru
        _
      // Predicated region
      $region81: #{kbblock_forward.1} parent=11 // pred_check
        %p886 = pneg %p479
      $region82: #{kbblock_forward.1} parent=11 // pred_check_branch
        %888 = sbr.rel (%p886) target = $region84
      $region83: #{kbblock_forward.1} parent=11 // pred_region
        _
      $region84: #{kbblock_forward.1} parent=11 // pred_fallthru
        _
      // Predicated region
      $region85: #{kbblock_forward.1} parent=11 // pred_check
        %p889 = pneg %p500
      $region86: #{kbblock_forward.1} parent=11 // pred_check_branch
        %891 = sbr.rel (%p889) target = $region88
      $region87: #{kbblock_forward.1} parent=11 // pred_region
        _
      $region88: #{kbblock_forward.1} parent=11 // pred_fallthru
        _
      // Predicated region
      $region89: #{kbblock_forward.1} parent=11 // pred_check
        %p892 = pneg %p521
      $region90: #{kbblock_forward.1} parent=11 // pred_check_branch
        %894 = sbr.rel (%p892) target = $region92
      $region91: #{kbblock_forward.1} parent=11 // pred_region
        _
      $region92: #{kbblock_forward.1} parent=11 // pred_fallthru
        _
      // Predicated region
      $region93: #{kbblock_forward.1} parent=11 // pred_check
        %p895 = pneg %p542
      $region94: #{kbblock_forward.1} parent=11 // pred_check_branch
        %897 = sbr.rel (%p895) target = $region96
      $region95: #{kbblock_forward.1} parent=11 // pred_region
        _
      $region96: #{kbblock_forward.1} parent=11 // pred_fallthru
        _
      // Predicated region
      $region97: #{kbblock_forward.1} parent=11 // pred_check
        %p898 = pneg %p563
      $region98: #{kbblock_forward.1} parent=11 // pred_check_branch
        %900 = sbr.rel (%p898) target = $region100
      $region99: #{kbblock_forward.1} parent=11 // pred_region
        _
      $region100: #{kbblock_forward.1} parent=11 // pred_fallthru
        _
      // Predicated region
      $region101: #{kbblock_forward.1} parent=11 // pred_check
        %p901 = pneg %p584
      $region102: #{kbblock_forward.1} parent=11 // pred_check_branch
        %903 = sbr.rel (%p901) target = $region104
      $region103: #{kbblock_forward.1} parent=11 // pred_region
        _
      $region104: #{kbblock_forward.1} parent=11 // pred_fallthru
        _
      // Predicated region
      $region105: #{kbblock_forward.1} parent=11 // pred_check
        %p904 = pneg %p605
      $region106: #{kbblock_forward.1} parent=11 // pred_check_branch
        %906 = sbr.rel (%p904) target = $region108
      $region107: #{kbblock_forward.1} parent=11 // pred_region
        _
      $region108: #{kbblock_forward.1} parent=11 // pred_fallthru
        _
      // Predicated region
      $region109: #{kbblock_forward.1} parent=11 // pred_check
        %p907 = pneg %p626
      $region110: #{kbblock_forward.1} parent=11 // pred_check_branch
        %909 = sbr.rel (%p907) target = $region112
      $region111: #{kbblock_forward.1} parent=11 // pred_region
        _
      $region112: #{kbblock_forward.1} parent=11 // pred_fallthru
        _
      // Predicated region
      $region113: #{kbblock_forward.1} parent=11 // pred_check
        %p910 = pneg %p647
      $region114: #{kbblock_forward.1} parent=11 // pred_check_branch
        %912 = sbr.rel (%p910) target = $region116
      $region115: #{kbblock_forward.1} parent=11 // pred_region
        _
      $region116: #{kbblock_forward.1} parent=11 // pred_fallthru
        _
      // Predicated region
      $region117: #{kbblock_forward.1} parent=11 // pred_check
        %p913 = pneg %p668
      $region118: #{kbblock_forward.1} parent=11 // pred_check_branch
        %915 = sbr.rel (%p913) target = $region120
      $region119: #{kbblock_forward.1} parent=11 // pred_region
        _
      $region120: #{kbblock_forward.1} parent=11 // pred_fallthru
        _
      // Predicated region
      $region121: #{kbblock_forward.1} parent=11 // pred_check
        %p916 = pneg %p689
      $region122: #{kbblock_forward.1} parent=11 // pred_check_branch
        %918 = sbr.rel (%p916) target = $region124
      $region123: #{kbblock_forward.1} parent=11 // pred_region
        _
      $region124: #{kbblock_forward.1} parent=11 // pred_fallthru
        _
      // Predicated region
      $region125: #{kbblock_forward.1} parent=11 // pred_check
        %p919 = pneg %p710
      $region126: #{kbblock_forward.1} parent=11 // pred_check_branch
        %921 = sbr.rel (%p919) target = $region128
      $region127: #{kbblock_forward.1} parent=11 // pred_region
        _
      $region128: #{kbblock_forward.1} parent=11 // pred_fallthru
        _
      // Predicated region
      $region129: #{kbblock_forward.1} parent=11 // pred_check
        %p922 = pneg %p731
      $region130: #{kbblock_forward.1} parent=11 // pred_check_branch
        %924 = sbr.rel (%p922) target = $region132
      $region131: #{kbblock_forward.1} parent=11 // pred_region
        _
      $region132: #{kbblock_forward.1} parent=11 // pred_fallthru
        _
      // Predicated region
      $region133: #{kbblock_forward.1} parent=11 // pred_check
        %p925 = pneg %p752
      $region134: #{kbblock_forward.1} parent=11 // pred_check_branch
        %927 = sbr.rel (%p925) target = $region136
      $region135: #{kbblock_forward.1} parent=11 // pred_region
        _
      $region136: #{kbblock_forward.1} parent=11 // pred_fallthru
        _
      // Predicated region
      $region137: #{kbblock_forward.1} parent=11 // pred_check
        %p928 = pneg %p773
      $region138: #{kbblock_forward.1} parent=11 // pred_check_branch
        %930 = sbr.rel (%p928) target = $region140
      $region139: #{kbblock_forward.1} parent=11 // pred_region
        _
      $region140: #{kbblock_forward.1} parent=11 // pred_fallthru
        _
      // Predicated region
      $region141: #{kbblock_forward.1} parent=11 // pred_check
        %p931 = pneg %p794
      $region142: #{kbblock_forward.1} parent=11 // pred_check_branch
        %933 = sbr.rel (%p931) target = $region144
      $region143: #{kbblock_forward.1} parent=11 // pred_region
        _
      $region144: #{kbblock_forward.1} parent=11 // pred_fallthru
        _
    $region12: #{kbblock_forward.1} parent=5 // pred_fallthru
      _
    %p934 = scmp.lt.s32.totalorder %s75, 2
    // Predicated region
    $region145: #{kbblock_forward.1} parent=5 // pred_check
      %p935 = pneg %p934
    $region146: #{kbblock_forward.1} parent=5 // pred_check_branch
      %937 = sbr.rel (%p935) target = $region148
    $region147: #{kbblock_forward.1} parent=5 // pred_region
      // Predicated region
      $region149: #{kbblock_forward.1} parent=147 // pred_check
        %p938 = pneg %p95
      $region150: #{kbblock_forward.1} parent=147 // pred_check_branch
        %940 = sbr.rel (%p938) target = $region152
      $region151: #{kbblock_forward.1} parent=147 // pred_region
        %p941 = scmp.lt.s32.totalorder %s75, 1
        %s942 = scalar_select %p941, %s75, 1
        %s943 = smul.addr %s942, 2
        %s944 = smul.addr %s943, 8
        %s945 = scalar_lea.vmem %s1, %s944
      $region152: #{kbblock_forward.1} parent=147 // pred_fallthru
        _
    $region148: #{kbblock_forward.1} parent=5 // pred_fallthru
      _
    %p946 = scmp.le.s32.totalorder 1, %s75
    %p947 = scmp.lt.s32.totalorder %s75, 3
    %p948 = pnand %p946, %p947
    %p949 = pneg %p948
    // Predicated region
    $region153: #{kbblock_forward.1} parent=5 // pred_check
      _
    $region154: #{kbblock_forward.1} parent=5 // pred_check_branch
      %951 = sbr.rel (%p948) target = $region156
    $region155: #{kbblock_forward.1} parent=5 // pred_region
      %s952 = ssub.s32 %s75, 1
      %p953 = scmp.lt.s32.totalorder %s80, 1
      %s954 = scalar_select %p953, %s80, 1
      %s955 = smul.addr %s954, 2
      %s956 = smul.addr %s955, 8
      %s957 = scalar_lea.vmem %s1, %s956
      %p958 = pneg %p101
      %p959 = pneg %p98
      %p960 = pneg %p122
      %p961 = pneg %p119
      %p962 = pneg %p143
      %p963 = pneg %p140
      %p964 = pneg %p164
      %p965 = pneg %p161
      %p966 = pneg %p185
      %p967 = pneg %p182
      %p968 = pneg %p206
      %p969 = pneg %p203
      %p970 = pneg %p227
      %p971 = pneg %p224
      %p972 = pneg %p248
      %p973 = pneg %p245
      %p974 = pneg %p269
      %p975 = pneg %p266
      %p976 = pneg %p290
      %p977 = pneg %p287
      %p978 = pneg %p311
      %p979 = pneg %p308
      %p980 = pneg %p332
      %p981 = pneg %p329
      %p982 = pneg %p353
      %p983 = pneg %p350
      %p984 = pneg %p374
      %p985 = pneg %p371
      %p986 = pneg %p395
      %p987 = pneg %p392
      %p988 = pneg %p416
      %p989 = pneg %p413
      %p990 = pneg %p437
      %p991 = pneg %p434
      %p992 = pneg %p458
      %p993 = pneg %p455
      %p994 = pneg %p479
      %p995 = pneg %p476
      %p996 = pneg %p500
      %p997 = pneg %p497
      %p998 = pneg %p521
      %p999 = pneg %p518
      %p1000 = pneg %p542
      %p1001 = pneg %p539
      %p1002 = pneg %p563
      %p1003 = pneg %p560
      %p1004 = pneg %p584
      %p1005 = pneg %p581
      %p1006 = pneg %p605
      %p1007 = pneg %p602
      %p1008 = pneg %p626
      %p1009 = pneg %p623
      %p1010 = pneg %p647
      %p1011 = pneg %p644
      %p1012 = pneg %p668
      %p1013 = pneg %p665
      %p1014 = pneg %p689
      %p1015 = pneg %p686
      %p1016 = pneg %p710
      %p1017 = pneg %p707
      %p1018 = pneg %p731
      %p1019 = pneg %p728
      %p1020 = pneg %p752
      %p1021 = pneg %p749
      %p1022 = pneg %p773
      %p1023 = pneg %p770
      %p1024 = pneg %p794
      %p1025 = pneg %p791
      %p1026 = pneg %p820
      %p1027 = pneg %p817
      %p1028 = scmp.lt.s32.totalorder %s80, 1
      %s1029 = scalar_select %p1028, %s80, 1
      %s1030 = smul.addr %s1029, 2
      %s1031 = smul.addr %s1030, 8
      %s1032 = scalar_lea.vmem %s69, %s1031
      %p1033 = scmp.lt.s32.totalorder %s80, 1
      %s1034 = scalar_select %p1033, %s80, 1
      %s1035 = smul.addr %s1034, 2
      %s1036 = smul.addr %s1035, 8
      %s1037 = scalar_lea.vmem %s1, %s1036
      %p1038 = scmp.lt.s32.totalorder %s80, 1
      %s1039 = scalar_select %p1038, %s80, 1
      %s1040 = smul.addr %s1039, 2
      %s1041 = smul.addr %s1040, 8
      %s1042 = scalar_lea.vmem %s69, %s1041
      %v1043 = vld [vmem:[%s1037] sm:$0xff]
      %v1044 = vld [vmem:[%s1037 + $0x8] sm:$0xff]
      %v1045 = vld [vmem:[%s3] sm:$0xff]
      %v1046 = vld [vmem:[%s3 + $0x8] sm:$0xff]
      %v1047 = vld [vmem:[%s3 + $0x10] sm:$0x1]
      %v1048 = vld [vmem:[%s3 + $0x18] sm:$0x1]
      %v1049 = vrot.slane %v1043, 4
      %v1050 = vadd.f32 %v1043, %v1049
      %v1051 = vrot.slane %v1050, 2
      %v1052 = vadd.f32 %v1050, %v1051
      %v1053 = vrot.slane %v1052, 1
      %v1054 = vadd.f32 %v1052, %v1053
      %v1055 = vrot.slane %v1044, 4
      %v1056 = vadd.f32 %v1044, %v1055
      %v1057 = vrot.slane %v1056, 2
      %v1058 = vadd.f32 %v1056, %v1057
      %v1059 = vrot.slane %v1058, 1
      %v1060 = vadd.f32 %v1058, %v1059
      %v1061 = vrcp.pop 8.0
      %v1062 = vmul.f32 %v1054, %v1061
      %v1063 = vmul.f32 %v1060, %v1061
      %v1064 = vsub.f32 %v1043, %v1062
      %v1065 = vsub.f32 %v1044, %v1063
      %v1066 = vmul.f32 %v1064, %v1064
      %v1067 = vmul.f32 %v1065, %v1065
      %v1068 = vrot.slane %v1066, 4
      %v1069 = vadd.f32 %v1066, %v1068
      %v1070 = vrot.slane %v1069, 2
      %v1071 = vadd.f32 %v1069, %v1070
      %v1072 = vrot.slane %v1071, 1
      %v1073 = vadd.f32 %v1071, %v1072
      %v1074 = vrot.slane %v1067, 4
      %v1075 = vadd.f32 %v1067, %v1074
      %v1076 = vrot.slane %v1075, 2
      %v1077 = vadd.f32 %v1075, %v1076
      %v1078 = vrot.slane %v1077, 1
      %v1079 = vadd.f32 %v1077, %v1078
      %v1080 = vmul.f32 %v1073, %v1061
      %v1081 = vmul.f32 %v1079, %v1061
      %v1082 = vadd.f32 %v1080, 1e-06
      %v1083 = vadd.f32 %v1081, 1e-06
      %v1084 = vrsqrt.pop %v1082
      %v1085 = vrsqrt.pop %v1083
      %v1086 = vmul.f32 %v1064, %v1084
      %v1087 = vmul.f32 %v1065, %v1085
      %v1088 = vld [vmem:[%s5] sm:$0xff]
      %1090 = vset.pattern.permute.xlu0 0
      %1091 = vperm.xlu0 %1090, %v1088
      %v1092 = vpop.permute.xlu0 %1091
      %v1094 = vmul.f32 %v1086, %v1092
      %v1095 = vmul.f32 %v1087, %v1092
      %v1096 = vld [vmem:[%s7] sm:$0xff]
      %1098 = vset.pattern.permute.xlu0 0
      %1099 = vperm.xlu0 %1098, %v1096
      %v1100 = vpop.permute.xlu0 %1099
      %v1102 = vadd.f32 %v1094, %v1100
      %v1103 = vadd.f32 %v1095, %v1100
      %v1104 = vld [vmem:[%s9] sm:$0xff]
      %vm1105 = vcmask 64512
      %v1107 = vsel %vm1105, %v1104, 0
      %1109 = vmatprep.subr.mxu0 0.0
      %1110 = vmatpush1.msra.mxu0 0.0
      %1111 = vmatprep.subr.mxu0 0.0
      %1112 = vmatpush1.msra.mxu0 0.0
      %1113 = vmatprep.subr.mxu0 0.0
      %1114 = vmatpush1.msra.mxu0 0.0
      %1115 = vmatprep.subr.mxu0 0.0
      %1116 = vmatpush1.msra.mxu0 0.0
      %1117 = vmatprep.subr.mxu0 0.0
      %1118 = vmatpush1.msra.mxu0 0.0
      %1119 = vmatprep.subr.mxu0 0.0
      %1120 = vmatpush1.msra.mxu0 0.0
      %1121 = vmatprep.subr.mxu0 0.0
      %1122 = vmatpush1.msra.mxu0 0.0
      %1123 = vmatprep.subr.mxu0 0.0
      %1124 = vmatpush1.msra.mxu0 0.0
      %1125 = vmatprep.subr.mxu0 0.0
      %1126 = vmatpush1.msra.mxu0 0.0
      %1127 = vmatprep.subr.mxu0 0.0
      %1128 = vmatpush1.msra.mxu0 0.0
      %1129 = vmatprep.subr.mxu0 0.0
      %1130 = vmatpush1.msra.mxu0 0.0
      %1131 = vmatprep.subr.mxu0 0.0
      %1132 = vmatpush1.msra.mxu0 0.0
      %1133 = vmatprep.subr.mxu0 0.0
      %1134 = vmatpush1.msra.mxu0 0.0
      %1135 = vmatprep.subr.mxu0 0.0
      %1136 = vmatpush1.msra.mxu0 0.0
      %1137 = vmatprep.subr.mxu0 0.0
      %1138 = vmatpush1.msra.mxu0 0.0
      %1139 = vmatprep.subr.mxu0 %v1103
      %1140 = vmatpush1.msra.mxu0 %v1102
      %1141 = vmatprep.subr.mxu0 0.0
      %1142 = vmatpush2.msra.mxu0 0.0
      %1143 = vmatprep.subr.mxu0 0.0
      %1144 = vmatpush2.msra.mxu0 0.0
      %1145 = vmatprep.subr.mxu0 0.0
      %1146 = vmatpush2.msra.mxu0 0.0
      %1147 = vmatprep.subr.mxu0 0.0
      %1148 = vmatpush2.msra.mxu0 0.0
      %1149 = vmatprep.subr.mxu0 0.0
      %1150 = vmatpush2.msra.mxu0 0.0
      %1151 = vmatprep.subr.mxu0 0.0
      %1152 = vmatpush2.msra.mxu0 0.0
      %1153 = vmatprep.subr.mxu0 0.0
      %1154 = vmatpush2.msra.mxu0 0.0
      %1155 = vmatprep.subr.mxu0 0.0
      %1156 = vmatpush2.msra.mxu0 0.0
      %1157 = vmatprep.subr.mxu0 0.0
      %1158 = vmatpush2.msra.mxu0 0.0
      %1159 = vmatprep.subr.mxu0 0.0
      %1160 = vmatpush2.msra.mxu0 0.0
      %1161 = vmatprep.subr.mxu0 0.0
      %1162 = vmatpush2.msra.mxu0 0.0
      %1163 = vmatprep.subr.mxu0 0.0
      %1164 = vmatpush2.msra.mxu0 0.0
      %1165 = vmatprep.subr.mxu0 0.0
      %1166 = vmatpush2.msra.mxu0 0.0
      %1167 = vmatprep.subr.mxu0 0.0
      %1168 = vmatpush2.msra.mxu0 0.0
      %1169 = vmatprep.subr.mxu0 0.0
      %1170 = vmatpush2.msra.mxu0 0.0
      %1171 = vmatprep.subr.mxu0 0.0
      %1172 = vmatpush2.msra.mxu0 0.0
      %1173 = vmatprep.mubr.f32.mxu0 0.0
      %1174 = vmatmul.mubr.f32.gmra.mxu0 %v1107
      %v1175 = vpop.f32.mrf.mxu0
      %v1176 = vadd.f32 0.0, %v1175
      %v1177 = vpop.f32.mrf.mxu0
      %v1178 = vadd.f32 0.0, %v1177
      %1179 = vdwg.mxu0
      %v1180 = vadd.f32 %v1176, %v1178
      %1181 = vadd.xlane.f32.xlu0 %v1180
      %v1182 = vpop.xlane.xlu0 %1181
      %v1183 = vrcp.pop 256.0
      %v1184 = vmul.f32 %v1182, %v1183
      %v1185 = vld [vmem:[%s11] sm:$0xff]
      %v1186 = vadd.f32 %v1184, %v1185
      %v1187 = vld [vmem:[%s13] sm:$0xff]
      %v1188 = vld [vmem:[%s15] sm:$0xff]
      %1190 = vset.pattern.permute.xlu0 0
      %1191 = vperm.xlu0 %1190, %v1188
      %v1192 = vpop.permute.xlu0 %1191
      %v1195 = vsel %vm1105, %v1187, 0
      %1197 = vmatprep.subr.mxu0 0.0
      %1198 = vmatpush1.msra.mxu0 0.0
      %1199 = vmatprep.subr.mxu0 0.0
      %1200 = vmatpush1.msra.mxu0 0.0
      %1201 = vmatprep.subr.mxu0 0.0
      %1202 = vmatpush1.msra.mxu0 0.0
      %1203 = vmatprep.subr.mxu0 0.0
      %1204 = vmatpush1.msra.mxu0 0.0
      %1205 = vmatprep.subr.mxu0 0.0
      %1206 = vmatpush1.msra.mxu0 0.0
      %1207 = vmatprep.subr.mxu0 0.0
      %1208 = vmatpush1.msra.mxu0 0.0
      %1209 = vmatprep.subr.mxu0 0.0
      %1210 = vmatpush1.msra.mxu0 0.0
      %1211 = vmatprep.subr.mxu0 0.0
      %1212 = vmatpush1.msra.mxu0 0.0
      %1213 = vmatprep.subr.mxu0 0.0
      %1214 = vmatpush1.msra.mxu0 0.0
      %1215 = vmatprep.subr.mxu0 0.0
      %1216 = vmatpush1.msra.mxu0 0.0
      %1217 = vmatprep.subr.mxu0 0.0
      %1218 = vmatpush1.msra.mxu0 0.0
      %1219 = vmatprep.subr.mxu0 0.0
      %1220 = vmatpush1.msra.mxu0 0.0
      %1221 = vmatprep.subr.mxu0 0.0
      %1222 = vmatpush1.msra.mxu0 0.0
      %1223 = vmatprep.subr.mxu0 0.0
      %1224 = vmatpush1.msra.mxu0 0.0
      %1225 = vmatprep.subr.mxu0 0.0
      %1226 = vmatpush1.msra.mxu0 0.0
      %1227 = vmatprep.subr.mxu0 %v1103
      %1228 = vmatpush1.msra.mxu0 %v1102
      %1229 = vmatprep.subr.mxu0 0.0
      %1230 = vmatpush2.msra.mxu0 0.0
      %1231 = vmatprep.subr.mxu0 0.0
      %1232 = vmatpush2.msra.mxu0 0.0
      %1233 = vmatprep.subr.mxu0 0.0
      %1234 = vmatpush2.msra.mxu0 0.0
      %1235 = vmatprep.subr.mxu0 0.0
      %1236 = vmatpush2.msra.mxu0 0.0
      %1237 = vmatprep.subr.mxu0 0.0
      %1238 = vmatpush2.msra.mxu0 0.0
      %1239 = vmatprep.subr.mxu0 0.0
      %1240 = vmatpush2.msra.mxu0 0.0
      %1241 = vmatprep.subr.mxu0 0.0
      %1242 = vmatpush2.msra.mxu0 0.0
      %1243 = vmatprep.subr.mxu0 0.0
      %1244 = vmatpush2.msra.mxu0 0.0
      %1245 = vmatprep.subr.mxu0 0.0
      %1246 = vmatpush2.msra.mxu0 0.0
      %1247 = vmatprep.subr.mxu0 0.0
      %1248 = vmatpush2.msra.mxu0 0.0
      %1249 = vmatprep.subr.mxu0 0.0
      %1250 = vmatpush2.msra.mxu0 0.0
      %1251 = vmatprep.subr.mxu0 0.0
      %1252 = vmatpush2.msra.mxu0 0.0
      %1253 = vmatprep.subr.mxu0 0.0
      %1254 = vmatpush2.msra.mxu0 0.0
      %1255 = vmatprep.subr.mxu0 0.0
      %1256 = vmatpush2.msra.mxu0 0.0
      %1257 = vmatprep.subr.mxu0 0.0
      %1258 = vmatpush2.msra.mxu0 0.0
      %1259 = vmatprep.subr.mxu0 0.0
      %1260 = vmatpush2.msra.mxu0 0.0
      %1261 = vmatprep.mubr.f32.mxu0 0.0
      %1262 = vmatmul.mubr.f32.gmra.mxu0 %v1195
      %v1263 = vpop.f32.mrf.mxu0
      %v1264 = vadd.f32 %v1192, %v1263
      %v1265 = vpop.f32.mrf.mxu0
      %v1266 = vadd.f32 %v1192, %v1265
      %1267 = vdwg.mxu0
      %v1268 = vld [vmem:[%s17] sm:$0xff]
      %v1269 = vld [vmem:[%s19] sm:$0xff]
      %1271 = vrot.lane.b32.xlu0 %v1266, 17
      %v1272 = vpop.permute.xlu0 %1271
      %1275 = vrot.lane.b32.xlu0 %v1264, 17
      %v1276 = vpop.permute.xlu0 %1275
      %vm1277 = vcmask 138240
      %v1278 = vsel %vm1277, %v1276, %v1272
      %v1281 = vsel %vm1277, %v1272, %v1276
      %v1282 = vlaneseq
      %v1283 = vshrl.u32 %v1282, 7
      %v1284 = vsub.s32 0, %v1283
      %v1285 = vrot.slane %v1045, %v1284
      %v1286 = vlaneseq
      %v1287 = vshrl.u32 %v1286, 7
      %v1288 = vsub.s32 0, %v1287
      %v1289 = vrot.slane %v1046, %v1288
      %v1290 = vmul.f32 %v1281, %v1285
      %v1291 = vmul.f32 %v1278, %v1289
      %1292 = vrot.lane.b32.xlu0 %v1266, 16
      %v1293 = vpop.permute.xlu0 %1292
      %1295 = vrot.lane.b32.xlu0 %v1264, 16
      %v1296 = vpop.permute.xlu0 %1295
      %vm1297 = vcmask 130048
      %v1298 = vsel %vm1297, %v1296, %v1293
      %v1301 = vsel %vm1297, %v1293, %v1296
      %v1302 = vlaneseq
      %v1303 = vshrl.u32 %v1302, 7
      %v1304 = vsub.s32 1, %v1303
      %v1305 = vrot.slane %v1045, %v1304
      %v1306 = vlaneseq
      %v1307 = vshrl.u32 %v1306, 7
      %v1308 = vsub.s32 1, %v1307
      %v1309 = vrot.slane %v1046, %v1308
      %v1310 = vmul.f32 %v1301, %v1305
      %v1311 = vmul.f32 %v1298, %v1309
      %1312 = vrot.lane.b32.xlu0 %v1266, 15
      %v1313 = vpop.permute.xlu0 %1312
      %1315 = vrot.lane.b32.xlu0 %v1264, 15
      %v1316 = vpop.permute.xlu0 %1315
      %vm1317 = vcmask 121856
      %v1318 = vsel %vm1317, %v1316, %v1313
      %v1321 = vsel %vm1317, %v1313, %v1316
      %v1322 = vlaneseq
      %v1323 = vshrl.u32 %v1322, 7
      %v1324 = vsub.s32 2, %v1323
      %v1325 = vrot.slane %v1045, %v1324
      %v1326 = vlaneseq
      %v1327 = vshrl.u32 %v1326, 7
      %v1328 = vsub.s32 2, %v1327
      %v1329 = vrot.slane %v1046, %v1328
      %v1330 = vmul.f32 %v1321, %v1325
      %v1331 = vmul.f32 %v1318, %v1329
      %1332 = vrot.lane.b32.xlu0 %v1266, 1
      %v1333 = vpop.permute.xlu0 %1332
      %1335 = vrot.lane.b32.xlu0 %v1264, 1
      %v1336 = vpop.permute.xlu0 %1335
      %vm1337 = vcmask 7168
      %v1338 = vsel %vm1337, %v1336, %v1333
      %v1341 = vsel %vm1337, %v1333, %v1336
      %v1342 = vlaneseq
      %v1343 = vshrl.u32 %v1342, 7
      %v1344 = vsub.s32 3, %v1343
      %v1345 = vrot.slane %v1045, %v1344
      %v1346 = vlaneseq
      %v1347 = vshrl.u32 %v1346, 7
      %v1348 = vsub.s32 3, %v1347
      %v1349 = vrot.slane %v1046, %v1348
      %v1350 = vmul.f32 %v1341, %v1345
      %v1351 = vmul.f32 %v1338, %v1349
      %1352 = vrot.lane.b32.xlu0 %v1264, 127
      %v1353 = vpop.permute.xlu0 %1352
      %1354 = vrot.lane.b32.xlu0 %v1266, 127
      %v1355 = vpop.permute.xlu0 %1354
      %vm1356 = vcmask 1039360
      %v1357 = vsel %vm1356, %v1353, %v1355
      %v1361 = vsel %vm1356, %v1355, %v1353
      %v1362 = vlaneseq
      %v1363 = vshrl.u32 %v1362, 7
      %v1364 = vsub.s32 5, %v1363
      %v1365 = vrot.slane %v1045, %v1364
      %v1366 = vlaneseq
      %v1367 = vshrl.u32 %v1366, 7
      %v1368 = vsub.s32 5, %v1367
      %v1369 = vrot.slane %v1046, %v1368
      %v1370 = vmul.f32 %v1357, %v1365
      %v1371 = vmul.f32 %v1361, %v1369
      %1372 = vrot.lane.b32.xlu0 %v1264, 113
      %v1373 = vpop.permute.xlu0 %1372
      %1374 = vrot.lane.b32.xlu0 %v1266, 113
      %v1375 = vpop.permute.xlu0 %1374
      %vm1376 = vcmask 924672
      %v1377 = vsel %vm1376, %v1373, %v1375
      %v1381 = vsel %vm1376, %v1375, %v1373
      %v1382 = vlaneseq
      %v1383 = vshrl.u32 %v1382, 7
      %v1384 = vsub.s32 6, %v1383
      %v1385 = vrot.slane %v1045, %v1384
      %v1386 = vlaneseq
      %v1387 = vshrl.u32 %v1386, 7
      %v1388 = vsub.s32 6, %v1387
      %v1389 = vrot.slane %v1046, %v1388
      %v1390 = vmul.f32 %v1377, %v1385
      %v1391 = vmul.f32 %v1381, %v1389
      %1392 = vrot.lane.b32.xlu0 %v1264, 112
      %v1393 = vpop.permute.xlu0 %1392
      %1394 = vrot.lane.b32.xlu0 %v1266, 112
      %v1395 = vpop.permute.xlu0 %1394
      %vm1396 = vcmask 916480
      %v1397 = vsel %vm1396, %v1393, %v1395
      %v1401 = vsel %vm1396, %v1395, %v1393
      %v1402 = vlaneseq
      %v1403 = vshrl.u32 %v1402, 7
      %v1404 = vsub.s32 7, %v1403
      %v1405 = vrot.slane %v1045, %v1404
      %v1406 = vlaneseq
      %v1407 = vshrl.u32 %v1406, 7
      %v1408 = vsub.s32 7, %v1407
      %v1409 = vrot.slane %v1046, %v1408
      %v1410 = vmul.f32 %v1397, %v1405
      %v1411 = vmul.f32 %v1401, %v1409
      %1412 = vrot.lane.b32.xlu0 %v1264, 111
      %v1413 = vpop.permute.xlu0 %1412
      %1414 = vrot.lane.b32.xlu0 %v1266, 111
      %v1415 = vpop.permute.xlu0 %1414
      %vm1416 = vcmask 908288
      %v1417 = vsel %vm1416, %v1413, %v1415
      %v1421 = vsel %vm1416, %v1415, %v1413
      %v1422 = vlaneseq
      %v1423 = vshrl.u32 %v1422, 7
      %v1424 = vsub.s32 0, %v1423
      %v1425 = vrot.slane %v1047, %v1424
      %v1426 = vlaneseq
      %v1427 = vshrl.u32 %v1426, 7
      %v1428 = vsub.s32 0, %v1427
      %v1429 = vrot.slane %v1048, %v1428
      %v1430 = vmul.f32 %v1417, %v1425
      %v1431 = vmul.f32 %v1421, %v1429
      %1433 = vset.pattern.permute.xlu0 0
      %1434 = vperm.xlu0 %1433, %v1269
      %v1435 = vpop.permute.xlu0 %1434
      %v1437 = vadd.f32 %v1435, 0.0
      %1439 = vset.pattern.permute.xlu0 0
      %1440 = vperm.xlu0 %1439, %v1268
      %v1441 = vpop.permute.xlu0 %1440
      %v1443 = vmul.f32 %v1441, %v1290
      %v1444 = vmul.f32 %v1441, %v1291
      %v1445 = vadd.f32 %v1437, %v1443
      %v1446 = vadd.f32 %v1437, %v1444
      %1447 = vset.pattern.permute.xlu0 1
      %1448 = vperm.xlu0 %1447, %v1268
      %v1449 = vpop.permute.xlu0 %1448
      %v1451 = vmul.f32 %v1449, %v1310
      %v1452 = vmul.f32 %v1449, %v1311
      %v1453 = vadd.f32 %v1445, %v1451
      %v1454 = vadd.f32 %v1446, %v1452
      %1455 = vset.pattern.permute.xlu0 2
      %1456 = vperm.xlu0 %1455, %v1268
      %v1457 = vpop.permute.xlu0 %1456
      %v1459 = vmul.f32 %v1457, %v1330
      %v1460 = vmul.f32 %v1457, %v1331
      %v1461 = vadd.f32 %v1453, %v1459
      %v1462 = vadd.f32 %v1454, %v1460
      %1463 = vset.pattern.permute.xlu0 3
      %1464 = vperm.xlu0 %1463, %v1268
      %v1465 = vpop.permute.xlu0 %1464
      %v1467 = vmul.f32 %v1465, %v1350
      %v1468 = vmul.f32 %v1465, %v1351
      %v1469 = vadd.f32 %v1461, %v1467
      %v1470 = vadd.f32 %v1462, %v1468
      %1471 = vset.pattern.permute.xlu0 4
      %1472 = vperm.xlu0 %1471, %v1268
      %v1473 = vpop.permute.xlu0 %1472
      %v1475 = vmul.f32 %v1473, %v1264
      %v1476 = vmul.f32 %v1473, %v1266
      %v1477 = vadd.f32 %v1469, %v1475
      %v1478 = vadd.f32 %v1470, %v1476
      %1479 = vset.pattern.permute.xlu0 5
      %1480 = vperm.xlu0 %1479, %v1268
      %v1481 = vpop.permute.xlu0 %1480
      %v1483 = vmul.f32 %v1481, %v1370
      %v1484 = vmul.f32 %v1481, %v1371
      %v1485 = vadd.f32 %v1477, %v1483
      %v1486 = vadd.f32 %v1478, %v1484
      %1487 = vset.pattern.permute.xlu0 6
      %1488 = vperm.xlu0 %1487, %v1268
      %v1489 = vpop.permute.xlu0 %1488
      %v1491 = vmul.f32 %v1489, %v1390
      %v1492 = vmul.f32 %v1489, %v1391
      %v1493 = vadd.f32 %v1485, %v1491
      %v1494 = vadd.f32 %v1486, %v1492
      %1495 = vset.pattern.permute.xlu0 7
      %1496 = vperm.xlu0 %1495, %v1268
      %v1497 = vpop.permute.xlu0 %1496
      %v1499 = vmul.f32 %v1497, %v1410
      %v1500 = vmul.f32 %v1497, %v1411
      %v1501 = vadd.f32 %v1493, %v1499
      %v1502 = vadd.f32 %v1494, %v1500
      %1503 = vset.pattern.permute.xlu0 8
      %1504 = vperm.xlu0 %1503, %v1268
      %v1505 = vpop.permute.xlu0 %1504
      %v1507 = vmul.f32 %v1505, %v1430
      %v1508 = vmul.f32 %v1505, %v1431
      %v1509 = vadd.f32 %v1501, %v1507
      %v1510 = vadd.f32 %v1502, %v1508
      %v1511 = vld [vmem:[%s21] sm:$0xff]
      %v1512 = vld [vmem:[%s23] sm:$0xff]
      %1514 = vset.pattern.permute.xlu0 0
      %1515 = vperm.xlu0 %1514, %v1512
      %v1516 = vpop.permute.xlu0 %1515
      %v1519 = vsel %vm1105, %v1511, 0
      %1521 = vmatprep.subr.mxu0 0.0
      %1522 = vmatpush1.msra.mxu0 0.0
      %1523 = vmatprep.subr.mxu0 0.0
      %1524 = vmatpush1.msra.mxu0 0.0
      %1525 = vmatprep.subr.mxu0 0.0
      %1526 = vmatpush1.msra.mxu0 0.0
      %1527 = vmatprep.subr.mxu0 0.0
      %1528 = vmatpush1.msra.mxu0 0.0
      %1529 = vmatprep.subr.mxu0 0.0
      %1530 = vmatpush1.msra.mxu0 0.0
      %1531 = vmatprep.subr.mxu0 0.0
      %1532 = vmatpush1.msra.mxu0 0.0
      %1533 = vmatprep.subr.mxu0 0.0
      %1534 = vmatpush1.msra.mxu0 0.0
      %1535 = vmatprep.subr.mxu0 0.0
      %1536 = vmatpush1.msra.mxu0 0.0
      %1537 = vmatprep.subr.mxu0 0.0
      %1538 = vmatpush1.msra.mxu0 0.0
      %1539 = vmatprep.subr.mxu0 0.0
      %1540 = vmatpush1.msra.mxu0 0.0
      %1541 = vmatprep.subr.mxu0 0.0
      %1542 = vmatpush1.msra.mxu0 0.0
      %1543 = vmatprep.subr.mxu0 0.0
      %1544 = vmatpush1.msra.mxu0 0.0
      %1545 = vmatprep.subr.mxu0 0.0
      %1546 = vmatpush1.msra.mxu0 0.0
      %1547 = vmatprep.subr.mxu0 0.0
      %1548 = vmatpush1.msra.mxu0 0.0
      %1549 = vmatprep.subr.mxu0 0.0
      %1550 = vmatpush1.msra.mxu0 0.0
      %1551 = vmatprep.subr.mxu0 %v1103
      %1552 = vmatpush1.msra.mxu0 %v1102
      %1553 = vmatprep.subr.mxu0 0.0
      %1554 = vmatpush2.msra.mxu0 0.0
      %1555 = vmatprep.subr.mxu0 0.0
      %1556 = vmatpush2.msra.mxu0 0.0
      %1557 = vmatprep.subr.mxu0 0.0
      %1558 = vmatpush2.msra.mxu0 0.0
      %1559 = vmatprep.subr.mxu0 0.0
      %1560 = vmatpush2.msra.mxu0 0.0
      %1561 = vmatprep.subr.mxu0 0.0
      %1562 = vmatpush2.msra.mxu0 0.0
      %1563 = vmatprep.subr.mxu0 0.0
      %1564 = vmatpush2.msra.mxu0 0.0
      %1565 = vmatprep.subr.mxu0 0.0
      %1566 = vmatpush2.msra.mxu0 0.0
      %1567 = vmatprep.subr.mxu0 0.0
      %1568 = vmatpush2.msra.mxu0 0.0
      %1569 = vmatprep.subr.mxu0 0.0
      %1570 = vmatpush2.msra.mxu0 0.0
      %1571 = vmatprep.subr.mxu0 0.0
      %1572 = vmatpush2.msra.mxu0 0.0
      %1573 = vmatprep.subr.mxu0 0.0
      %1574 = vmatpush2.msra.mxu0 0.0
      %1575 = vmatprep.subr.mxu0 0.0
      %1576 = vmatpush2.msra.mxu0 0.0
      %1577 = vmatprep.subr.mxu0 0.0
      %1578 = vmatpush2.msra.mxu0 0.0
      %1579 = vmatprep.subr.mxu0 0.0
      %1580 = vmatpush2.msra.mxu0 0.0
      %1581 = vmatprep.subr.mxu0 0.0
      %1582 = vmatpush2.msra.mxu0 0.0
      %1583 = vmatprep.subr.mxu0 0.0
      %1584 = vmatpush2.msra.mxu0 0.0
      %1585 = vmatprep.mubr.f32.mxu0 0.0
      %1586 = vmatmul.mubr.f32.gmra.mxu0 %v1519
      %v1587 = vpop.f32.mrf.mxu0
      %v1588 = vadd.f32 %v1516, %v1587
      %v1589 = vpop.f32.mrf.mxu0
      %v1590 = vadd.f32 %v1516, %v1589
      %1591 = vdwg.mxu0
      %v1592 = vld [vmem:[%s25] sm:$0xff]
      %v1593 = vld [vmem:[%s27] sm:$0xff]
      %1595 = vrot.lane.b32.xlu0 %v1590, 17
      %v1596 = vpop.permute.xlu0 %1595
      %1599 = vrot.lane.b32.xlu0 %v1588, 17
      %v1600 = vpop.permute.xlu0 %1599
      %v1601 = vsel %vm1277, %v1600, %v1596
      %v1604 = vsel %vm1277, %v1596, %v1600
      %v1605 = vmul.f32 %v1604, %v1285
      %v1606 = vmul.f32 %v1601, %v1289
      %1607 = vrot.lane.b32.xlu0 %v1590, 16
      %v1608 = vpop.permute.xlu0 %1607
      %1610 = vrot.lane.b32.xlu0 %v1588, 16
      %v1611 = vpop.permute.xlu0 %1610
      %v1612 = vsel %vm1297, %v1611, %v1608
      %v1615 = vsel %vm1297, %v1608, %v1611
      %v1616 = vmul.f32 %v1615, %v1305
      %v1617 = vmul.f32 %v1612, %v1309
      %1618 = vrot.lane.b32.xlu0 %v1590, 15
      %v1619 = vpop.permute.xlu0 %1618
      %1621 = vrot.lane.b32.xlu0 %v1588, 15
      %v1622 = vpop.permute.xlu0 %1621
      %v1623 = vsel %vm1317, %v1622, %v1619
      %v1626 = vsel %vm1317, %v1619, %v1622
      %v1627 = vmul.f32 %v1626, %v1325
      %v1628 = vmul.f32 %v1623, %v1329
      %1629 = vrot.lane.b32.xlu0 %v1590, 1
      %v1630 = vpop.permute.xlu0 %1629
      %1632 = vrot.lane.b32.xlu0 %v1588, 1
      %v1633 = vpop.permute.xlu0 %1632
      %v1634 = vsel %vm1337, %v1633, %v1630
      %v1637 = vsel %vm1337, %v1630, %v1633
      %v1638 = vmul.f32 %v1637, %v1345
      %v1639 = vmul.f32 %v1634, %v1349
      %1640 = vrot.lane.b32.xlu0 %v1588, 127
      %v1641 = vpop.permute.xlu0 %1640
      %1642 = vrot.lane.b32.xlu0 %v1590, 127
      %v1643 = vpop.permute.xlu0 %1642
      %v1644 = vsel %vm1356, %v1641, %v1643
      %v1648 = vsel %vm1356, %v1643, %v1641
      %v1649 = vmul.f32 %v1644, %v1365
      %v1650 = vmul.f32 %v1648, %v1369
      %1651 = vrot.lane.b32.xlu0 %v1588, 113
      %v1652 = vpop.permute.xlu0 %1651
      %1653 = vrot.lane.b32.xlu0 %v1590, 113
      %v1654 = vpop.permute.xlu0 %1653
      %v1655 = vsel %vm1376, %v1652, %v1654
      %v1659 = vsel %vm1376, %v1654, %v1652
      %v1660 = vmul.f32 %v1655, %v1385
      %v1661 = vmul.f32 %v1659, %v1389
      %1662 = vrot.lane.b32.xlu0 %v1588, 112
      %v1663 = vpop.permute.xlu0 %1662
      %1664 = vrot.lane.b32.xlu0 %v1590, 112
      %v1665 = vpop.permute.xlu0 %1664
      %v1666 = vsel %vm1396, %v1663, %v1665
      %v1670 = vsel %vm1396, %v1665, %v1663
      %v1671 = vmul.f32 %v1666, %v1405
      %v1672 = vmul.f32 %v1670, %v1409
      %1673 = vrot.lane.b32.xlu0 %v1588, 111
      %v1674 = vpop.permute.xlu0 %1673
      %1675 = vrot.lane.b32.xlu0 %v1590, 111
      %v1676 = vpop.permute.xlu0 %1675
      %v1677 = vsel %vm1416, %v1674, %v1676
      %v1681 = vsel %vm1416, %v1676, %v1674
      %v1682 = vmul.f32 %v1677, %v1425
      %v1683 = vmul.f32 %v1681, %v1429
      %1685 = vset.pattern.permute.xlu0 0
      %1686 = vperm.xlu0 %1685, %v1593
      %v1687 = vpop.permute.xlu0 %1686
      %v1689 = vadd.f32 %v1687, 0.0
      %1691 = vset.pattern.permute.xlu0 0
      %1692 = vperm.xlu0 %1691, %v1592
      %v1693 = vpop.permute.xlu0 %1692
      %v1695 = vmul.f32 %v1693, %v1605
      %v1696 = vmul.f32 %v1693, %v1606
      %v1697 = vadd.f32 %v1689, %v1695
      %v1698 = vadd.f32 %v1689, %v1696
      %1699 = vset.pattern.permute.xlu0 1
      %1700 = vperm.xlu0 %1699, %v1592
      %v1701 = vpop.permute.xlu0 %1700
      %v1703 = vmul.f32 %v1701, %v1616
      %v1704 = vmul.f32 %v1701, %v1617
      %v1705 = vadd.f32 %v1697, %v1703
      %v1706 = vadd.f32 %v1698, %v1704
      %1707 = vset.pattern.permute.xlu0 2
      %1708 = vperm.xlu0 %1707, %v1592
      %v1709 = vpop.permute.xlu0 %1708
      %v1711 = vmul.f32 %v1709, %v1627
      %v1712 = vmul.f32 %v1709, %v1628
      %v1713 = vadd.f32 %v1705, %v1711
      %v1714 = vadd.f32 %v1706, %v1712
      %1715 = vset.pattern.permute.xlu0 3
      %1716 = vperm.xlu0 %1715, %v1592
      %v1717 = vpop.permute.xlu0 %1716
      %v1719 = vmul.f32 %v1717, %v1638
      %v1720 = vmul.f32 %v1717, %v1639
      %v1721 = vadd.f32 %v1713, %v1719
      %v1722 = vadd.f32 %v1714, %v1720
      %1723 = vset.pattern.permute.xlu0 4
      %1724 = vperm.xlu0 %1723, %v1592
      %v1725 = vpop.permute.xlu0 %1724
      %v1727 = vmul.f32 %v1725, %v1588
      %v1728 = vmul.f32 %v1725, %v1590
      %v1729 = vadd.f32 %v1721, %v1727
      %v1730 = vadd.f32 %v1722, %v1728
      %1731 = vset.pattern.permute.xlu0 5
      %1732 = vperm.xlu0 %1731, %v1592
      %v1733 = vpop.permute.xlu0 %1732
      %v1735 = vmul.f32 %v1733, %v1649
      %v1736 = vmul.f32 %v1733, %v1650
      %v1737 = vadd.f32 %v1729, %v1735
      %v1738 = vadd.f32 %v1730, %v1736
      %1739 = vset.pattern.permute.xlu0 6
      %1740 = vperm.xlu0 %1739, %v1592
      %v1741 = vpop.permute.xlu0 %1740
      %v1743 = vmul.f32 %v1741, %v1660
      %v1744 = vmul.f32 %v1741, %v1661
      %v1745 = vadd.f32 %v1737, %v1743
      %v1746 = vadd.f32 %v1738, %v1744
      %1747 = vset.pattern.permute.xlu0 7
      %1748 = vperm.xlu0 %1747, %v1592
      %v1749 = vpop.permute.xlu0 %1748
      %v1751 = vmul.f32 %v1749, %v1671
      %v1752 = vmul.f32 %v1749, %v1672
      %v1753 = vadd.f32 %v1745, %v1751
      %v1754 = vadd.f32 %v1746, %v1752
      %1755 = vset.pattern.permute.xlu0 8
      %1756 = vperm.xlu0 %1755, %v1592
      %v1757 = vpop.permute.xlu0 %1756
      %v1759 = vmul.f32 %v1757, %v1682
      %v1760 = vmul.f32 %v1757, %v1683
      %v1761 = vadd.f32 %v1753, %v1759
      %v1762 = vadd.f32 %v1754, %v1760
      %v1763 = vld [vmem:[%s29] sm:$0xff]
      %v1764 = vld [vmem:[%s31] sm:$0xff]
      %1766 = vrot.lane.b32.xlu0 %v1103, 17
      %v1767 = vpop.permute.xlu0 %1766
      %1770 = vrot.lane.b32.xlu0 %v1102, 17
      %v1771 = vpop.permute.xlu0 %1770
      %v1772 = vsel %vm1277, %v1771, %v1767
      %v1775 = vsel %vm1277, %v1767, %v1771
      %v1776 = vmul.f32 %v1775, %v1285
      %v1777 = vmul.f32 %v1772, %v1289
      %1778 = vrot.lane.b32.xlu0 %v1103, 16
      %v1779 = vpop.permute.xlu0 %1778
      %1781 = vrot.lane.b32.xlu0 %v1102, 16
      %v1782 = vpop.permute.xlu0 %1781
      %v1783 = vsel %vm1297, %v1782, %v1779
      %v1786 = vsel %vm1297, %v1779, %v1782
      %v1787 = vmul.f32 %v1786, %v1305
      %v1788 = vmul.f32 %v1783, %v1309
      %1789 = vrot.lane.b32.xlu0 %v1103, 15
      %v1790 = vpop.permute.xlu0 %1789
      %1792 = vrot.lane.b32.xlu0 %v1102, 15
      %v1793 = vpop.permute.xlu0 %1792
      %v1794 = vsel %vm1317, %v1793, %v1790
      %v1797 = vsel %vm1317, %v1790, %v1793
      %v1798 = vmul.f32 %v1797, %v1325
      %v1799 = vmul.f32 %v1794, %v1329
      %1800 = vrot.lane.b32.xlu0 %v1103, 1
      %v1801 = vpop.permute.xlu0 %1800
      %1803 = vrot.lane.b32.xlu0 %v1102, 1
      %v1804 = vpop.permute.xlu0 %1803
      %v1805 = vsel %vm1337, %v1804, %v1801
      %v1808 = vsel %vm1337, %v1801, %v1804
      %v1809 = vmul.f32 %v1808, %v1345
      %v1810 = vmul.f32 %v1805, %v1349
      %1811 = vrot.lane.b32.xlu0 %v1102, 127
      %v1812 = vpop.permute.xlu0 %1811
      %1813 = vrot.lane.b32.xlu0 %v1103, 127
      %v1814 = vpop.permute.xlu0 %1813
      %v1815 = vsel %vm1356, %v1812, %v1814
      %v1819 = vsel %vm1356, %v1814, %v1812
      %v1820 = vmul.f32 %v1815, %v1365
      %v1821 = vmul.f32 %v1819, %v1369
      %1822 = vrot.lane.b32.xlu0 %v1102, 113
      %v1823 = vpop.permute.xlu0 %1822
      %1824 = vrot.lane.b32.xlu0 %v1103, 113
      %v1825 = vpop.permute.xlu0 %1824
      %v1826 = vsel %vm1376, %v1823, %v1825
      %v1830 = vsel %vm1376, %v1825, %v1823
      %v1831 = vmul.f32 %v1826, %v1385
      %v1832 = vmul.f32 %v1830, %v1389
      %1833 = vrot.lane.b32.xlu0 %v1102, 112
      %v1834 = vpop.permute.xlu0 %1833
      %1835 = vrot.lane.b32.xlu0 %v1103, 112
      %v1836 = vpop.permute.xlu0 %1835
      %v1837 = vsel %vm1396, %v1834, %v1836
      %v1841 = vsel %vm1396, %v1836, %v1834
      %v1842 = vmul.f32 %v1837, %v1405
      %v1843 = vmul.f32 %v1841, %v1409
      %1844 = vrot.lane.b32.xlu0 %v1102, 111
      %v1845 = vpop.permute.xlu0 %1844
      %1846 = vrot.lane.b32.xlu0 %v1103, 111
      %v1847 = vpop.permute.xlu0 %1846
      %v1848 = vsel %vm1416, %v1845, %v1847
      %v1852 = vsel %vm1416, %v1847, %v1845
      %v1853 = vmul.f32 %v1848, %v1425
      %v1854 = vmul.f32 %v1852, %v1429
      %1856 = vset.pattern.permute.xlu0 0
      %1857 = vperm.xlu0 %1856, %v1764
      %v1858 = vpop.permute.xlu0 %1857
      %v1860 = vadd.f32 %v1858, 0.0
      %1862 = vset.pattern.permute.xlu0 0
      %1863 = vperm.xlu0 %1862, %v1763
      %v1864 = vpop.permute.xlu0 %1863
      %v1866 = vmul.f32 %v1864, %v1776
      %v1867 = vmul.f32 %v1864, %v1777
      %v1868 = vadd.f32 %v1860, %v1866
      %v1869 = vadd.f32 %v1860, %v1867
      %1870 = vset.pattern.permute.xlu0 1
      %1871 = vperm.xlu0 %1870, %v1763
      %v1872 = vpop.permute.xlu0 %1871
      %v1874 = vmul.f32 %v1872, %v1787
      %v1875 = vmul.f32 %v1872, %v1788
      %v1876 = vadd.f32 %v1868, %v1874
      %v1877 = vadd.f32 %v1869, %v1875
      %1878 = vset.pattern.permute.xlu0 2
      %1879 = vperm.xlu0 %1878, %v1763
      %v1880 = vpop.permute.xlu0 %1879
      %v1882 = vmul.f32 %v1880, %v1798
      %v1883 = vmul.f32 %v1880, %v1799
      %v1884 = vadd.f32 %v1876, %v1882
      %v1885 = vadd.f32 %v1877, %v1883
      %1886 = vset.pattern.permute.xlu0 3
      %1887 = vperm.xlu0 %1886, %v1763
      %v1888 = vpop.permute.xlu0 %1887
      %v1890 = vmul.f32 %v1888, %v1809
      %v1891 = vmul.f32 %v1888, %v1810
      %v1892 = vadd.f32 %v1884, %v1890
      %v1893 = vadd.f32 %v1885, %v1891
      %1894 = vset.pattern.permute.xlu0 4
      %1895 = vperm.xlu0 %1894, %v1763
      %v1896 = vpop.permute.xlu0 %1895
      %v1898 = vmul.f32 %v1896, %v1102
      %v1899 = vmul.f32 %v1896, %v1103
      %v1900 = vadd.f32 %v1892, %v1898
      %v1901 = vadd.f32 %v1893, %v1899
      %1902 = vset.pattern.permute.xlu0 5
      %1903 = vperm.xlu0 %1902, %v1763
      %v1904 = vpop.permute.xlu0 %1903
      %v1906 = vmul.f32 %v1904, %v1820
      %v1907 = vmul.f32 %v1904, %v1821
      %v1908 = vadd.f32 %v1900, %v1906
      %v1909 = vadd.f32 %v1901, %v1907
      %1910 = vset.pattern.permute.xlu0 6
      %1911 = vperm.xlu0 %1910, %v1763
      %v1912 = vpop.permute.xlu0 %1911
      %v1914 = vmul.f32 %v1912, %v1831
      %v1915 = vmul.f32 %v1912, %v1832
      %v1916 = vadd.f32 %v1908, %v1914
      %v1917 = vadd.f32 %v1909, %v1915
      %1918 = vset.pattern.permute.xlu0 7
      %1919 = vperm.xlu0 %1918, %v1763
      %v1920 = vpop.permute.xlu0 %1919
      %v1922 = vmul.f32 %v1920, %v1842
      %v1923 = vmul.f32 %v1920, %v1843
      %v1924 = vadd.f32 %v1916, %v1922
      %v1925 = vadd.f32 %v1917, %v1923
      %1926 = vset.pattern.permute.xlu0 8
      %1927 = vperm.xlu0 %1926, %v1763
      %v1928 = vpop.permute.xlu0 %1927
      %v1930 = vmul.f32 %v1928, %v1853
      %v1931 = vmul.f32 %v1928, %v1854
      %v1932 = vadd.f32 %v1924, %v1930
      %v1933 = vadd.f32 %v1925, %v1931
      %v1936 = vrot.slane %v1932, 4
      %v1937 = vrot.slane %v1933, 4
      %v1940 = vmul.f32 %v1932, %v1936
      %v1941 = vmul.f32 %v1933, %v1937
      %v1942 = vld [vmem:[%s33] sm:$0x3f]
      %v1943 = vld [vmem:[%s35] sm:$0x3f]
      %1945 = vset.pattern.permute.xlu0 0
      %1946 = vperm.xlu0 %1945, %v1943
      %v1947 = vpop.permute.xlu0 %1946
      %vm1949 = vcmask 31744
      %v1951 = vsel %vm1949, %v1942, 0
      %vm1953 = vcmask 1043456
      %v1955 = vsel %vm1953, %v1940, 0
      %v1958 = vsel %vm1953, %v1941, 0
      %1960 = vmatprep.subr.mxu0 0.0
      %1961 = vmatpush1.msra.mxu0 0.0
      %1962 = vmatprep.subr.mxu0 0.0
      %1963 = vmatpush1.msra.mxu0 0.0
      %1964 = vmatprep.subr.mxu0 0.0
      %1965 = vmatpush1.msra.mxu0 0.0
      %1966 = vmatprep.subr.mxu0 0.0
      %1967 = vmatpush1.msra.mxu0 0.0
      %1968 = vmatprep.subr.mxu0 0.0
      %1969 = vmatpush1.msra.mxu0 0.0
      %1970 = vmatprep.subr.mxu0 0.0
      %1971 = vmatpush1.msra.mxu0 0.0
      %1972 = vmatprep.subr.mxu0 0.0
      %1973 = vmatpush1.msra.mxu0 0.0
      %1974 = vmatprep.subr.mxu0 0.0
      %1975 = vmatpush1.msra.mxu0 0.0
      %1976 = vmatprep.subr.mxu0 0.0
      %1977 = vmatpush1.msra.mxu0 0.0
      %1978 = vmatprep.subr.mxu0 0.0
      %1979 = vmatpush1.msra.mxu0 0.0
      %1980 = vmatprep.subr.mxu0 0.0
      %1981 = vmatpush1.msra.mxu0 0.0
      %1982 = vmatprep.subr.mxu0 0.0
      %1983 = vmatpush1.msra.mxu0 0.0
      %1984 = vmatprep.subr.mxu0 0.0
      %1985 = vmatpush1.msra.mxu0 0.0
      %1986 = vmatprep.subr.mxu0 0.0
      %1987 = vmatpush1.msra.mxu0 0.0
      %1988 = vmatprep.subr.mxu0 0.0
      %1989 = vmatpush1.msra.mxu0 0.0
      %1990 = vmatprep.subr.mxu0 %v1958
      %1991 = vmatpush1.msra.mxu0 %v1955
      %1992 = vmatprep.subr.mxu0 0.0
      %1993 = vmatpush2.msra.mxu0 0.0
      %1994 = vmatprep.subr.mxu0 0.0
      %1995 = vmatpush2.msra.mxu0 0.0
      %1996 = vmatprep.subr.mxu0 0.0
      %1997 = vmatpush2.msra.mxu0 0.0
      %1998 = vmatprep.subr.mxu0 0.0
      %1999 = vmatpush2.msra.mxu0 0.0
      %2000 = vmatprep.subr.mxu0 0.0
      %2001 = vmatpush2.msra.mxu0 0.0
      %2002 = vmatprep.subr.mxu0 0.0
      %2003 = vmatpush2.msra.mxu0 0.0
      %2004 = vmatprep.subr.mxu0 0.0
      %2005 = vmatpush2.msra.mxu0 0.0
      %2006 = vmatprep.subr.mxu0 0.0
      %2007 = vmatpush2.msra.mxu0 0.0
      %2008 = vmatprep.subr.mxu0 0.0
      %2009 = vmatpush2.msra.mxu0 0.0
      %2010 = vmatprep.subr.mxu0 0.0
      %2011 = vmatpush2.msra.mxu0 0.0
      %2012 = vmatprep.subr.mxu0 0.0
      %2013 = vmatpush2.msra.mxu0 0.0
      %2014 = vmatprep.subr.mxu0 0.0
      %2015 = vmatpush2.msra.mxu0 0.0
      %2016 = vmatprep.subr.mxu0 0.0
      %2017 = vmatpush2.msra.mxu0 0.0
      %2018 = vmatprep.subr.mxu0 0.0
      %2019 = vmatpush2.msra.mxu0 0.0
      %2020 = vmatprep.subr.mxu0 0.0
      %2021 = vmatpush2.msra.mxu0 0.0
      %2022 = vmatprep.subr.mxu0 0.0
      %2023 = vmatpush2.msra.mxu0 0.0
      %2024 = vmatprep.mubr.f32.mxu0 0.0
      %2025 = vmatmul.mubr.f32.gmra.mxu0 %v1951
      %v2026 = vpop.f32.mrf.mxu0
      %v2027 = vadd.f32 %v1947, %v2026
      %v2028 = vpop.f32.mrf.mxu0
      %v2029 = vadd.f32 %v1947, %v2028
      %2030 = vdwg.mxu0
      %v2031 = vld [vmem:[%s37] sm:$0x3f]
      %v2032 = vld [vmem:[%s39] sm:$0x3f]
      %2034 = vset.pattern.permute.xlu0 0
      %2035 = vperm.xlu0 %2034, %v2032
      %v2036 = vpop.permute.xlu0 %2035
      %v2039 = vsel %vm1105, %v2031, 0
      %2041 = vmatprep.subr.mxu0 0.0
      %2042 = vmatpush1.msra.mxu0 0.0
      %2043 = vmatprep.subr.mxu0 0.0
      %2044 = vmatpush1.msra.mxu0 0.0
      %2045 = vmatprep.subr.mxu0 0.0
      %2046 = vmatpush1.msra.mxu0 0.0
      %2047 = vmatprep.subr.mxu0 0.0
      %2048 = vmatpush1.msra.mxu0 0.0
      %2049 = vmatprep.subr.mxu0 0.0
      %2050 = vmatpush1.msra.mxu0 0.0
      %2051 = vmatprep.subr.mxu0 0.0
      %2052 = vmatpush1.msra.mxu0 0.0
      %2053 = vmatprep.subr.mxu0 0.0
      %2054 = vmatpush1.msra.mxu0 0.0
      %2055 = vmatprep.subr.mxu0 0.0
      %2056 = vmatpush1.msra.mxu0 0.0
      %2057 = vmatprep.subr.mxu0 0.0
      %2058 = vmatpush1.msra.mxu0 0.0
      %2059 = vmatprep.subr.mxu0 0.0
      %2060 = vmatpush1.msra.mxu0 0.0
      %2061 = vmatprep.subr.mxu0 0.0
      %2062 = vmatpush1.msra.mxu0 0.0
      %2063 = vmatprep.subr.mxu0 0.0
      %2064 = vmatpush1.msra.mxu0 0.0
      %2065 = vmatprep.subr.mxu0 0.0
      %2066 = vmatpush1.msra.mxu0 0.0
      %2067 = vmatprep.subr.mxu0 0.0
      %2068 = vmatpush1.msra.mxu0 0.0
      %2069 = vmatprep.subr.mxu0 0.0
      %2070 = vmatpush1.msra.mxu0 0.0
      %2071 = vmatprep.subr.mxu0 %v1103
      %2072 = vmatpush1.msra.mxu0 %v1102
      %2073 = vmatprep.subr.mxu0 0.0
      %2074 = vmatpush2.msra.mxu0 0.0
      %2075 = vmatprep.subr.mxu0 0.0
      %2076 = vmatpush2.msra.mxu0 0.0
      %2077 = vmatprep.subr.mxu0 0.0
      %2078 = vmatpush2.msra.mxu0 0.0
      %2079 = vmatprep.subr.mxu0 0.0
      %2080 = vmatpush2.msra.mxu0 0.0
      %2081 = vmatprep.subr.mxu0 0.0
      %2082 = vmatpush2.msra.mxu0 0.0
      %2083 = vmatprep.subr.mxu0 0.0
      %2084 = vmatpush2.msra.mxu0 0.0
      %2085 = vmatprep.subr.mxu0 0.0
      %2086 = vmatpush2.msra.mxu0 0.0
      %2087 = vmatprep.subr.mxu0 0.0
      %2088 = vmatpush2.msra.mxu0 0.0
      %2089 = vmatprep.subr.mxu0 0.0
      %2090 = vmatpush2.msra.mxu0 0.0
      %2091 = vmatprep.subr.mxu0 0.0
      %2092 = vmatpush2.msra.mxu0 0.0
      %2093 = vmatprep.subr.mxu0 0.0
      %2094 = vmatpush2.msra.mxu0 0.0
      %2095 = vmatprep.subr.mxu0 0.0
      %2096 = vmatpush2.msra.mxu0 0.0
      %2097 = vmatprep.subr.mxu0 0.0
      %2098 = vmatpush2.msra.mxu0 0.0
      %2099 = vmatprep.subr.mxu0 0.0
      %2100 = vmatpush2.msra.mxu0 0.0
      %2101 = vmatprep.subr.mxu0 0.0
      %2102 = vmatpush2.msra.mxu0 0.0
      %2103 = vmatprep.subr.mxu0 0.0
      %2104 = vmatpush2.msra.mxu0 0.0
      %2105 = vmatprep.mubr.f32.mxu0 0.0
      %2106 = vmatmul.mubr.f32.gmra.mxu0 %v2039
      %v2107 = vpop.f32.mrf.mxu0
      %v2108 = vadd.f32 %v2036, %v2107
      %v2109 = vpop.f32.mrf.mxu0
      %v2110 = vadd.f32 %v2036, %v2109
      %2111 = vdwg.mxu0
      %v2112 = vld [vmem:[%s41] sm:$0x3f]
      %2114 = vset.pattern.permute.xlu0 0
      %2115 = vperm.xlu0 %2114, %v2112
      %v2116 = vpop.permute.xlu0 %2115
      %v2118 = vmul.f32 %v2027, %v2116
      %v2119 = vmul.f32 %v2029, %v2116
      %v2120 = vadd.f32 %v2118, %v2108
      %v2121 = vadd.f32 %v2119, %v2110
      %2123 = vrot.lane.b32.xlu0 %v1762, 17
      %v2124 = vpop.permute.xlu0 %2123
      %2127 = vrot.lane.b32.xlu0 %v1761, 17
      %v2128 = vpop.permute.xlu0 %2127
      %v2129 = vsel %vm1277, %v2128, %v2124
      %v2132 = vsel %vm1277, %v2124, %v2128
      %v2133 = vmul.f32 %v2132, %v1285
      %v2134 = vmul.f32 %v2129, %v1289
      %2135 = vrot.lane.b32.xlu0 %v1762, 16
      %v2136 = vpop.permute.xlu0 %2135
      %2138 = vrot.lane.b32.xlu0 %v1761, 16
      %v2139 = vpop.permute.xlu0 %2138
      %v2140 = vsel %vm1297, %v2139, %v2136
      %v2143 = vsel %vm1297, %v2136, %v2139
      %v2144 = vmul.f32 %v2143, %v1305
      %v2145 = vmul.f32 %v2140, %v1309
      %2146 = vrot.lane.b32.xlu0 %v1762, 15
      %v2147 = vpop.permute.xlu0 %2146
      %2149 = vrot.lane.b32.xlu0 %v1761, 15
      %v2150 = vpop.permute.xlu0 %2149
      %v2151 = vsel %vm1317, %v2150, %v2147
      %v2154 = vsel %vm1317, %v2147, %v2150
      %v2155 = vmul.f32 %v2154, %v1325
      %v2156 = vmul.f32 %v2151, %v1329
      %2157 = vrot.lane.b32.xlu0 %v1762, 1
      %v2158 = vpop.permute.xlu0 %2157
      %2160 = vrot.lane.b32.xlu0 %v1761, 1
      %v2161 = vpop.permute.xlu0 %2160
      %v2162 = vsel %vm1337, %v2161, %v2158
      %v2165 = vsel %vm1337, %v2158, %v2161
      %v2166 = vmul.f32 %v2165, %v1345
      %v2167 = vmul.f32 %v2162, %v1349
      %2168 = vrot.lane.b32.xlu0 %v1761, 127
      %v2169 = vpop.permute.xlu0 %2168
      %2170 = vrot.lane.b32.xlu0 %v1762, 127
      %v2171 = vpop.permute.xlu0 %2170
      %v2172 = vsel %vm1356, %v2169, %v2171
      %v2176 = vsel %vm1356, %v2171, %v2169
      %v2177 = vmul.f32 %v2172, %v1365
      %v2178 = vmul.f32 %v2176, %v1369
      %2179 = vrot.lane.b32.xlu0 %v1761, 113
      %v2180 = vpop.permute.xlu0 %2179
      %2181 = vrot.lane.b32.xlu0 %v1762, 113
      %v2182 = vpop.permute.xlu0 %2181
      %v2183 = vsel %vm1376, %v2180, %v2182
      %v2187 = vsel %vm1376, %v2182, %v2180
      %v2188 = vmul.f32 %v2183, %v1385
      %v2189 = vmul.f32 %v2187, %v1389
      %2190 = vrot.lane.b32.xlu0 %v1761, 112
      %v2191 = vpop.permute.xlu0 %2190
      %2192 = vrot.lane.b32.xlu0 %v1762, 112
      %v2193 = vpop.permute.xlu0 %2192
      %v2194 = vsel %vm1396, %v2191, %v2193
      %v2198 = vsel %vm1396, %v2193, %v2191
      %v2199 = vmul.f32 %v2194, %v1405
      %v2200 = vmul.f32 %v2198, %v1409
      %2201 = vrot.lane.b32.xlu0 %v1761, 111
      %v2202 = vpop.permute.xlu0 %2201
      %2203 = vrot.lane.b32.xlu0 %v1762, 111
      %v2204 = vpop.permute.xlu0 %2203
      %v2205 = vsel %vm1416, %v2202, %v2204
      %v2209 = vsel %vm1416, %v2204, %v2202
      %v2210 = vmul.f32 %v2205, %v1425
      %v2211 = vmul.f32 %v2209, %v1429
      %v2212 = vld [vmem:[%s45] sm:$0xff]
      %v2213 = vld [vmem:[%s43] sm:$0xff]
      %v2214 = vld [vmem:[%s43 + $0x8] sm:$0xff]
      %v2215 = vld [vmem:[%s43 + $0x10] sm:$0xff]
      %v2216 = vld [vmem:[%s43 + $0x18] sm:$0xff]
      %v2217 = vld [vmem:[%s43 + $0x20] sm:$0xff]
      %v2218 = vld [vmem:[%s43 + $0x28] sm:$0xff]
      %v2221 = vrot.slane %v2144, 4
      %v2222 = vrot.slane %v2145, 4
      %v2227 = vrot.slane %v2166, 4
      %v2228 = vrot.slane %v2167, 4
      %v2233 = vrot.slane %v2177, 4
      %v2234 = vrot.slane %v2178, 4
      %v2239 = vrot.slane %v2199, 4
      %v2240 = vrot.slane %v2200, 4
      %v2243 = vsel %vm1953, %v2133, %v2221
      %v2244 = vsel %vm1953, %v2134, %v2222
      %v2245 = vsel %vm1953, %v2155, %v2227
      %v2246 = vsel %vm1953, %v2156, %v2228
      %v2247 = vsel %vm1953, %v1761, %v2233
      %v2248 = vsel %vm1953, %v1762, %v2234
      %v2249 = vsel %vm1953, %v2188, %v2239
      %v2250 = vsel %vm1953, %v2189, %v2240
      %vm2251 = vcmask 293888
      %v2253 = vsel %vm2251, %v2213, 0
      %v2256 = vsel %vm2251, %v2214, 0
      %v2259 = vsel %vm2251, %v2215, 0
      %v2262 = vsel %vm1953, %v2210, 0
      %v2265 = vsel %vm1953, %v2211, 0
      %2267 = vmatprep.subr.mxu0 0.0
      %2268 = vmatpush1.msra.mxu0 0.0
      %2269 = vmatprep.subr.mxu0 0.0
      %2270 = vmatpush1.msra.mxu0 0.0
      %2271 = vmatprep.subr.mxu0 0.0
      %2272 = vmatpush1.msra.mxu0 0.0
      %2273 = vmatprep.subr.mxu0 0.0
      %2274 = vmatpush1.msra.mxu0 0.0
      %2275 = vmatprep.subr.mxu0 0.0
      %2276 = vmatpush1.msra.mxu0 0.0
      %2277 = vmatprep.subr.mxu0 0.0
      %2278 = vmatpush1.msra.mxu0 0.0
      %2279 = vmatprep.subr.mxu0 0.0
      %2280 = vmatpush1.msra.mxu0 0.0
      %2281 = vmatprep.subr.mxu0 0.0
      %2282 = vmatpush1.msra.mxu0 0.0
      %2283 = vmatprep.subr.mxu0 0.0
      %2284 = vmatpush1.msra.mxu0 0.0
      %2285 = vmatprep.subr.mxu0 0.0
      %2286 = vmatpush1.msra.mxu0 0.0
      %2287 = vmatprep.subr.mxu0 0.0
      %2288 = vmatpush1.msra.mxu0 0.0
      %2289 = vmatprep.subr.mxu0 %v2265
      %2290 = vmatpush1.msra.mxu0 %v2262
      %2291 = vmatprep.subr.mxu0 %v2250
      %2292 = vmatpush1.msra.mxu0 %v2249
      %2293 = vmatprep.subr.mxu0 %v2248
      %2294 = vmatpush1.msra.mxu0 %v2247
      %2295 = vmatprep.subr.mxu0 %v2246
      %2296 = vmatpush1.msra.mxu0 %v2245
      %2297 = vmatprep.subr.mxu0 %v2244
      %2298 = vmatpush1.msra.mxu0 %v2243
      %2299 = vmatprep.subr.mxu0 0.0
      %2300 = vmatpush2.msra.mxu0 0.0
      %2301 = vmatprep.subr.mxu0 0.0
      %2302 = vmatpush2.msra.mxu0 0.0
      %2303 = vmatprep.subr.mxu0 0.0
      %2304 = vmatpush2.msra.mxu0 0.0
      %2305 = vmatprep.subr.mxu0 0.0
      %2306 = vmatpush2.msra.mxu0 0.0
      %2307 = vmatprep.subr.mxu0 0.0
      %2308 = vmatpush2.msra.mxu0 0.0
      %2309 = vmatprep.subr.mxu0 0.0
      %2310 = vmatpush2.msra.mxu0 0.0
      %2311 = vmatprep.subr.mxu0 0.0
      %2312 = vmatpush2.msra.mxu0 0.0
      %2313 = vmatprep.subr.mxu0 0.0
      %2314 = vmatpush2.msra.mxu0 0.0
      %2315 = vmatprep.subr.mxu0 0.0
      %2316 = vmatpush2.msra.mxu0 0.0
      %2317 = vmatprep.subr.mxu0 0.0
      %2318 = vmatpush2.msra.mxu0 0.0
      %2319 = vmatprep.subr.mxu0 0.0
      %2320 = vmatpush2.msra.mxu0 0.0
      %2321 = vmatprep.subr.mxu0 0.0
      %2322 = vmatpush2.msra.mxu0 0.0
      %2323 = vmatprep.subr.mxu0 0.0
      %2324 = vmatpush2.msra.mxu0 0.0
      %2325 = vmatprep.subr.mxu0 0.0
      %2326 = vmatpush2.msra.mxu0 0.0
      %2327 = vmatprep.subr.mxu0 0.0
      %2328 = vmatpush2.msra.mxu0 0.0
      %2329 = vmatprep.subr.mxu0 0.0
      %2330 = vmatpush2.msra.mxu0 0.0
      %2331 = vmatprep.mubr.f32.mxu0 0.0
      %2332 = vmatmul.mubr.f32.gmra.mxu0 %v2253
      %v2333 = vpop.f32.mrf.mxu0
      %v2334 = vadd.f32 0.0, %v2333
      %v2335 = vpop.f32.mrf.mxu0
      %v2336 = vadd.f32 0.0, %v2335
      %2337 = vmatprep.mubr.f32.mxu0 0.0
      %2338 = vmatmul.mubr.f32.gmra.mxu0 %v2256
      %v2339 = vpop.f32.mrf.mxu0
      %v2340 = vadd.f32 0.0, %v2339
      %v2341 = vpop.f32.mrf.mxu0
      %v2342 = vadd.f32 0.0, %v2341
      %2343 = vmatprep.mubr.f32.mxu0 0.0
      %2344 = vmatmul.mubr.f32.gmra.mxu0 %v2259
      %v2345 = vpop.f32.mrf.mxu0
      %v2346 = vadd.f32 0.0, %v2345
      %v2347 = vpop.f32.mrf.mxu0
      %v2348 = vadd.f32 0.0, %v2347
      %2349 = vdwg.mxu0
      %v2350 = vlaneseq
      %v2351 = vshrl.u32 %v2350, 7
      %v2352 = vsub.s32 0, %v2351
      %v2353 = vrot.slane %v2120, %v2352
      %v2354 = vlaneseq
      %v2355 = vshrl.u32 %v2354, 7
      %v2356 = vsub.s32 0, %v2355
      %v2357 = vrot.slane %v2121, %v2356
      %v2358 = vmul.f32 %v2353, %v2334
      %v2359 = vmul.f32 %v2357, %v2336
      %v2360 = vlaneseq
      %v2361 = vshrl.u32 %v2360, 7
      %v2362 = vsub.s32 1, %v2361
      %v2363 = vrot.slane %v2120, %v2362
      %v2364 = vlaneseq
      %v2365 = vshrl.u32 %v2364, 7
      %v2366 = vsub.s32 1, %v2365
      %v2367 = vrot.slane %v2121, %v2366
      %v2368 = vmul.f32 %v2363, %v2334
      %v2369 = vmul.f32 %v2367, %v2336
      %v2372 = vrot.slane %v2368, 4
      %v2373 = vrot.slane %v2369, 4
      %v2376 = vadd.f32 %v2358, %v2372
      %v2377 = vadd.f32 %v2359, %v2373
      %v2378 = vlaneseq
      %v2379 = vshrl.u32 %v2378, 7
      %v2380 = vsub.s32 2, %v2379
      %v2381 = vrot.slane %v2120, %v2380
      %v2382 = vlaneseq
      %v2383 = vshrl.u32 %v2382, 7
      %v2384 = vsub.s32 2, %v2383
      %v2385 = vrot.slane %v2121, %v2384
      %v2386 = vmul.f32 %v2381, %v2340
      %v2387 = vmul.f32 %v2385, %v2342
      %v2388 = vadd.f32 %v2376, %v2386
      %v2389 = vadd.f32 %v2377, %v2387
      %v2390 = vlaneseq
      %v2391 = vshrl.u32 %v2390, 7
      %v2392 = vsub.s32 3, %v2391
      %v2393 = vrot.slane %v2120, %v2392
      %v2394 = vlaneseq
      %v2395 = vshrl.u32 %v2394, 7
      %v2396 = vsub.s32 3, %v2395
      %v2397 = vrot.slane %v2121, %v2396
      %v2398 = vmul.f32 %v2393, %v2340
      %v2399 = vmul.f32 %v2397, %v2342
      %v2402 = vrot.slane %v2398, 4
      %v2403 = vrot.slane %v2399, 4
      %v2406 = vadd.f32 %v2388, %v2402
      %v2407 = vadd.f32 %v2389, %v2403
      %v2408 = vlaneseq
      %v2409 = vshrl.u32 %v2408, 7
      %v2410 = vsub.s32 4, %v2409
      %v2411 = vrot.slane %v2120, %v2410
      %v2412 = vlaneseq
      %v2413 = vshrl.u32 %v2412, 7
      %v2414 = vsub.s32 4, %v2413
      %v2415 = vrot.slane %v2121, %v2414
      %v2416 = vmul.f32 %v2411, %v2346
      %v2417 = vmul.f32 %v2415, %v2348
      %v2418 = vadd.f32 %v2406, %v2416
      %v2419 = vadd.f32 %v2407, %v2417
      %v2420 = vlaneseq
      %v2421 = vshrl.u32 %v2420, 7
      %v2422 = vsub.s32 5, %v2421
      %v2423 = vrot.slane %v2120, %v2422
      %v2424 = vlaneseq
      %v2425 = vshrl.u32 %v2424, 7
      %v2426 = vsub.s32 5, %v2425
      %v2427 = vrot.slane %v2121, %v2426
      %v2428 = vmul.f32 %v2423, %v2346
      %v2429 = vmul.f32 %v2427, %v2348
      %v2432 = vrot.slane %v2428, 4
      %v2433 = vrot.slane %v2429, 4
      %v2436 = vadd.f32 %v2418, %v2432
      %v2437 = vadd.f32 %v2419, %v2433
      %v2440 = vrot.slane %v2133, 4
      %v2441 = vrot.slane %v2134, 4
      %v2446 = vrot.slane %v2155, 4
      %v2447 = vrot.slane %v2156, 4
      %v2450 = vrot.slane %v1761, 4
      %v2451 = vrot.slane %v1762, 4
      %v2456 = vrot.slane %v2188, 4
      %v2457 = vrot.slane %v2189, 4
      %v2460 = vrot.slane %v2210, 4
      %v2461 = vrot.slane %v2211, 4
      %v2462 = vsel %vm1953, %v2440, %v2144
      %v2463 = vsel %vm1953, %v2441, %v2145
      %v2464 = vsel %vm1953, %v2446, %v2166
      %v2465 = vsel %vm1953, %v2447, %v2167
      %v2466 = vsel %vm1953, %v2450, %v2177
      %v2467 = vsel %vm1953, %v2451, %v2178
      %v2468 = vsel %vm1953, %v2456, %v2199
      %v2469 = vsel %vm1953, %v2457, %v2200
      %v2471 = vsel %vm2251, %v2216, 0
      %v2474 = vsel %vm2251, %v2217, 0
      %v2477 = vsel %vm2251, %v2218, 0
      %v2479 = vsel %vm1953, %v2460, 0
      %v2481 = vsel %vm1953, %v2461, 0
      %2483 = vmatprep.subr.mxu0 0.0
      %2484 = vmatpush1.msra.mxu0 0.0
      %2485 = vmatprep.subr.mxu0 0.0
      %2486 = vmatpush1.msra.mxu0 0.0
      %2487 = vmatprep.subr.mxu0 0.0
      %2488 = vmatpush1.msra.mxu0 0.0
      %2489 = vmatprep.subr.mxu0 0.0
      %2490 = vmatpush1.msra.mxu0 0.0
      %2491 = vmatprep.subr.mxu0 0.0
      %2492 = vmatpush1.msra.mxu0 0.0
      %2493 = vmatprep.subr.mxu0 0.0
      %2494 = vmatpush1.msra.mxu0 0.0
      %2495 = vmatprep.subr.mxu0 0.0
      %2496 = vmatpush1.msra.mxu0 0.0
      %2497 = vmatprep.subr.mxu0 0.0
      %2498 = vmatpush1.msra.mxu0 0.0
      %2499 = vmatprep.subr.mxu0 0.0
      %2500 = vmatpush1.msra.mxu0 0.0
      %2501 = vmatprep.subr.mxu0 0.0
      %2502 = vmatpush1.msra.mxu0 0.0
      %2503 = vmatprep.subr.mxu0 0.0
      %2504 = vmatpush1.msra.mxu0 0.0
      %2505 = vmatprep.subr.mxu0 %v2481
      %2506 = vmatpush1.msra.mxu0 %v2479
      %2507 = vmatprep.subr.mxu0 %v2469
      %2508 = vmatpush1.msra.mxu0 %v2468
      %2509 = vmatprep.subr.mxu0 %v2467
      %2510 = vmatpush1.msra.mxu0 %v2466
      %2511 = vmatprep.subr.mxu0 %v2465
      %2512 = vmatpush1.msra.mxu0 %v2464
      %2513 = vmatprep.subr.mxu0 %v2463
      %2514 = vmatpush1.msra.mxu0 %v2462
      %2515 = vmatprep.subr.mxu0 0.0
      %2516 = vmatpush2.msra.mxu0 0.0
      %2517 = vmatprep.subr.mxu0 0.0
      %2518 = vmatpush2.msra.mxu0 0.0
      %2519 = vmatprep.subr.mxu0 0.0
      %2520 = vmatpush2.msra.mxu0 0.0
      %2521 = vmatprep.subr.mxu0 0.0
      %2522 = vmatpush2.msra.mxu0 0.0
      %2523 = vmatprep.subr.mxu0 0.0
      %2524 = vmatpush2.msra.mxu0 0.0
      %2525 = vmatprep.subr.mxu0 0.0
      %2526 = vmatpush2.msra.mxu0 0.0
      %2527 = vmatprep.subr.mxu0 0.0
      %2528 = vmatpush2.msra.mxu0 0.0
      %2529 = vmatprep.subr.mxu0 0.0
      %2530 = vmatpush2.msra.mxu0 0.0
      %2531 = vmatprep.subr.mxu0 0.0
      %2532 = vmatpush2.msra.mxu0 0.0
      %2533 = vmatprep.subr.mxu0 0.0
      %2534 = vmatpush2.msra.mxu0 0.0
      %2535 = vmatprep.subr.mxu0 0.0
      %2536 = vmatpush2.msra.mxu0 0.0
      %2537 = vmatprep.subr.mxu0 0.0
      %2538 = vmatpush2.msra.mxu0 0.0
      %2539 = vmatprep.subr.mxu0 0.0
      %2540 = vmatpush2.msra.mxu0 0.0
      %2541 = vmatprep.subr.mxu0 0.0
      %2542 = vmatpush2.msra.mxu0 0.0
      %2543 = vmatprep.subr.mxu0 0.0
      %2544 = vmatpush2.msra.mxu0 0.0
      %2545 = vmatprep.subr.mxu0 0.0
      %2546 = vmatpush2.msra.mxu0 0.0
      %2547 = vmatprep.mubr.f32.mxu0 0.0
      %2548 = vmatmul.mubr.f32.gmra.mxu0 %v2471
      %v2549 = vpop.f32.mrf.mxu0
      %v2550 = vadd.f32 0.0, %v2549
      %v2551 = vpop.f32.mrf.mxu0
      %v2552 = vadd.f32 0.0, %v2551
      %2553 = vmatprep.mubr.f32.mxu0 0.0
      %2554 = vmatmul.mubr.f32.gmra.mxu0 %v2474
      %v2555 = vpop.f32.mrf.mxu0
      %v2556 = vadd.f32 0.0, %v2555
      %v2557 = vpop.f32.mrf.mxu0
      %v2558 = vadd.f32 0.0, %v2557
      %2559 = vmatprep.mubr.f32.mxu0 0.0
      %2560 = vmatmul.mubr.f32.gmra.mxu0 %v2477
      %v2561 = vpop.f32.mrf.mxu0
      %v2562 = vadd.f32 0.0, %v2561
      %v2563 = vpop.f32.mrf.mxu0
      %v2564 = vadd.f32 0.0, %v2563
      %2565 = vdwg.mxu0
      %v2566 = vmul.f32 %v2353, %v2550
      %v2567 = vmul.f32 %v2357, %v2552
      %v2568 = vmul.f32 %v2363, %v2550
      %v2569 = vmul.f32 %v2367, %v2552
      %v2572 = vrot.slane %v2568, 4
      %v2573 = vrot.slane %v2569, 4
      %v2576 = vadd.f32 %v2566, %v2572
      %v2577 = vadd.f32 %v2567, %v2573
      %v2578 = vmul.f32 %v2381, %v2556
      %v2579 = vmul.f32 %v2385, %v2558
      %v2580 = vadd.f32 %v2576, %v2578
      %v2581 = vadd.f32 %v2577, %v2579
      %v2582 = vmul.f32 %v2393, %v2556
      %v2583 = vmul.f32 %v2397, %v2558
      %v2586 = vrot.slane %v2582, 4
      %v2587 = vrot.slane %v2583, 4
      %v2590 = vadd.f32 %v2580, %v2586
      %v2591 = vadd.f32 %v2581, %v2587
      %v2592 = vmul.f32 %v2411, %v2562
      %v2593 = vmul.f32 %v2415, %v2564
      %v2594 = vadd.f32 %v2590, %v2592
      %v2595 = vadd.f32 %v2591, %v2593
      %v2596 = vmul.f32 %v2423, %v2562
      %v2597 = vmul.f32 %v2427, %v2564
      %v2600 = vrot.slane %v2596, 4
      %v2601 = vrot.slane %v2597, 4
      %v2604 = vadd.f32 %v2594, %v2600
      %v2605 = vadd.f32 %v2595, %v2601
      %v2608 = vrot.slane %v2604, 4
      %v2609 = vrot.slane %v2605, 4
      %v2612 = vsel %vm1953, %v2436, %v2608
      %v2613 = vsel %vm1953, %v2437, %v2609
      %vm2614 = vcmask 48128
      %v2616 = vsel %vm2614, %v2212, 0
      %vm2618 = vcmask 1045504
      %v2620 = vsel %vm2618, %v2120, 0
      %v2623 = vsel %vm2618, %v2121, 0
      %2625 = vmatprep.subr.mxu0 0.0
      %2626 = vmatpush1.msra.mxu0 0.0
      %2627 = vmatprep.subr.mxu0 0.0
      %2628 = vmatpush1.msra.mxu0 0.0
      %2629 = vmatprep.subr.mxu0 0.0
      %2630 = vmatpush1.msra.mxu0 0.0
      %2631 = vmatprep.subr.mxu0 0.0
      %2632 = vmatpush1.msra.mxu0 0.0
      %2633 = vmatprep.subr.mxu0 0.0
      %2634 = vmatpush1.msra.mxu0 0.0
      %2635 = vmatprep.subr.mxu0 0.0
      %2636 = vmatpush1.msra.mxu0 0.0
      %2637 = vmatprep.subr.mxu0 0.0
      %2638 = vmatpush1.msra.mxu0 0.0
      %2639 = vmatprep.subr.mxu0 0.0
      %2640 = vmatpush1.msra.mxu0 0.0
      %2641 = vmatprep.subr.mxu0 0.0
      %2642 = vmatpush1.msra.mxu0 0.0
      %2643 = vmatprep.subr.mxu0 0.0
      %2644 = vmatpush1.msra.mxu0 0.0
      %2645 = vmatprep.subr.mxu0 0.0
      %2646 = vmatpush1.msra.mxu0 0.0
      %2647 = vmatprep.subr.mxu0 0.0
      %2648 = vmatpush1.msra.mxu0 0.0
      %2649 = vmatprep.subr.mxu0 0.0
      %2650 = vmatpush1.msra.mxu0 0.0
      %2651 = vmatprep.subr.mxu0 0.0
      %2652 = vmatpush1.msra.mxu0 0.0
      %2653 = vmatprep.subr.mxu0 0.0
      %2654 = vmatpush1.msra.mxu0 0.0
      %2655 = vmatprep.subr.mxu0 %v2623
      %2656 = vmatpush1.msra.mxu0 %v2620
      %2657 = vmatprep.subr.mxu0 0.0
      %2658 = vmatpush2.msra.mxu0 0.0
      %2659 = vmatprep.subr.mxu0 0.0
      %2660 = vmatpush2.msra.mxu0 0.0
      %2661 = vmatprep.subr.mxu0 0.0
      %2662 = vmatpush2.msra.mxu0 0.0
      %2663 = vmatprep.subr.mxu0 0.0
      %2664 = vmatpush2.msra.mxu0 0.0
      %2665 = vmatprep.subr.mxu0 0.0
      %2666 = vmatpush2.msra.mxu0 0.0
      %2667 = vmatprep.subr.mxu0 0.0
      %2668 = vmatpush2.msra.mxu0 0.0
      %2669 = vmatprep.subr.mxu0 0.0
      %2670 = vmatpush2.msra.mxu0 0.0
      %2671 = vmatprep.subr.mxu0 0.0
      %2672 = vmatpush2.msra.mxu0 0.0
      %2673 = vmatprep.subr.mxu0 0.0
      %2674 = vmatpush2.msra.mxu0 0.0
      %2675 = vmatprep.subr.mxu0 0.0
      %2676 = vmatpush2.msra.mxu0 0.0
      %2677 = vmatprep.subr.mxu0 0.0
      %2678 = vmatpush2.msra.mxu0 0.0
      %2679 = vmatprep.subr.mxu0 0.0
      %2680 = vmatpush2.msra.mxu0 0.0
      %2681 = vmatprep.subr.mxu0 0.0
      %2682 = vmatpush2.msra.mxu0 0.0
      %2683 = vmatprep.subr.mxu0 0.0
      %2684 = vmatpush2.msra.mxu0 0.0
      %2685 = vmatprep.subr.mxu0 0.0
      %2686 = vmatpush2.msra.mxu0 0.0
      %2687 = vmatprep.subr.mxu0 0.0
      %2688 = vmatpush2.msra.mxu0 0.0
      %2689 = vmatprep.mubr.f32.mxu0 0.0
      %2690 = vmatmul.mubr.f32.gmra.mxu0 %v2616
      %v2691 = vpop.f32.mrf.mxu0
      %v2692 = vadd.f32 %v2612, %v2691
      %v2693 = vpop.f32.mrf.mxu0
      %v2694 = vadd.f32 %v2613, %v2693
      %2695 = vdwg.mxu0
      %v2696 = vld [vmem:[%s47] sm:$0xff]
      %2698 = vset.pattern.permute.xlu0 0
      %2699 = vperm.xlu0 %2698, %v2696
      %v2700 = vpop.permute.xlu0 %2699
      %v2702 = vmul.f32 %v2692, %v2700
      %v2703 = vmul.f32 %v2694, %v2700
      %v2704 = vadd.f32 %v2702, %v1761
      %v2705 = vadd.f32 %v2703, %v1762
      %v2706 = vmul.f32 %v2704, %v1509
      %v2707 = vmul.f32 %v2705, %v1510
      %2709 = vset.pattern.permute.xlu0 0
      %2710 = vperm.xlu0 %2709, %v1186
      %v2711 = vpop.permute.xlu0 %2710
      %v2713 = vmul.f32 %v2706, %v2711
      %v2714 = vmul.f32 %v2707, %v2711
      %v2715 = vld [vmem:[%s49] sm:$0xff]
      %v2716 = vld [vmem:[%s51] sm:$0xff]
      %2718 = vset.pattern.permute.xlu0 0
      %2719 = vperm.xlu0 %2718, %v2716
      %v2720 = vpop.permute.xlu0 %2719
      %v2723 = vsel %vm1105, %v2715, 0
      %2725 = vmatprep.subr.mxu0 0.0
      %2726 = vmatpush1.msra.mxu0 0.0
      %2727 = vmatprep.subr.mxu0 0.0
      %2728 = vmatpush1.msra.mxu0 0.0
      %2729 = vmatprep.subr.mxu0 0.0
      %2730 = vmatpush1.msra.mxu0 0.0
      %2731 = vmatprep.subr.mxu0 0.0
      %2732 = vmatpush1.msra.mxu0 0.0
      %2733 = vmatprep.subr.mxu0 0.0
      %2734 = vmatpush1.msra.mxu0 0.0
      %2735 = vmatprep.subr.mxu0 0.0
      %2736 = vmatpush1.msra.mxu0 0.0
      %2737 = vmatprep.subr.mxu0 0.0
      %2738 = vmatpush1.msra.mxu0 0.0
      %2739 = vmatprep.subr.mxu0 0.0
      %2740 = vmatpush1.msra.mxu0 0.0
      %2741 = vmatprep.subr.mxu0 0.0
      %2742 = vmatpush1.msra.mxu0 0.0
      %2743 = vmatprep.subr.mxu0 0.0
      %2744 = vmatpush1.msra.mxu0 0.0
      %2745 = vmatprep.subr.mxu0 0.0
      %2746 = vmatpush1.msra.mxu0 0.0
      %2747 = vmatprep.subr.mxu0 0.0
      %2748 = vmatpush1.msra.mxu0 0.0
      %2749 = vmatprep.subr.mxu0 0.0
      %2750 = vmatpush1.msra.mxu0 0.0
      %2751 = vmatprep.subr.mxu0 0.0
      %2752 = vmatpush1.msra.mxu0 0.0
      %2753 = vmatprep.subr.mxu0 0.0
      %2754 = vmatpush1.msra.mxu0 0.0
      %2755 = vmatprep.subr.mxu0 %v2714
      %2756 = vmatpush1.msra.mxu0 %v2713
      %2757 = vmatprep.subr.mxu0 0.0
      %2758 = vmatpush2.msra.mxu0 0.0
      %2759 = vmatprep.subr.mxu0 0.0
      %2760 = vmatpush2.msra.mxu0 0.0
      %2761 = vmatprep.subr.mxu0 0.0
      %2762 = vmatpush2.msra.mxu0 0.0
      %2763 = vmatprep.subr.mxu0 0.0
      %2764 = vmatpush2.msra.mxu0 0.0
      %2765 = vmatprep.subr.mxu0 0.0
      %2766 = vmatpush2.msra.mxu0 0.0
      %2767 = vmatprep.subr.mxu0 0.0
      %2768 = vmatpush2.msra.mxu0 0.0
      %2769 = vmatprep.subr.mxu0 0.0
      %2770 = vmatpush2.msra.mxu0 0.0
      %2771 = vmatprep.subr.mxu0 0.0
      %2772 = vmatpush2.msra.mxu0 0.0
      %2773 = vmatprep.subr.mxu0 0.0
      %2774 = vmatpush2.msra.mxu0 0.0
      %2775 = vmatprep.subr.mxu0 0.0
      %2776 = vmatpush2.msra.mxu0 0.0
      %2777 = vmatprep.subr.mxu0 0.0
      %2778 = vmatpush2.msra.mxu0 0.0
      %2779 = vmatprep.subr.mxu0 0.0
      %2780 = vmatpush2.msra.mxu0 0.0
      %2781 = vmatprep.subr.mxu0 0.0
      %2782 = vmatpush2.msra.mxu0 0.0
      %2783 = vmatprep.subr.mxu0 0.0
      %2784 = vmatpush2.msra.mxu0 0.0
      %2785 = vmatprep.subr.mxu0 0.0
      %2786 = vmatpush2.msra.mxu0 0.0
      %2787 = vmatprep.subr.mxu0 0.0
      %2788 = vmatpush2.msra.mxu0 0.0
      %2789 = vmatprep.mubr.f32.mxu0 0.0
      %2790 = vmatmul.mubr.f32.gmra.mxu0 %v2723
      %v2791 = vpop.f32.mrf.mxu0
      %v2792 = vadd.f32 %v2720, %v2791
      %v2793 = vpop.f32.mrf.mxu0
      %v2794 = vadd.f32 %v2720, %v2793
      %2795 = vdwg.mxu0
      %v2796 = vld [vmem:[%s53] sm:$0xff]
      %2798 = vset.pattern.permute.xlu0 0
      %2799 = vperm.xlu0 %2798, %v2796
      %v2800 = vpop.permute.xlu0 %2799
      %v2802 = vmul.f32 %v2792, %v2800
      %v2803 = vmul.f32 %v2794, %v2800
      %v2804 = vadd.f32 %v1043, %v2802
      %v2805 = vadd.f32 %v1044, %v2803
      %v2806 = vrot.slane %v2804, 4
      %v2807 = vadd.f32 %v2804, %v2806
      %v2808 = vrot.slane %v2807, 2
      %v2809 = vadd.f32 %v2807, %v2808
      %v2810 = vrot.slane %v2809, 1
      %v2811 = vadd.f32 %v2809, %v2810
      %v2812 = vrot.slane %v2805, 4
      %v2813 = vadd.f32 %v2805, %v2812
      %v2814 = vrot.slane %v2813, 2
      %v2815 = vadd.f32 %v2813, %v2814
      %v2816 = vrot.slane %v2815, 1
      %v2817 = vadd.f32 %v2815, %v2816
      %v2818 = vmul.f32 %v2811, %v1061
      %v2819 = vmul.f32 %v2817, %v1061
      %v2820 = vsub.f32 %v2804, %v2818
      %v2821 = vsub.f32 %v2805, %v2819
      %v2822 = vmul.f32 %v2820, %v2820
      %v2823 = vmul.f32 %v2821, %v2821
      %v2824 = vrot.slane %v2822, 4
      %v2825 = vadd.f32 %v2822, %v2824
      %v2826 = vrot.slane %v2825, 2
      %v2827 = vadd.f32 %v2825, %v2826
      %v2828 = vrot.slane %v2827, 1
      %v2829 = vadd.f32 %v2827, %v2828
      %v2830 = vrot.slane %v2823, 4
      %v2831 = vadd.f32 %v2823, %v2830
      %v2832 = vrot.slane %v2831, 2
      %v2833 = vadd.f32 %v2831, %v2832
      %v2834 = vrot.slane %v2833, 1
      %v2835 = vadd.f32 %v2833, %v2834
      %v2836 = vmul.f32 %v2829, %v1061
      %v2837 = vmul.f32 %v2835, %v1061
      %v2838 = vadd.f32 %v2836, 1e-06
      %v2839 = vadd.f32 %v2837, 1e-06
      %v2840 = vrsqrt.pop %v2838
      %v2841 = vrsqrt.pop %v2839
      %v2842 = vmul.f32 %v2820, %v2840
      %v2843 = vmul.f32 %v2821, %v2841
      %v2844 = vld [vmem:[%s55] sm:$0xff]
      %2846 = vset.pattern.permute.xlu0 0
      %2847 = vperm.xlu0 %2846, %v2844
      %v2848 = vpop.permute.xlu0 %2847
      %v2850 = vmul.f32 %v2842, %v2848
      %v2851 = vmul.f32 %v2843, %v2848
      %v2852 = vld [vmem:[%s57] sm:$0xff]
      %2854 = vset.pattern.permute.xlu0 0
      %2855 = vperm.xlu0 %2854, %v2852
      %v2856 = vpop.permute.xlu0 %2855
      %v2858 = vadd.f32 %v2850, %v2856
      %v2859 = vadd.f32 %v2851, %v2856
      %v2860 = vld [vmem:[%s59] sm:$0xff]
      %v2861 = vld [vmem:[%s59 + $0x8] sm:$0xff]
      %v2862 = vld [vmem:[%s61] sm:$0xff]
      %v2863 = vld [vmem:[%s61 + $0x8] sm:$0xff]
      %2865 = vset.pattern.permute.xlu0 0
      %2866 = vperm.xlu0 %2865, %v2862
      %v2867 = vpop.permute.xlu0 %2866
      %2870 = vset.pattern.permute.xlu0 0
      %2871 = vperm.xlu0 %2870, %v2863
      %v2872 = vpop.permute.xlu0 %2871
      %v2875 = vsel %vm1105, %v2860, 0
      %v2878 = vsel %vm1105, %v2861, 0
      %2880 = vmatprep.subr.mxu0 0.0
      %2881 = vmatpush1.msra.mxu0 0.0
      %2882 = vmatprep.subr.mxu0 0.0
      %2883 = vmatpush1.msra.mxu0 0.0
      %2884 = vmatprep.subr.mxu0 0.0
      %2885 = vmatpush1.msra.mxu0 0.0
      %2886 = vmatprep.subr.mxu0 0.0
      %2887 = vmatpush1.msra.mxu0 0.0
      %2888 = vmatprep.subr.mxu0 0.0
      %2889 = vmatpush1.msra.mxu0 0.0
      %2890 = vmatprep.subr.mxu0 0.0
      %2891 = vmatpush1.msra.mxu0 0.0
      %2892 = vmatprep.subr.mxu0 0.0
      %2893 = vmatpush1.msra.mxu0 0.0
      %2894 = vmatprep.subr.mxu0 0.0
      %2895 = vmatpush1.msra.mxu0 0.0
      %2896 = vmatprep.subr.mxu0 0.0
      %2897 = vmatpush1.msra.mxu0 0.0
      %2898 = vmatprep.subr.mxu0 0.0
      %2899 = vmatpush1.msra.mxu0 0.0
      %2900 = vmatprep.subr.mxu0 0.0
      %2901 = vmatpush1.msra.mxu0 0.0
      %2902 = vmatprep.subr.mxu0 0.0
      %2903 = vmatpush1.msra.mxu0 0.0
      %2904 = vmatprep.subr.mxu0 0.0
      %2905 = vmatpush1.msra.mxu0 0.0
      %2906 = vmatprep.subr.mxu0 0.0
      %2907 = vmatpush1.msra.mxu0 0.0
      %2908 = vmatprep.subr.mxu0 0.0
      %2909 = vmatpush1.msra.mxu0 0.0
      %2910 = vmatprep.subr.mxu0 %v2859
      %2911 = vmatpush1.msra.mxu0 %v2858
      %2912 = vmatprep.subr.mxu0 0.0
      %2913 = vmatpush2.msra.mxu0 0.0
      %2914 = vmatprep.subr.mxu0 0.0
      %2915 = vmatpush2.msra.mxu0 0.0
      %2916 = vmatprep.subr.mxu0 0.0
      %2917 = vmatpush2.msra.mxu0 0.0
      %2918 = vmatprep.subr.mxu0 0.0
      %2919 = vmatpush2.msra.mxu0 0.0
      %2920 = vmatprep.subr.mxu0 0.0
      %2921 = vmatpush2.msra.mxu0 0.0
      %2922 = vmatprep.subr.mxu0 0.0
      %2923 = vmatpush2.msra.mxu0 0.0
      %2924 = vmatprep.subr.mxu0 0.0
      %2925 = vmatpush2.msra.mxu0 0.0
      %2926 = vmatprep.subr.mxu0 0.0
      %2927 = vmatpush2.msra.mxu0 0.0
      %2928 = vmatprep.subr.mxu0 0.0
      %2929 = vmatpush2.msra.mxu0 0.0
      %2930 = vmatprep.subr.mxu0 0.0
      %2931 = vmatpush2.msra.mxu0 0.0
      %2932 = vmatprep.subr.mxu0 0.0
      %2933 = vmatpush2.msra.mxu0 0.0
      %2934 = vmatprep.subr.mxu0 0.0
      %2935 = vmatpush2.msra.mxu0 0.0
      %2936 = vmatprep.subr.mxu0 0.0
      %2937 = vmatpush2.msra.mxu0 0.0
      %2938 = vmatprep.subr.mxu0 0.0
      %2939 = vmatpush2.msra.mxu0 0.0
      %2940 = vmatprep.subr.mxu0 0.0
      %2941 = vmatpush2.msra.mxu0 0.0
      %2942 = vmatprep.subr.mxu0 0.0
      %2943 = vmatpush2.msra.mxu0 0.0
      %2944 = vmatprep.mubr.f32.mxu0 0.0
      %2945 = vmatmul.mubr.f32.gmra.mxu0 %v2875
      %v2946 = vpop.f32.mrf.mxu0
      %v2947 = vadd.f32 %v2867, %v2946
      %v2948 = vpop.f32.mrf.mxu0
      %v2949 = vadd.f32 %v2867, %v2948
      %2950 = vmatprep.mubr.f32.mxu0 0.0
      %2951 = vmatmul.mubr.f32.gmra.mxu0 %v2878
      %v2952 = vpop.f32.mrf.mxu0
      %v2953 = vadd.f32 %v2872, %v2952
      %v2954 = vpop.f32.mrf.mxu0
      %v2955 = vadd.f32 %v2872, %v2954
      %2956 = vdwg.mxu0
      %v2957 = vmul.f32 %v2947, %v2953
      %v2958 = vmul.f32 %v2949, %v2955
      %v2959 = vld [vmem:[%s63] sm:$0xff]
      %v2960 = vld [vmem:[%s65] sm:$0xff]
      %2962 = vset.pattern.permute.xlu0 0
      %2963 = vperm.xlu0 %2962, %v2960
      %v2964 = vpop.permute.xlu0 %2963
      %v2967 = vsel %vm1105, %v2959, 0
      %2969 = vmatprep.subr.mxu0 0.0
      %2970 = vmatpush1.msra.mxu0 0.0
      %2971 = vmatprep.subr.mxu0 0.0
      %2972 = vmatpush1.msra.mxu0 0.0
      %2973 = vmatprep.subr.mxu0 0.0
      %2974 = vmatpush1.msra.mxu0 0.0
      %2975 = vmatprep.subr.mxu0 0.0
      %2976 = vmatpush1.msra.mxu0 0.0
      %2977 = vmatprep.subr.mxu0 0.0
      %2978 = vmatpush1.msra.mxu0 0.0
      %2979 = vmatprep.subr.mxu0 0.0
      %2980 = vmatpush1.msra.mxu0 0.0
      %2981 = vmatprep.subr.mxu0 0.0
      %2982 = vmatpush1.msra.mxu0 0.0
      %2983 = vmatprep.subr.mxu0 0.0
      %2984 = vmatpush1.msra.mxu0 0.0
      %2985 = vmatprep.subr.mxu0 0.0
      %2986 = vmatpush1.msra.mxu0 0.0
      %2987 = vmatprep.subr.mxu0 0.0
      %2988 = vmatpush1.msra.mxu0 0.0
      %2989 = vmatprep.subr.mxu0 0.0
      %2990 = vmatpush1.msra.mxu0 0.0
      %2991 = vmatprep.subr.mxu0 0.0
      %2992 = vmatpush1.msra.mxu0 0.0
      %2993 = vmatprep.subr.mxu0 0.0
      %2994 = vmatpush1.msra.mxu0 0.0
      %2995 = vmatprep.subr.mxu0 0.0
      %2996 = vmatpush1.msra.mxu0 0.0
      %2997 = vmatprep.subr.mxu0 0.0
      %2998 = vmatpush1.msra.mxu0 0.0
      %2999 = vmatprep.subr.mxu0 %v2958
      %3000 = vmatpush1.msra.mxu0 %v2957
      %3001 = vmatprep.subr.mxu0 0.0
      %3002 = vmatpush2.msra.mxu0 0.0
      %3003 = vmatprep.subr.mxu0 0.0
      %3004 = vmatpush2.msra.mxu0 0.0
      %3005 = vmatprep.subr.mxu0 0.0
      %3006 = vmatpush2.msra.mxu0 0.0
      %3007 = vmatprep.subr.mxu0 0.0
      %3008 = vmatpush2.msra.mxu0 0.0
      %3009 = vmatprep.subr.mxu0 0.0
      %3010 = vmatpush2.msra.mxu0 0.0
      %3011 = vmatprep.subr.mxu0 0.0
      %3012 = vmatpush2.msra.mxu0 0.0
      %3013 = vmatprep.subr.mxu0 0.0
      %3014 = vmatpush2.msra.mxu0 0.0
      %3015 = vmatprep.subr.mxu0 0.0
      %3016 = vmatpush2.msra.mxu0 0.0
      %3017 = vmatprep.subr.mxu0 0.0
      %3018 = vmatpush2.msra.mxu0 0.0
      %3019 = vmatprep.subr.mxu0 0.0
      %3020 = vmatpush2.msra.mxu0 0.0
      %3021 = vmatprep.subr.mxu0 0.0
      %3022 = vmatpush2.msra.mxu0 0.0
      %3023 = vmatprep.subr.mxu0 0.0
      %3024 = vmatpush2.msra.mxu0 0.0
      %3025 = vmatprep.subr.mxu0 0.0
      %3026 = vmatpush2.msra.mxu0 0.0
      %3027 = vmatprep.subr.mxu0 0.0
      %3028 = vmatpush2.msra.mxu0 0.0
      %3029 = vmatprep.subr.mxu0 0.0
      %3030 = vmatpush2.msra.mxu0 0.0
      %3031 = vmatprep.subr.mxu0 0.0
      %3032 = vmatpush2.msra.mxu0 0.0
      %3033 = vmatprep.mubr.f32.mxu0 0.0
      %3034 = vmatmul.mubr.f32.gmra.mxu0 %v2967
      %v3035 = vpop.f32.mrf.mxu0
      %v3036 = vadd.f32 %v2964, %v3035
      %v3037 = vpop.f32.mrf.mxu0
      %v3038 = vadd.f32 %v2964, %v3037
      %3039 = vdwg.mxu0
      %v3040 = vld [vmem:[%s67] sm:$0xff]
      %3042 = vset.pattern.permute.xlu0 0
      %3043 = vperm.xlu0 %3042, %v3040
      %v3044 = vpop.permute.xlu0 %3043
      %v3046 = vmul.f32 %v3036, %v3044
      %v3047 = vmul.f32 %v3038, %v3044
      %v3048 = vadd.f32 %v2804, %v3046
      %v3049 = vadd.f32 %v2805, %v3047
      %3050 = vst [vmem:[%s1042] sm:$0xff] %v3048
      %3051 = vst [vmem:[%s1042 + $0x8] sm:$0xff] %v3049
      %p3052 = scmp.lt.s32.totalorder %s80, 1
      %s3053 = scalar_select %p3052, %s80, 1
      %s3054 = smul.addr %s3053, 2
      %s3055 = smul.addr %s3054, 8
      %s3056 = scalar_lea.vmem %s69, %s3055
      // Predicated region
      $region157: #{kbblock_forward.1} parent=155 // pred_check
        %p3057 = pneg %p817
      $region158: #{kbblock_forward.1} parent=155 // pred_check_branch
        %3059 = sbr.rel (%p3057) target = $region160
      $region159: #{kbblock_forward.1} parent=155 // pred_region
        _
      $region160: #{kbblock_forward.1} parent=155 // pred_fallthru
        _
    $region156: #{kbblock_forward.1} parent=5 // pred_fallthru
      _
    %p3060 = scmp.le.s32.totalorder 2, %s75
    // Predicated region
    $region161: #{kbblock_forward.1} parent=5 // pred_check
      %p3061 = pneg %p3060
    $region162: #{kbblock_forward.1} parent=5 // pred_check_branch
      %3063 = sbr.rel (%p3061) target = $region164
    $region163: #{kbblock_forward.1} parent=5 // pred_region
      %s3064 = ssub.s32 %s75, 2
      // Predicated region
      $region165: #{kbblock_forward.1} parent=163 // pred_check
        %p3065 = pneg %p823
      $region166: #{kbblock_forward.1} parent=163 // pred_check_branch
        %3067 = sbr.rel (%p3065) target = $region168
      $region167: #{kbblock_forward.1} parent=163 // pred_region
        %p3068 = scmp.lt.s32.totalorder %s81, 1
        %s3069 = scalar_select %p3068, %s81, 1
        %s3070 = smul.addr %s3069, 2
        %s3071 = smul.addr %s3070, 8
        %s3072 = scalar_lea.vmem %s69, %s3071
      $region168: #{kbblock_forward.1} parent=163 // pred_fallthru
        _
    $region164: #{kbblock_forward.1} parent=5 // pred_fallthru
      _
  $region6: #{kbblock_forward.1} parent=0 // loop_footer
    %s79 = sadd.s32 1, %s75
  $region7: #{kbblock_forward.1} parent=0 // loop_footer_branch
    %74 = sbr.rel target = $region3
  $region8: #{kbblock_forward.1} parent=0 // loop_exit
    _

</llo_original>
